<compile_context>
chip_gen: v7x
topology: tpu7x:2x2x1
jax: 0.10.0
libtpu: 0.0.40
codegen_flags: <defaults>
</compile_context>

<pallas_src>
import math
import jax
import jax.numpy as jnp
from jax.experimental import pallas as pl
from jax.experimental.pallas import tpu as pltpu


# ---------------------------------------------------------------------------
# Fused Pallas kernel
# ---------------------------------------------------------------------------

def _fused_rsa_kernel(x_ref, p_ref, wqkv_ref, bqkv_ref, hsum_ref, hexp_ref,
                      wo_ref, bo_ref, o_ref):
    """One grid step == one batch element.

    x_ref    : (1, n, d)      input sequence (channels-last)
    p_ref    : (1, r, n, nh)  positional term, pre-transposed so p_ref[0, j]
                              is a lane-friendly (n, nh) slab for offset j
    wqkv_ref : (d, 3d)        fused, head-grouped  [WQ^T | WK^T | WV^T]
    bqkv_ref : (1, 3d)
    hsum_ref : (d, nh)        per-head indicator / sqrt(dh)   (score reduction)
    hexp_ref : (nh, d)        per-head indicator              (weight expansion)
    wo_ref   : (d, d)         WO^T with rows in head-grouped order
    bo_ref   : (1, d)
    o_ref    : (1, n, d)
    """
    n, d = x_ref.shape[1], x_ref.shape[2]
    r = p_ref.shape[1]

    x = x_ref[0]                                                       # (n, d)

    # Fused QKV projection: one (n,d)@(d,3d) MXU pass instead of three calls.
    qkv = jnp.dot(x, wqkv_ref[...],
                  preferred_element_type=jnp.float32) + bqkv_ref[...]  # (n, 3d)
    q = qkv[:, 0:d]
    k = qkv[:, d:2 * d]
    v = qkv[:, 2 * d:3 * d]

    hsum = hsum_ref[...]          # (d, nh), includes the 1/sqrt(dh) scale
    hexp = hexp_ref[...]          # (nh, d)

    # Cyclic neighborhood: position i attends to rows (i+j) % n, j = 0..r-1.
    # Realized as one aligned sublane concat + static slices (pure on-chip
    # data movement, no HBM-materialized (n, r, d) gather).
    k_ext = jnp.concatenate([k, k[:r, :]], axis=0)                     # (n+r, d)
    v_ext = jnp.concatenate([v, v[:r, :]], axis=0)                     # (n+r, d)

    # scores[j][i,h] = sum_{c in head h} q[i,c]*k[(i+j)%n,c] / sqrt(dh) + P[i,j,h]
    s = []
    for j in range(r):
        kj = k_ext[j:j + n, :]                                         # (n, d)
        s.append(jnp.dot(q * kj, hsum, preferred_element_type=jnp.float32)
                 + p_ref[0, j])                                        # (n, nh)

    # Softmax over the neighborhood axis j (max-subtracted, EUP exp).
    m = s[0]
    for j in range(1, r):
        m = jnp.maximum(m, s[j])
    e = [jnp.exp(sj - m) for sj in s]
    denom = e[0]
    for j in range(1, r):
        denom = denom + e[j]
    # EUP approximate reciprocal + one Newton step (keeps f32-level accuracy
    # while avoiding a vector divide on the VPU critical path).
    inv = pl.reciprocal(denom, approx=True)
    inv = inv * (2.0 - denom * inv)                                    # (n, nh)

    # attended[i, c] = sum_j w[i, head(c), j] * v[(i+j)%n, c]
    acc = None
    for j in range(r):
        wj = e[j] * inv                                                # (n, nh)
        wj_full = jnp.dot(wj, hexp, preferred_element_type=jnp.float32)  # (n, d)
        term = wj_full * v_ext[j:j + n, :]
        acc = term if acc is None else acc + term

    # Output projection (consumes head-grouped channels via row-permuted WO^T),
    # result is back in the original channel order.
    y = jnp.dot(acc, wo_ref[...], preferred_element_type=jnp.float32) + bo_ref[...]
    o_ref[0] = y.astype(o_ref.dtype)


# ---------------------------------------------------------------------------
# Wrapper
# ---------------------------------------------------------------------------

def restricted_self_attention_forward(X, P, fused_params, num_heads):
    """X: (bs, n, d); P: (bs, n, r, num_heads)  ->  (bs, n, d)."""
    bs, n, d = X.shape
    r = P.shape[2]
    nh = num_heads
    assert P.shape == (bs, n, r, nh) and d % nh == 0 and r <= n

    # Layout plumbing only: put the (n, nh) slab of each neighborhood offset
    # on the last two (lane-friendly) axes.
    P_t = jnp.transpose(P, (0, 2, 1, 3))                               # (bs, r, n, nh)

    f = fused_params
    return pl.pallas_call(
        _fused_rsa_kernel,
        out_shape=jax.ShapeDtypeStruct((bs, n, d), X.dtype),
        grid=(bs,),
        in_specs=[
            pl.BlockSpec((1, n, d), lambda b: (b, 0, 0)),              # X
            pl.BlockSpec((1, r, n, nh), lambda b: (b, 0, 0, 0)),       # P (transposed)
            pl.BlockSpec((d, 3 * d), lambda b: (0, 0)),                # fused W_QKV^T
            pl.BlockSpec((1, 3 * d), lambda b: (0, 0)),                # fused b_QKV
            pl.BlockSpec((d, nh), lambda b: (0, 0)),                   # head-sum matrix
            pl.BlockSpec((nh, d), lambda b: (0, 0)),                   # head-expand matrix
            pl.BlockSpec((d, d), lambda b: (0, 0)),                    # WO^T (row-permuted)
            pl.BlockSpec((1, d), lambda b: (0, 0)),                    # b_O
        ],
        out_specs=pl.BlockSpec((1, n, d), lambda b: (b, 0, 0)),
        compiler_params=pltpu.CompilerParams(
            dimension_semantics=("parallel",)),
    )(X, P_t, f["wqkv_t"], f["bqkv"], f["hsum"], f["hexp"], f["wo_t"], f["bo"])


# ---------------------------------------------------------------------------
# Parameters: PyTorch-style init + one-time fused/permuted prep
# ---------------------------------------------------------------------------

def init_params(key, ch_in):
    ks = jax.random.split(key, 8)
    bound = 1.0 / math.sqrt(ch_in)

    def lin(kw, kb):
        w = jax.random.uniform(kw, (ch_in, ch_in), jnp.float32, -bound, bound)
        b = jax.random.uniform(kb, (ch_in,), jnp.float32, -bound, bound)
        return w, b

    params = {}
    for name, (kw, kb) in zip(
        ["WQ", "WK", "WV", "WO"],
        [(ks[0], ks[1]), (ks[2], ks[3]), (ks[4], ks[5]), (ks[6], ks[7])],
    ):
        w, b = lin(kw, kb)
        params[f"{name}_w"] = w             # PyTorch nn.Linear layout: (out, in)
        params[f"{name}_b"] = b
    return params


def prepare_fused_params(params, num_heads):
    """One-time prep: transpose, head-group-permute and fuse the weights.

    PyTorch's fold_heads_into_batchdim assigns channel c to head c % num_heads
    (interleaved).  We permute the Q/K/V output channels once so head h owns
    the contiguous block [h*dh, (h+1)*dh) inside the kernel, and permute WO's
    input rows to match; the kernel output is in the original channel order.
    """
    d = params["WQ_w"].shape[0]
    dh = d // num_heads
    g = jnp.arange(d)
    perm = (g % dh) * num_heads + (g // dh)     # grouped channel g -> original channel c

    wq_t = params["WQ_w"].T[:, perm]
    wk_t = params["WK_w"].T[:, perm]
    wv_t = params["WV_w"].T[:, perm]
    wqkv_t = jnp.concatenate([wq_t, wk_t, wv_t], axis=1)               # (d, 3d)
    bqkv = jnp.concatenate([params["WQ_b"][perm], params["WK_b"][perm],
                            params["WV_b"][perm]]).reshape(1, 3 * d)

    wo_t = params["WO_w"].T[perm, :]                                    # (d, d)
    bo = params["WO_b"].reshape(1, d)

    onehot = (g[:, None] // dh == jnp.arange(num_heads)[None, :]).astype(jnp.float32)  # (d, nh)
    hsum = onehot / math.sqrt(dh)       # folds the 1/sqrt(dh) score scale
    hexp = onehot.T                     # (nh, d)
    return dict(wqkv_t=wqkv_t, bqkv=bqkv, wo_t=wo_t, bo=bo, hsum=hsum, hexp=hexp)


# ---------------------------------------------------------------------------
# Pure-JAX reference (mirrors the PyTorch math) for validation
# ---------------------------------------------------------------------------

def fold_heads_into_batchdim(x, num_heads):
    bs = x.shape[0]
    dd = x.shape[-1]
    x = x.reshape(*x.shape[:-1], dd // num_heads, num_heads)
    x = jnp.moveaxis(x, -1, 0)
    return x.reshape(num_heads * bs, *x.shape[2:])


def fold_heads_outof_batchdim(x, num_heads):
    bs = x.shape[0] // num_heads
    x = x.reshape(num_heads, bs, *x.shape[1:])
    x = jnp.moveaxis(x, 0, -1)
    return x.reshape(*x.shape[:-2], x.shape[-2] * x.shape[-1])


def make_cyclic_nbhd_indices(n, r):
    # TODO(synk): nbhd_extractor is an injected submodule in the PyTorch code;
    # it is realized here as a fixed cyclic window (i, i+1, ..., i+r-1) mod n.
    return (jnp.arange(n)[:, None] + jnp.arange(r)[None, :]) % n


def reference_forward(X, P, params, num_heads, nbhd_idx):
    def lin(x, w, b):
        return x @ w.T + b

    q = lin(X, params["WQ_w"], params["WQ_b"])
    kx = lin(X, params["WK_w"], params["WK_b"])
    vx = lin(X, params["WV_w"], params["WV_b"])
    Kn = kx[:, nbhd_idx, :]                         # (bs, n, r, d)
    Vn = vx[:, nbhd_idx, :]

    Qf = fold_heads_into_batchdim(q, num_heads)
    Kf = fold_heads_into_batchdim(Kn, num_heads)
    Vf = fold_heads_into_batchdim(Vn, num_heads)
    Pf = fold_heads_into_batchdim(P, num_heads)[..., 0]

    dh = Qf.shape[-1]
    scores = jnp.einsum("bnd,bnrd->bnr", Qf, Kf) / jnp.sqrt(jnp.float32(dh)) + Pf
    w = jax.nn.softmax(scores, axis=-1)
    att = jnp.einsum("bnr,bnrd->bnd", w, Vf)
    out = fold_heads_outof_batchdim(att, num_heads)
    return lin(out, params["WO_w"], params["WO_b"])


# ---------------------------------------------------------------------------
# Main
# ---------------------------------------------------------------------------

if __name__ == "__main__":
    bs, n, ch_in = 2, 64, 32
    num_heads = 8
    r = 8

    key = jax.random.PRNGKey(0)
    kx, kp, kparams = jax.random.split(key, 3)

    X = jax.random.normal(kx, (bs, n, ch_in), jnp.float32)
    P = 0.1 * jax.random.normal(kp, (bs, n, r, num_heads), jnp.float32)
    params = init_params(kparams, ch_in)
    fused = prepare_fused_params(params, num_heads)

    out = restricted_self_attention_forward(X, P, fused, num_heads)
    out = jax.block_until_ready(out)

    nbhd_idx = make_cyclic_nbhd_indices(n, r)
    ref = reference_forward(X, P, params, num_heads, nbhd_idx)

    assert out.shape == (bs, n, ch_in)
    # 2e-4 tolerance: approx-reciprocal(+Newton) softmax normalization vs the
    # reference's exact divide; everything else is f32.
    assert jnp.allclose(out, ref, atol=2e-4, rtol=2e-4), "mismatch vs reference"

    print("KERNEL_OK")
</pallas_src>

<mosaic_0001>
module attributes {stable_mosaic.version = 11 : i64} {
  func.func @_fused_rsa_kernel(%arg0: i32, %arg1: memref<1x64x32xf32, #tpu.memory_space<vmem>>, %arg2: memref<1x8x64x8xf32, #tpu.memory_space<vmem>>, %arg3: memref<32x96xf32, #tpu.memory_space<vmem>>, %arg4: memref<1x96xf32, #tpu.memory_space<vmem>>, %arg5: memref<32x8xf32, #tpu.memory_space<vmem>>, %arg6: memref<8x32xf32, #tpu.memory_space<vmem>>, %arg7: memref<32x32xf32, #tpu.memory_space<vmem>>, %arg8: memref<1x32xf32, #tpu.memory_space<vmem>>, %arg9: memref<1x64x32xf32, #tpu.memory_space<vmem>>) attributes {dimension_semantics = [#tpu.dimension_semantics<parallel>], iteration_bounds = array<i64: 2>, scalar_prefetch = 0 : i64, scratch_operands = 0 : i64, tpu.core_type = #tpu.core_type<tc>, window_params = [{transform_indices = @transform_0, window_bounds = array<i64: 1, 64, 32>}, {transform_indices = @transform_1, window_bounds = array<i64: 1, 8, 64, 8>}, {pipeline_mode = #tpu.pipeline_mode<synchronous>, transform_indices = @transform_2, window_bounds = array<i64: 32, 96>}, {pipeline_mode = #tpu.pipeline_mode<synchronous>, transform_indices = @transform_3, window_bounds = array<i64: 1, 96>}, {pipeline_mode = #tpu.pipeline_mode<synchronous>, transform_indices = @transform_4, window_bounds = array<i64: 32, 8>}, {pipeline_mode = #tpu.pipeline_mode<synchronous>, transform_indices = @transform_5, window_bounds = array<i64: 8, 32>}, {pipeline_mode = #tpu.pipeline_mode<synchronous>, transform_indices = @transform_6, window_bounds = array<i64: 32, 32>}, {pipeline_mode = #tpu.pipeline_mode<synchronous>, transform_indices = @transform_7, window_bounds = array<i64: 1, 32>}, {transform_indices = @transform_8, window_bounds = array<i64: 1, 64, 32>}]} {
    %c0 = arith.constant 0 : index
    %c0_0 = arith.constant 0 : index
    %c0_1 = arith.constant 0 : index
    %0 = vector.load %arg1[%c0, %c0_0, %c0_1] : memref<1x64x32xf32, #tpu.memory_space<vmem>>, vector<1x64x32xf32>
    %1 = vector.shape_cast %0 : vector<1x64x32xf32> to vector<64x32xf32>
    %c0_2 = arith.constant 0 : index
    %c0_3 = arith.constant 0 : index
    %2 = vector.load %arg3[%c0_2, %c0_3] : memref<32x96xf32, #tpu.memory_space<vmem>>, vector<32x96xf32>
    %cst = arith.constant dense<0.000000e+00> : vector<64x96xf32>
    %3 = tpu.matmul %1, %2, %cst {dimension_numbers = #tpu.dot_dimension_numbers<[1], [0], [0], [1], [0, 0, 1, 1], [], []>} : vector<64x32xf32>, vector<32x96xf32>, vector<64x96xf32> -> vector<64x96xf32>
    %c0_4 = arith.constant 0 : index
    %c0_5 = arith.constant 0 : index
    %4 = vector.load %arg4[%c0_4, %c0_5] : memref<1x96xf32, #tpu.memory_space<vmem>>, vector<1x96xf32>
    %5 = vector.broadcast %4 : vector<1x96xf32> to vector<64x96xf32>
    %6 = arith.addf %3, %5 : vector<64x96xf32>
    %7 = vector.extract_strided_slice %6 {offsets = [0, 0], sizes = [64, 32], strides = [1, 1]} : vector<64x96xf32> to vector<64x32xf32>
    %8 = vector.extract_strided_slice %6 {offsets = [0, 32], sizes = [64, 32], strides = [1, 1]} : vector<64x96xf32> to vector<64x32xf32>
    %9 = vector.extract_strided_slice %6 {offsets = [0, 64], sizes = [64, 32], strides = [1, 1]} : vector<64x96xf32> to vector<64x32xf32>
    %c0_6 = arith.constant 0 : index
    %c0_7 = arith.constant 0 : index
    %10 = vector.load %arg5[%c0_6, %c0_7] : memref<32x8xf32, #tpu.memory_space<vmem>>, vector<32x8xf32>
    %c0_8 = arith.constant 0 : index
    %c0_9 = arith.constant 0 : index
    %11 = vector.load %arg6[%c0_8, %c0_9] : memref<8x32xf32, #tpu.memory_space<vmem>>, vector<8x32xf32>
    %12 = vector.extract_strided_slice %8 {offsets = [0, 0], sizes = [8, 32], strides = [1, 1]} : vector<64x32xf32> to vector<8x32xf32>
    %13 = tpu.concatenate %8, %12 in 0 : vector<64x32xf32>, vector<8x32xf32> -> vector<72x32xf32>
    %14 = vector.extract_strided_slice %9 {offsets = [0, 0], sizes = [8, 32], strides = [1, 1]} : vector<64x32xf32> to vector<8x32xf32>
    %15 = tpu.concatenate %9, %14 in 0 : vector<64x32xf32>, vector<8x32xf32> -> vector<72x32xf32>
    %16 = vector.extract_strided_slice %13 {offsets = [0, 0], sizes = [64, 32], strides = [1, 1]} : vector<72x32xf32> to vector<64x32xf32>
    %17 = arith.mulf %7, %16 : vector<64x32xf32>
    %cst_10 = arith.constant dense<0.000000e+00> : vector<64x8xf32>
    %18 = tpu.matmul %17, %10, %cst_10 {dimension_numbers = #tpu.dot_dimension_numbers<[1], [0], [0], [1], [0, 0, 1, 1], [], []>} : vector<64x32xf32>, vector<32x8xf32>, vector<64x8xf32> -> vector<64x8xf32>
    %c0_11 = arith.constant 0 : index
    %c0_12 = arith.constant 0 : index
    %c0_13 = arith.constant 0 : index
    %c0_14 = arith.constant 0 : index
    %19 = vector.load %arg2[%c0_11, %c0_12, %c0_13, %c0_14] : memref<1x8x64x8xf32, #tpu.memory_space<vmem>>, vector<1x1x64x8xf32>
    %20 = vector.shape_cast %19 : vector<1x1x64x8xf32> to vector<64x8xf32>
    %21 = arith.addf %18, %20 : vector<64x8xf32>
    %22 = vector.extract_strided_slice %13 {offsets = [1, 0], sizes = [64, 32], strides = [1, 1]} : vector<72x32xf32> to vector<64x32xf32>
    %23 = arith.mulf %7, %22 : vector<64x32xf32>
    %cst_15 = arith.constant dense<0.000000e+00> : vector<64x8xf32>
    %24 = tpu.matmul %23, %10, %cst_15 {dimension_numbers = #tpu.dot_dimension_numbers<[1], [0], [0], [1], [0, 0, 1, 1], [], []>} : vector<64x32xf32>, vector<32x8xf32>, vector<64x8xf32> -> vector<64x8xf32>
    %c0_16 = arith.constant 0 : index
    %c1 = arith.constant 1 : index
    %c0_17 = arith.constant 0 : index
    %c0_18 = arith.constant 0 : index
    %25 = vector.load %arg2[%c0_16, %c1, %c0_17, %c0_18] : memref<1x8x64x8xf32, #tpu.memory_space<vmem>>, vector<1x1x64x8xf32>
    %26 = vector.shape_cast %25 : vector<1x1x64x8xf32> to vector<64x8xf32>
    %27 = arith.addf %24, %26 : vector<64x8xf32>
    %28 = vector.extract_strided_slice %13 {offsets = [2, 0], sizes = [64, 32], strides = [1, 1]} : vector<72x32xf32> to vector<64x32xf32>
    %29 = arith.mulf %7, %28 : vector<64x32xf32>
    %cst_19 = arith.constant dense<0.000000e+00> : vector<64x8xf32>
    %30 = tpu.matmul %29, %10, %cst_19 {dimension_numbers = #tpu.dot_dimension_numbers<[1], [0], [0], [1], [0, 0, 1, 1], [], []>} : vector<64x32xf32>, vector<32x8xf32>, vector<64x8xf32> -> vector<64x8xf32>
    %c0_20 = arith.constant 0 : index
    %c2 = arith.constant 2 : index
    %c0_21 = arith.constant 0 : index
    %c0_22 = arith.constant 0 : index
    %31 = vector.load %arg2[%c0_20, %c2, %c0_21, %c0_22] : memref<1x8x64x8xf32, #tpu.memory_space<vmem>>, vector<1x1x64x8xf32>
    %32 = vector.shape_cast %31 : vector<1x1x64x8xf32> to vector<64x8xf32>
    %33 = arith.addf %30, %32 : vector<64x8xf32>
    %34 = vector.extract_strided_slice %13 {offsets = [3, 0], sizes = [64, 32], strides = [1, 1]} : vector<72x32xf32> to vector<64x32xf32>
    %35 = arith.mulf %7, %34 : vector<64x32xf32>
    %cst_23 = arith.constant dense<0.000000e+00> : vector<64x8xf32>
    %36 = tpu.matmul %35, %10, %cst_23 {dimension_numbers = #tpu.dot_dimension_numbers<[1], [0], [0], [1], [0, 0, 1, 1], [], []>} : vector<64x32xf32>, vector<32x8xf32>, vector<64x8xf32> -> vector<64x8xf32>
    %c0_24 = arith.constant 0 : index
    %c3 = arith.constant 3 : index
    %c0_25 = arith.constant 0 : index
    %c0_26 = arith.constant 0 : index
    %37 = vector.load %arg2[%c0_24, %c3, %c0_25, %c0_26] : memref<1x8x64x8xf32, #tpu.memory_space<vmem>>, vector<1x1x64x8xf32>
    %38 = vector.shape_cast %37 : vector<1x1x64x8xf32> to vector<64x8xf32>
    %39 = arith.addf %36, %38 : vector<64x8xf32>
    %40 = vector.extract_strided_slice %13 {offsets = [4, 0], sizes = [64, 32], strides = [1, 1]} : vector<72x32xf32> to vector<64x32xf32>
    %41 = arith.mulf %7, %40 : vector<64x32xf32>
    %cst_27 = arith.constant dense<0.000000e+00> : vector<64x8xf32>
    %42 = tpu.matmul %41, %10, %cst_27 {dimension_numbers = #tpu.dot_dimension_numbers<[1], [0], [0], [1], [0, 0, 1, 1], [], []>} : vector<64x32xf32>, vector<32x8xf32>, vector<64x8xf32> -> vector<64x8xf32>
    %c0_28 = arith.constant 0 : index
    %c4 = arith.constant 4 : index
    %c0_29 = arith.constant 0 : index
    %c0_30 = arith.constant 0 : index
    %43 = vector.load %arg2[%c0_28, %c4, %c0_29, %c0_30] : memref<1x8x64x8xf32, #tpu.memory_space<vmem>>, vector<1x1x64x8xf32>
    %44 = vector.shape_cast %43 : vector<1x1x64x8xf32> to vector<64x8xf32>
    %45 = arith.addf %42, %44 : vector<64x8xf32>
    %46 = vector.extract_strided_slice %13 {offsets = [5, 0], sizes = [64, 32], strides = [1, 1]} : vector<72x32xf32> to vector<64x32xf32>
    %47 = arith.mulf %7, %46 : vector<64x32xf32>
    %cst_31 = arith.constant dense<0.000000e+00> : vector<64x8xf32>
    %48 = tpu.matmul %47, %10, %cst_31 {dimension_numbers = #tpu.dot_dimension_numbers<[1], [0], [0], [1], [0, 0, 1, 1], [], []>} : vector<64x32xf32>, vector<32x8xf32>, vector<64x8xf32> -> vector<64x8xf32>
    %c0_32 = arith.constant 0 : index
    %c5 = arith.constant 5 : index
    %c0_33 = arith.constant 0 : index
    %c0_34 = arith.constant 0 : index
    %49 = vector.load %arg2[%c0_32, %c5, %c0_33, %c0_34] : memref<1x8x64x8xf32, #tpu.memory_space<vmem>>, vector<1x1x64x8xf32>
    %50 = vector.shape_cast %49 : vector<1x1x64x8xf32> to vector<64x8xf32>
    %51 = arith.addf %48, %50 : vector<64x8xf32>
    %52 = vector.extract_strided_slice %13 {offsets = [6, 0], sizes = [64, 32], strides = [1, 1]} : vector<72x32xf32> to vector<64x32xf32>
    %53 = arith.mulf %7, %52 : vector<64x32xf32>
    %cst_35 = arith.constant dense<0.000000e+00> : vector<64x8xf32>
    %54 = tpu.matmul %53, %10, %cst_35 {dimension_numbers = #tpu.dot_dimension_numbers<[1], [0], [0], [1], [0, 0, 1, 1], [], []>} : vector<64x32xf32>, vector<32x8xf32>, vector<64x8xf32> -> vector<64x8xf32>
    %c0_36 = arith.constant 0 : index
    %c6 = arith.constant 6 : index
    %c0_37 = arith.constant 0 : index
    %c0_38 = arith.constant 0 : index
    %55 = vector.load %arg2[%c0_36, %c6, %c0_37, %c0_38] : memref<1x8x64x8xf32, #tpu.memory_space<vmem>>, vector<1x1x64x8xf32>
    %56 = vector.shape_cast %55 : vector<1x1x64x8xf32> to vector<64x8xf32>
    %57 = arith.addf %54, %56 : vector<64x8xf32>
    %58 = vector.extract_strided_slice %13 {offsets = [7, 0], sizes = [64, 32], strides = [1, 1]} : vector<72x32xf32> to vector<64x32xf32>
    %59 = arith.mulf %7, %58 : vector<64x32xf32>
    %cst_39 = arith.constant dense<0.000000e+00> : vector<64x8xf32>
    %60 = tpu.matmul %59, %10, %cst_39 {dimension_numbers = #tpu.dot_dimension_numbers<[1], [0], [0], [1], [0, 0, 1, 1], [], []>} : vector<64x32xf32>, vector<32x8xf32>, vector<64x8xf32> -> vector<64x8xf32>
    %c0_40 = arith.constant 0 : index
    %c7 = arith.constant 7 : index
    %c0_41 = arith.constant 0 : index
    %c0_42 = arith.constant 0 : index
    %61 = vector.load %arg2[%c0_40, %c7, %c0_41, %c0_42] : memref<1x8x64x8xf32, #tpu.memory_space<vmem>>, vector<1x1x64x8xf32>
    %62 = vector.shape_cast %61 : vector<1x1x64x8xf32> to vector<64x8xf32>
    %63 = arith.addf %60, %62 : vector<64x8xf32>
    %64 = arith.maximumf %21, %27 : vector<64x8xf32>
    %65 = arith.maximumf %64, %33 : vector<64x8xf32>
    %66 = arith.maximumf %65, %39 : vector<64x8xf32>
    %67 = arith.maximumf %66, %45 : vector<64x8xf32>
    %68 = arith.maximumf %67, %51 : vector<64x8xf32>
    %69 = arith.maximumf %68, %57 : vector<64x8xf32>
    %70 = arith.maximumf %69, %63 : vector<64x8xf32>
    %71 = arith.subf %21, %70 : vector<64x8xf32>
    %72 = math.exp %71 : vector<64x8xf32>
    %73 = arith.subf %27, %70 : vector<64x8xf32>
    %74 = math.exp %73 : vector<64x8xf32>
    %75 = arith.subf %33, %70 : vector<64x8xf32>
    %76 = math.exp %75 : vector<64x8xf32>
    %77 = arith.subf %39, %70 : vector<64x8xf32>
    %78 = math.exp %77 : vector<64x8xf32>
    %79 = arith.subf %45, %70 : vector<64x8xf32>
    %80 = math.exp %79 : vector<64x8xf32>
    %81 = arith.subf %51, %70 : vector<64x8xf32>
    %82 = math.exp %81 : vector<64x8xf32>
    %83 = arith.subf %57, %70 : vector<64x8xf32>
    %84 = math.exp %83 : vector<64x8xf32>
    %85 = arith.subf %63, %70 : vector<64x8xf32>
    %86 = math.exp %85 : vector<64x8xf32>
    %87 = arith.addf %72, %74 : vector<64x8xf32>
    %88 = arith.addf %87, %76 : vector<64x8xf32>
    %89 = arith.addf %88, %78 : vector<64x8xf32>
    %90 = arith.addf %89, %80 : vector<64x8xf32>
    %91 = arith.addf %90, %82 : vector<64x8xf32>
    %92 = arith.addf %91, %84 : vector<64x8xf32>
    %93 = arith.addf %92, %86 : vector<64x8xf32>
    %94 = tpu.reciprocal %93 {approx = true} : vector<64x8xf32> -> vector<64x8xf32>
    %95 = arith.mulf %93, %94 : vector<64x8xf32>
    %cst_43 = arith.constant 2.000000e+00 : f32
    %96 = vector.broadcast %cst_43 : f32 to vector<64x8xf32>
    %97 = arith.subf %96, %95 : vector<64x8xf32>
    %98 = arith.mulf %94, %97 : vector<64x8xf32>
    %99 = arith.mulf %72, %98 : vector<64x8xf32>
    %cst_44 = arith.constant dense<0.000000e+00> : vector<64x32xf32>
    %100 = tpu.matmul %99, %11, %cst_44 {dimension_numbers = #tpu.dot_dimension_numbers<[1], [0], [0], [1], [0, 0, 1, 1], [], []>} : vector<64x8xf32>, vector<8x32xf32>, vector<64x32xf32> -> vector<64x32xf32>
    %101 = vector.extract_strided_slice %15 {offsets = [0, 0], sizes = [64, 32], strides = [1, 1]} : vector<72x32xf32> to vector<64x32xf32>
    %102 = arith.mulf %100, %101 : vector<64x32xf32>
    %103 = arith.mulf %74, %98 : vector<64x8xf32>
    %cst_45 = arith.constant dense<0.000000e+00> : vector<64x32xf32>
    %104 = tpu.matmul %103, %11, %cst_45 {dimension_numbers = #tpu.dot_dimension_numbers<[1], [0], [0], [1], [0, 0, 1, 1], [], []>} : vector<64x8xf32>, vector<8x32xf32>, vector<64x32xf32> -> vector<64x32xf32>
    %105 = vector.extract_strided_slice %15 {offsets = [1, 0], sizes = [64, 32], strides = [1, 1]} : vector<72x32xf32> to vector<64x32xf32>
    %106 = arith.mulf %104, %105 : vector<64x32xf32>
    %107 = arith.addf %102, %106 : vector<64x32xf32>
    %108 = arith.mulf %76, %98 : vector<64x8xf32>
    %cst_46 = arith.constant dense<0.000000e+00> : vector<64x32xf32>
    %109 = tpu.matmul %108, %11, %cst_46 {dimension_numbers = #tpu.dot_dimension_numbers<[1], [0], [0], [1], [0, 0, 1, 1], [], []>} : vector<64x8xf32>, vector<8x32xf32>, vector<64x32xf32> -> vector<64x32xf32>
    %110 = vector.extract_strided_slice %15 {offsets = [2, 0], sizes = [64, 32], strides = [1, 1]} : vector<72x32xf32> to vector<64x32xf32>
    %111 = arith.mulf %109, %110 : vector<64x32xf32>
    %112 = arith.addf %107, %111 : vector<64x32xf32>
    %113 = arith.mulf %78, %98 : vector<64x8xf32>
    %cst_47 = arith.constant dense<0.000000e+00> : vector<64x32xf32>
    %114 = tpu.matmul %113, %11, %cst_47 {dimension_numbers = #tpu.dot_dimension_numbers<[1], [0], [0], [1], [0, 0, 1, 1], [], []>} : vector<64x8xf32>, vector<8x32xf32>, vector<64x32xf32> -> vector<64x32xf32>
    %115 = vector.extract_strided_slice %15 {offsets = [3, 0], sizes = [64, 32], strides = [1, 1]} : vector<72x32xf32> to vector<64x32xf32>
    %116 = arith.mulf %114, %115 : vector<64x32xf32>
    %117 = arith.addf %112, %116 : vector<64x32xf32>
    %118 = arith.mulf %80, %98 : vector<64x8xf32>
    %cst_48 = arith.constant dense<0.000000e+00> : vector<64x32xf32>
    %119 = tpu.matmul %118, %11, %cst_48 {dimension_numbers = #tpu.dot_dimension_numbers<[1], [0], [0], [1], [0, 0, 1, 1], [], []>} : vector<64x8xf32>, vector<8x32xf32>, vector<64x32xf32> -> vector<64x32xf32>
    %120 = vector.extract_strided_slice %15 {offsets = [4, 0], sizes = [64, 32], strides = [1, 1]} : vector<72x32xf32> to vector<64x32xf32>
    %121 = arith.mulf %119, %120 : vector<64x32xf32>
    %122 = arith.addf %117, %121 : vector<64x32xf32>
    %123 = arith.mulf %82, %98 : vector<64x8xf32>
    %cst_49 = arith.constant dense<0.000000e+00> : vector<64x32xf32>
    %124 = tpu.matmul %123, %11, %cst_49 {dimension_numbers = #tpu.dot_dimension_numbers<[1], [0], [0], [1], [0, 0, 1, 1], [], []>} : vector<64x8xf32>, vector<8x32xf32>, vector<64x32xf32> -> vector<64x32xf32>
    %125 = vector.extract_strided_slice %15 {offsets = [5, 0], sizes = [64, 32], strides = [1, 1]} : vector<72x32xf32> to vector<64x32xf32>
    %126 = arith.mulf %124, %125 : vector<64x32xf32>
    %127 = arith.addf %122, %126 : vector<64x32xf32>
    %128 = arith.mulf %84, %98 : vector<64x8xf32>
    %cst_50 = arith.constant dense<0.000000e+00> : vector<64x32xf32>
    %129 = tpu.matmul %128, %11, %cst_50 {dimension_numbers = #tpu.dot_dimension_numbers<[1], [0], [0], [1], [0, 0, 1, 1], [], []>} : vector<64x8xf32>, vector<8x32xf32>, vector<64x32xf32> -> vector<64x32xf32>
    %130 = vector.extract_strided_slice %15 {offsets = [6, 0], sizes = [64, 32], strides = [1, 1]} : vector<72x32xf32> to vector<64x32xf32>
    %131 = arith.mulf %129, %130 : vector<64x32xf32>
    %132 = arith.addf %127, %131 : vector<64x32xf32>
    %133 = arith.mulf %86, %98 : vector<64x8xf32>
    %cst_51 = arith.constant dense<0.000000e+00> : vector<64x32xf32>
    %134 = tpu.matmul %133, %11, %cst_51 {dimension_numbers = #tpu.dot_dimension_numbers<[1], [0], [0], [1], [0, 0, 1, 1], [], []>} : vector<64x8xf32>, vector<8x32xf32>, vector<64x32xf32> -> vector<64x32xf32>
    %135 = vector.extract_strided_slice %15 {offsets = [7, 0], sizes = [64, 32], strides = [1, 1]} : vector<72x32xf32> to vector<64x32xf32>
    %136 = arith.mulf %134, %135 : vector<64x32xf32>
    %137 = arith.addf %132, %136 : vector<64x32xf32>
    %c0_52 = arith.constant 0 : index
    %c0_53 = arith.constant 0 : index
    %138 = vector.load %arg7[%c0_52, %c0_53] : memref<32x32xf32, #tpu.memory_space<vmem>>, vector<32x32xf32>
    %cst_54 = arith.constant dense<0.000000e+00> : vector<64x32xf32>
    %139 = tpu.matmul %137, %138, %cst_54 {dimension_numbers = #tpu.dot_dimension_numbers<[1], [0], [0], [1], [0, 0, 1, 1], [], []>} : vector<64x32xf32>, vector<32x32xf32>, vector<64x32xf32> -> vector<64x32xf32>
    %c0_55 = arith.constant 0 : index
    %c0_56 = arith.constant 0 : index
    %140 = vector.load %arg8[%c0_55, %c0_56] : memref<1x32xf32, #tpu.memory_space<vmem>>, vector<1x32xf32>
    %141 = vector.broadcast %140 : vector<1x32xf32> to vector<64x32xf32>
    %142 = arith.addf %139, %141 : vector<64x32xf32>
    %c0_57 = arith.constant 0 : index
    %c0_58 = arith.constant 0 : index
    %c0_59 = arith.constant 0 : index
    %143 = vector.load %arg9[%c0_57, %c0_58, %c0_59] : memref<1x64x32xf32, #tpu.memory_space<vmem>>, vector<1x64x32xf32>
    %144 = vector.shape_cast %143 : vector<1x64x32xf32> to vector<64x32xf32>
    %145 = vector.shape_cast %142 : vector<64x32xf32> to vector<1x64x32xf32>
    tpu.vector_store %arg9[%c0_57, %c0_58, %c0_59], %145 {strides = array<i32>} : memref<1x64x32xf32, #tpu.memory_space<vmem>>, vector<1x64x32xf32>,
    return
  }
  func.func @transform_0(%arg0: i32) -> (i32, i32, i32) {
    %c0_i32 = arith.constant 0 : i32
    %c0_i32_0 = arith.constant 0 : i32
    %c0_i32_1 = arith.constant 0 : i32
    return %arg0, %c0_i32, %c0_i32_0 : i32, i32, i32
  }
  func.func @transform_1(%arg0: i32) -> (i32, i32, i32, i32) {
    %c0_i32 = arith.constant 0 : i32
    %c0_i32_0 = arith.constant 0 : i32
    %c0_i32_1 = arith.constant 0 : i32
    %c0_i32_2 = arith.constant 0 : i32
    return %arg0, %c0_i32, %c0_i32_0, %c0_i32_1 : i32, i32, i32, i32
  }
  func.func @transform_2(%arg0: i32) -> (i32, i32) {
    %c0_i32 = arith.constant 0 : i32
    %c0_i32_0 = arith.constant 0 : i32
    %c0_i32_1 = arith.constant 0 : i32
    return %c0_i32, %c0_i32_0 : i32, i32
  }
  func.func @transform_3(%arg0: i32) -> (i32, i32) {
    %c0_i32 = arith.constant 0 : i32
    %c0_i32_0 = arith.constant 0 : i32
    %c0_i32_1 = arith.constant 0 : i32
    return %c0_i32, %c0_i32_0 : i32, i32
  }
  func.func @transform_4(%arg0: i32) -> (i32, i32) {
    %c0_i32 = arith.constant 0 : i32
    %c0_i32_0 = arith.constant 0 : i32
    %c0_i32_1 = arith.constant 0 : i32
    return %c0_i32, %c0_i32_0 : i32, i32
  }
  func.func @transform_5(%arg0: i32) -> (i32, i32) {
    %c0_i32 = arith.constant 0 : i32
    %c0_i32_0 = arith.constant 0 : i32
    %c0_i32_1 = arith.constant 0 : i32
    return %c0_i32, %c0_i32_0 : i32, i32
  }
  func.func @transform_6(%arg0: i32) -> (i32, i32) {
    %c0_i32 = arith.constant 0 : i32
    %c0_i32_0 = arith.constant 0 : i32
    %c0_i32_1 = arith.constant 0 : i32
    return %c0_i32, %c0_i32_0 : i32, i32
  }
  func.func @transform_7(%arg0: i32) -> (i32, i32) {
    %c0_i32 = arith.constant 0 : i32
    %c0_i32_0 = arith.constant 0 : i32
    %c0_i32_1 = arith.constant 0 : i32
    return %c0_i32, %c0_i32_0 : i32, i32
  }
  func.func @transform_8(%arg0: i32) -> (i32, i32, i32) {
    %c0_i32 = arith.constant 0 : i32
    %c0_i32_0 = arith.constant 0 : i32
    %c0_i32_1 = arith.constant 0 : i32
    return %arg0, %c0_i32, %c0_i32_0 : i32, i32, i32
  }
}

</mosaic_0001>

<llo_original>
// kernel: tpu_custom_call.1
$region0: #{tpu_custom_call.1}
  #allocation0 [shape = 'u32[]', space=smem, size = 0x4, offset = 0x4, fixed_abs, tag = 'smem constant byte address 0x4 - core index']
  #allocation1 [shape = 'u32[144,128]{1,0:T(1,128)}', space=vmem, size = 0x12000, scoped, tag = 'internal scratch']
  %s0 = inlined_call_operand.vmem [shape: f32[2,64,32], index: 0, kind: input, shape index: {}]
  %s1 = inlined_call_operand.vmem [shape: f32[2,8,64,8], index: 1, kind: input, shape index: {}]
  %s2 = inlined_call_operand.vmem [shape: f32[32,96], index: 2, kind: input, shape index: {}]
  %s3 = inlined_call_operand.vmem [shape: f32[1,96], index: 3, kind: input, shape index: {}]
  %s4 = inlined_call_operand.vmem [shape: f32[32,8], index: 4, kind: input, shape index: {}]
  %s5 = inlined_call_operand.vmem [shape: f32[8,32], index: 5, kind: input, shape index: {}]
  %s6 = inlined_call_operand.vmem [shape: f32[32,32], index: 6, kind: input, shape index: {}]
  %s7 = inlined_call_operand.vmem [shape: f32[1,32], index: 7, kind: input, shape index: {}]
  %s8 = inlined_call_operand.vmem [shape: f32[2,64,32], index: 8, kind: output, shape index: {}]
  %s9 = sld [smem:[#allocation0]]
  $region65: #{tpu_custom_call.1} parent=0
    _
  %s11 = ssub.s32 1, %s9
  %s12 = scalar_select 0, %s11, %s9
  loop: start=0, step=1, limit=4
  $region2: #{tpu_custom_call.1} parent=0 // loop_pre_header
    _
  $region3: #{tpu_custom_call.1} parent=0 // loop_header
    %s14 = sphi 0, %s18
    %p15 = scmp.ge.s32.totalorder %s14, 4
    %s24 = sphi 0, %s26
    %s27 = sphi 0, %s24
    %s28 = sphi 0, %s27
    %s44 = sphi 0, %s28
    %s50 = sphi 0, %s52
    %s53 = sphi 0, %s50
    %s54 = sphi 0, %s53
    %s70 = sphi 0, %s54
    %s74 = sphi 0, %s74
    %s76 = sphi 0, %s74
    %s77 = sphi 0, %s76
    %s91 = sphi 0, %s77
    %s95 = sphi 0, %s95
    %s97 = sphi 0, %s95
    %s98 = sphi 0, %s97
    %s112 = sphi 0, %s98
    %s116 = sphi 0, %s116
    %s118 = sphi 0, %s116
    %s119 = sphi 0, %s118
    %s133 = sphi 0, %s119
    %s137 = sphi 0, %s137
    %s139 = sphi 0, %s137
    %s140 = sphi 0, %s139
    %s154 = sphi 0, %s140
    %s158 = sphi 0, %s158
    %s160 = sphi 0, %s158
    %s161 = sphi 0, %s160
    %s175 = sphi 0, %s161
    %s179 = sphi 0, %s179
    %s181 = sphi 0, %s179
    %s182 = sphi 0, %s181
    %s196 = sphi 0, %s182
    %s202 = sphi 0, %s204
    %s205 = sphi 0, %s202
    %s206 = sphi 0, %s205
    %s222 = sphi 0, %s206
  $region4: #{tpu_custom_call.1} parent=0 // loop_header_branch
    %17 = sbr.rel (%p15) target = $region8
  $region5: #{tpu_custom_call.1} parent=0 // loop_body
    %s19 = ssub.s32 %s14, 1
    %s20 = ssub.s32 %s14, 2
    %s21 = sadd.s32 %s14, 1
    %s22 = ssub.s32 %s14, %s21
    %p23 = scmp.eq.s32.totalorder %s22, 0
    %s25 = sadd.s32 %s24, 1
    %s26 = scalar_select %p23, %s24, %s25
    %p29 = pneg %p23
    %p30 = scmp.eq.s32.totalorder %s14, 1
    %p31 = por %p29, %p30
    %p32 = scmp.ne.s32.totalorder %s24, %s27
    %p33 = scmp.eq.s32.totalorder %s14, 0
    %p34 = por %p32, %p33
    %p35 = scmp.ne.s32.totalorder %s24, %s27
    %p36 = scmp.eq.s32.totalorder %s19, 1
    %p37 = por %p35, %p36
    %p38 = scmp.ne.s32.totalorder %s27, %s28
    %p39 = scmp.eq.s32.totalorder %s19, 0
    %p40 = por %p38, %p39
    %p41 = scmp.ne.s32.totalorder %s27, %s28
    %p42 = scmp.eq.s32.totalorder %s20, 1
    %p43 = por %p41, %p42
    %p45 = scmp.ne.s32.totalorder %s28, %s44
    %p46 = scmp.eq.s32.totalorder %s20, 0
    %p47 = por %p45, %p46
    %s48 = ssub.s32 %s14, %s21
    %p49 = scmp.eq.s32.totalorder %s48, 0
    %s51 = sadd.s32 %s50, 1
    %s52 = scalar_select %p49, %s50, %s51
    %p55 = pneg %p49
    %p56 = scmp.eq.s32.totalorder %s14, 1
    %p57 = por %p55, %p56
    %p58 = scmp.ne.s32.totalorder %s50, %s53
    %p59 = scmp.eq.s32.totalorder %s14, 0
    %p60 = por %p58, %p59
    %p61 = scmp.ne.s32.totalorder %s50, %s53
    %p62 = scmp.eq.s32.totalorder %s19, 1
    %p63 = por %p61, %p62
    %p64 = scmp.ne.s32.totalorder %s53, %s54
    %p65 = scmp.eq.s32.totalorder %s19, 0
    %p66 = por %p64, %p65
    %p67 = scmp.ne.s32.totalorder %s53, %s54
    %p68 = scmp.eq.s32.totalorder %s20, 1
    %p69 = por %p67, %p68
    %p71 = scmp.ne.s32.totalorder %s54, %s70
    %p72 = scmp.eq.s32.totalorder %s20, 0
    %p73 = por %p71, %p72
    %s75 = sadd.s32 %s74, 1
    %p78 = scmp.eq.s32.totalorder %s14, 1
    %p79 = scmp.ne.s32.totalorder %s74, %s76
    %p80 = scmp.eq.s32.totalorder %s14, 0
    %p81 = por %p79, %p80
    %p82 = scmp.ne.s32.totalorder %s74, %s76
    %p83 = scmp.eq.s32.totalorder %s19, 1
    %p84 = por %p82, %p83
    %p85 = scmp.ne.s32.totalorder %s76, %s77
    %p86 = scmp.eq.s32.totalorder %s19, 0
    %p87 = por %p85, %p86
    %p88 = scmp.ne.s32.totalorder %s76, %s77
    %p89 = scmp.eq.s32.totalorder %s20, 1
    %p90 = por %p88, %p89
    %p92 = scmp.ne.s32.totalorder %s77, %s91
    %p93 = scmp.eq.s32.totalorder %s20, 0
    %p94 = por %p92, %p93
    %s96 = sadd.s32 %s95, 1
    %p99 = scmp.eq.s32.totalorder %s14, 1
    %p100 = scmp.ne.s32.totalorder %s95, %s97
    %p101 = scmp.eq.s32.totalorder %s14, 0
    %p102 = por %p100, %p101
    %p103 = scmp.ne.s32.totalorder %s95, %s97
    %p104 = scmp.eq.s32.totalorder %s19, 1
    %p105 = por %p103, %p104
    %p106 = scmp.ne.s32.totalorder %s97, %s98
    %p107 = scmp.eq.s32.totalorder %s19, 0
    %p108 = por %p106, %p107
    %p109 = scmp.ne.s32.totalorder %s97, %s98
    %p110 = scmp.eq.s32.totalorder %s20, 1
    %p111 = por %p109, %p110
    %p113 = scmp.ne.s32.totalorder %s98, %s112
    %p114 = scmp.eq.s32.totalorder %s20, 0
    %p115 = por %p113, %p114
    %s117 = sadd.s32 %s116, 1
    %p120 = scmp.eq.s32.totalorder %s14, 1
    %p121 = scmp.ne.s32.totalorder %s116, %s118
    %p122 = scmp.eq.s32.totalorder %s14, 0
    %p123 = por %p121, %p122
    %p124 = scmp.ne.s32.totalorder %s116, %s118
    %p125 = scmp.eq.s32.totalorder %s19, 1
    %p126 = por %p124, %p125
    %p127 = scmp.ne.s32.totalorder %s118, %s119
    %p128 = scmp.eq.s32.totalorder %s19, 0
    %p129 = por %p127, %p128
    %p130 = scmp.ne.s32.totalorder %s118, %s119
    %p131 = scmp.eq.s32.totalorder %s20, 1
    %p132 = por %p130, %p131
    %p134 = scmp.ne.s32.totalorder %s119, %s133
    %p135 = scmp.eq.s32.totalorder %s20, 0
    %p136 = por %p134, %p135
    %s138 = sadd.s32 %s137, 1
    %p141 = scmp.eq.s32.totalorder %s14, 1
    %p142 = scmp.ne.s32.totalorder %s137, %s139
    %p143 = scmp.eq.s32.totalorder %s14, 0
    %p144 = por %p142, %p143
    %p145 = scmp.ne.s32.totalorder %s137, %s139
    %p146 = scmp.eq.s32.totalorder %s19, 1
    %p147 = por %p145, %p146
    %p148 = scmp.ne.s32.totalorder %s139, %s140
    %p149 = scmp.eq.s32.totalorder %s19, 0
    %p150 = por %p148, %p149
    %p151 = scmp.ne.s32.totalorder %s139, %s140
    %p152 = scmp.eq.s32.totalorder %s20, 1
    %p153 = por %p151, %p152
    %p155 = scmp.ne.s32.totalorder %s140, %s154
    %p156 = scmp.eq.s32.totalorder %s20, 0
    %p157 = por %p155, %p156
    %s159 = sadd.s32 %s158, 1
    %p162 = scmp.eq.s32.totalorder %s14, 1
    %p163 = scmp.ne.s32.totalorder %s158, %s160
    %p164 = scmp.eq.s32.totalorder %s14, 0
    %p165 = por %p163, %p164
    %p166 = scmp.ne.s32.totalorder %s158, %s160
    %p167 = scmp.eq.s32.totalorder %s19, 1
    %p168 = por %p166, %p167
    %p169 = scmp.ne.s32.totalorder %s160, %s161
    %p170 = scmp.eq.s32.totalorder %s19, 0
    %p171 = por %p169, %p170
    %p172 = scmp.ne.s32.totalorder %s160, %s161
    %p173 = scmp.eq.s32.totalorder %s20, 1
    %p174 = por %p172, %p173
    %p176 = scmp.ne.s32.totalorder %s161, %s175
    %p177 = scmp.eq.s32.totalorder %s20, 0
    %p178 = por %p176, %p177
    %s180 = sadd.s32 %s179, 1
    %p183 = scmp.eq.s32.totalorder %s14, 1
    %p184 = scmp.ne.s32.totalorder %s179, %s181
    %p185 = scmp.eq.s32.totalorder %s14, 0
    %p186 = por %p184, %p185
    %p187 = scmp.ne.s32.totalorder %s179, %s181
    %p188 = scmp.eq.s32.totalorder %s19, 1
    %p189 = por %p187, %p188
    %p190 = scmp.ne.s32.totalorder %s181, %s182
    %p191 = scmp.eq.s32.totalorder %s19, 0
    %p192 = por %p190, %p191
    %p193 = scmp.ne.s32.totalorder %s181, %s182
    %p194 = scmp.eq.s32.totalorder %s20, 1
    %p195 = por %p193, %p194
    %p197 = scmp.ne.s32.totalorder %s182, %s196
    %p198 = scmp.eq.s32.totalorder %s20, 0
    %p199 = por %p197, %p198
    %s200 = ssub.s32 %s14, %s21
    %p201 = scmp.eq.s32.totalorder %s200, 0
    %s203 = sadd.s32 %s202, 1
    %s204 = scalar_select %p201, %s202, %s203
    %p207 = pneg %p201
    %p208 = scmp.eq.s32.totalorder %s14, 1
    %p209 = por %p207, %p208
    %p210 = scmp.ne.s32.totalorder %s202, %s205
    %p211 = scmp.eq.s32.totalorder %s14, 0
    %p212 = por %p210, %p211
    %p213 = scmp.ne.s32.totalorder %s202, %s205
    %p214 = scmp.eq.s32.totalorder %s19, 1
    %p215 = por %p213, %p214
    %p216 = scmp.ne.s32.totalorder %s205, %s206
    %p217 = scmp.eq.s32.totalorder %s19, 0
    %p218 = por %p216, %p217
    %p219 = scmp.ne.s32.totalorder %s205, %s206
    %p220 = scmp.eq.s32.totalorder %s20, 1
    %p221 = por %p219, %p220
    %p223 = scmp.ne.s32.totalorder %s206, %s222
    %p224 = scmp.eq.s32.totalorder %s20, 0
    %p225 = por %p223, %p224
    %p226 = scmp.le.s32.totalorder 1, %s14
    %p227 = scmp.lt.s32.totalorder %s14, 3
    %p228 = pnand %p226, %p227
    %p229 = pneg %p228
    // Predicated region
    $region9: #{tpu_custom_call.1} parent=5 // pred_check
      _
    $region10: #{tpu_custom_call.1} parent=5 // pred_check_branch
      %231 = sbr.rel (%p228) target = $region12
    $region11: #{tpu_custom_call.1} parent=5 // pred_region
      %s232 = ssub.s32 %s14, 1
      // Predicated region
      $region13: #{tpu_custom_call.1} parent=11 // pred_check
        %p233 = pneg %p87
      $region14: #{tpu_custom_call.1} parent=11 // pred_check_branch
        %235 = sbr.rel (%p233) target = $region16
      $region15: #{tpu_custom_call.1} parent=11 // pred_region
        _
      $region16: #{tpu_custom_call.1} parent=11 // pred_fallthru
        _
      // Predicated region
      $region17: #{tpu_custom_call.1} parent=11 // pred_check
        %p236 = pneg %p108
      $region18: #{tpu_custom_call.1} parent=11 // pred_check_branch
        %238 = sbr.rel (%p236) target = $region20
      $region19: #{tpu_custom_call.1} parent=11 // pred_region
        _
      $region20: #{tpu_custom_call.1} parent=11 // pred_fallthru
        _
      // Predicated region
      $region21: #{tpu_custom_call.1} parent=11 // pred_check
        %p239 = pneg %p129
      $region22: #{tpu_custom_call.1} parent=11 // pred_check_branch
        %241 = sbr.rel (%p239) target = $region24
      $region23: #{tpu_custom_call.1} parent=11 // pred_region
        _
      $region24: #{tpu_custom_call.1} parent=11 // pred_fallthru
        _
      // Predicated region
      $region25: #{tpu_custom_call.1} parent=11 // pred_check
        %p242 = pneg %p150
      $region26: #{tpu_custom_call.1} parent=11 // pred_check_branch
        %244 = sbr.rel (%p242) target = $region28
      $region27: #{tpu_custom_call.1} parent=11 // pred_region
        _
      $region28: #{tpu_custom_call.1} parent=11 // pred_fallthru
        _
      // Predicated region
      $region29: #{tpu_custom_call.1} parent=11 // pred_check
        %p245 = pneg %p171
      $region30: #{tpu_custom_call.1} parent=11 // pred_check_branch
        %247 = sbr.rel (%p245) target = $region32
      $region31: #{tpu_custom_call.1} parent=11 // pred_region
        _
      $region32: #{tpu_custom_call.1} parent=11 // pred_fallthru
        _
      // Predicated region
      $region33: #{tpu_custom_call.1} parent=11 // pred_check
        %p248 = pneg %p192
      $region34: #{tpu_custom_call.1} parent=11 // pred_check_branch
        %250 = sbr.rel (%p248) target = $region36
      $region35: #{tpu_custom_call.1} parent=11 // pred_region
        _
      $region36: #{tpu_custom_call.1} parent=11 // pred_fallthru
        _
    $region12: #{tpu_custom_call.1} parent=5 // pred_fallthru
      _
    %p251 = scmp.lt.s32.totalorder %s14, 2
    // Predicated region
    $region37: #{tpu_custom_call.1} parent=5 // pred_check
      %p252 = pneg %p251
    $region38: #{tpu_custom_call.1} parent=5 // pred_check_branch
      %254 = sbr.rel (%p252) target = $region40
    $region39: #{tpu_custom_call.1} parent=5 // pred_region
      // Predicated region
      $region41: #{tpu_custom_call.1} parent=39 // pred_check
        %p255 = pneg %p34
      $region42: #{tpu_custom_call.1} parent=39 // pred_check_branch
        %257 = sbr.rel (%p255) target = $region44
      $region43: #{tpu_custom_call.1} parent=39 // pred_region
        %p258 = scmp.lt.s32.totalorder %s14, 1
        %s259 = scalar_select %p258, %s14, 1
        %s260 = smul.addr %s259, 8
        %s261 = smul.addr %s260, 8
        %s262 = scalar_lea.vmem %s0, %s261
      $region44: #{tpu_custom_call.1} parent=39 // pred_fallthru
        _
      // Predicated region
      $region45: #{tpu_custom_call.1} parent=39 // pred_check
        %p263 = pneg %p60
      $region46: #{tpu_custom_call.1} parent=39 // pred_check_branch
        %265 = sbr.rel (%p263) target = $region48
      $region47: #{tpu_custom_call.1} parent=39 // pred_region
        %p266 = scmp.lt.s32.totalorder %s14, 1
        %s267 = scalar_select %p266, %s14, 1
        %s268 = smul.addr %s267, 64
        %s269 = smul.addr %s268, 8
        %s270 = scalar_lea.vmem %s1, %s269
      $region48: #{tpu_custom_call.1} parent=39 // pred_fallthru
        _
    $region40: #{tpu_custom_call.1} parent=5 // pred_fallthru
      _
    %p271 = scmp.le.s32.totalorder 1, %s14
    %p272 = scmp.lt.s32.totalorder %s14, 3
    %p273 = pnand %p271, %p272
    %p274 = pneg %p273
    // Predicated region
    $region49: #{tpu_custom_call.1} parent=5 // pred_check
      _
    $region50: #{tpu_custom_call.1} parent=5 // pred_check_branch
      %276 = sbr.rel (%p273) target = $region52
    $region51: #{tpu_custom_call.1} parent=5 // pred_region
      %s277 = ssub.s32 %s14, 1
      %p278 = scmp.lt.s32.totalorder %s19, 1
      %s279 = scalar_select %p278, %s19, 1
      %s280 = smul.addr %s279, 8
      %s281 = smul.addr %s280, 8
      %s282 = scalar_lea.vmem %s0, %s281
      %p283 = pneg %p40
      %p284 = pneg %p37
      %p285 = scmp.lt.s32.totalorder %s19, 1
      %s286 = scalar_select %p285, %s19, 1
      %s287 = smul.addr %s286, 64
      %s288 = smul.addr %s287, 8
      %s289 = scalar_lea.vmem %s1, %s288
      %p290 = pneg %p66
      %p291 = pneg %p63
      %p292 = pneg %p87
      %p293 = pneg %p84
      %p294 = pneg %p108
      %p295 = pneg %p105
      %p296 = pneg %p129
      %p297 = pneg %p126
      %p298 = pneg %p150
      %p299 = pneg %p147
      %p300 = pneg %p171
      %p301 = pneg %p168
      %p302 = pneg %p192
      %p303 = pneg %p189
      %p304 = pneg %p218
      %p305 = pneg %p215
      %p306 = scmp.lt.s32.totalorder %s19, 1
      %s307 = scalar_select %p306, %s19, 1
      %s308 = smul.addr %s307, 8
      %s309 = smul.addr %s308, 8
      %s310 = scalar_lea.vmem %s8, %s309
      %p311 = scmp.lt.s32.totalorder %s19, 1
      %s312 = scalar_select %p311, %s19, 1
      %s313 = smul.addr %s312, 8
      %s314 = smul.addr %s313, 8
      %s315 = scalar_lea.vmem %s0, %s314
      %p316 = scmp.lt.s32.totalorder %s19, 1
      %s317 = scalar_select %p316, %s19, 1
      %s318 = smul.addr %s317, 64
      %s319 = smul.addr %s318, 8
      %s320 = scalar_lea.vmem %s1, %s319
      %p321 = scmp.lt.s32.totalorder %s19, 1
      %s322 = scalar_select %p321, %s19, 1
      %s323 = smul.addr %s322, 8
      %s324 = smul.addr %s323, 8
      %s325 = scalar_lea.vmem %s8, %s324
      %v326 = vld [vmem:[%s315] sm:$0xff]
      %v327 = vld [vmem:[%s315 + $0x8] sm:$0xff]
      %v328 = vld [vmem:[%s315 + $0x10] sm:$0xff]
      %v329 = vld [vmem:[%s315 + $0x18] sm:$0xff]
      %v330 = vld [vmem:[%s315 + $0x20] sm:$0xff]
      %v331 = vld [vmem:[%s315 + $0x28] sm:$0xff]
      %v332 = vld [vmem:[%s315 + $0x30] sm:$0xff]
      %v333 = vld [vmem:[%s315 + $0x38] sm:$0xff]
      %v334 = vld [vmem:[%s2] sm:$0xff]
      %v335 = vld [vmem:[%s2 + $0x8] sm:$0xff]
      %v336 = vld [vmem:[%s2 + $0x10] sm:$0xff]
      %v337 = vld [vmem:[%s2 + $0x18] sm:$0xff]
      %v338 = vld [vmem:[%s3] sm:$0x1]
      %v340 = vlaneseq
      %v341 = vshrl.u32 %v340, 7
      %v342 = vsub.s32 0, %v341
      %v343 = vrot.slane %v338, %v342
      %vm345 = vcmask 261120
      %v347 = vsel %vm345, %v326, 0
      %v350 = vsel %vm345, %v327, 0
      %v353 = vsel %vm345, %v328, 0
      %v356 = vsel %vm345, %v329, 0
      %v359 = vsel %vm345, %v330, 0
      %v362 = vsel %vm345, %v331, 0
      %v365 = vsel %vm345, %v332, 0
      %v368 = vsel %vm345, %v333, 0
      %370 = vmatprep.subr.mxu0 0.0
      %371 = vmatpush1.msra.mxu0 %v334
      %372 = vmatprep.subr.mxu0 0.0
      %373 = vmatpush1.msra.mxu0 %v335
      %374 = vmatprep.subr.mxu0 0.0
      %375 = vmatpush1.msra.mxu0 %v336
      %376 = vmatprep.subr.mxu0 0.0
      %377 = vmatpush1.msra.mxu0 %v337
      %378 = vmatprep.subr.mxu0 0.0
      %379 = vmatpush1.msra.mxu0 0.0
      %380 = vmatprep.subr.mxu0 0.0
      %381 = vmatpush1.msra.mxu0 0.0
      %382 = vmatprep.subr.mxu0 0.0
      %383 = vmatpush1.msra.mxu0 0.0
      %384 = vmatprep.subr.mxu0 0.0
      %385 = vmatpush1.msra.mxu0 0.0
      %386 = vmatprep.subr.mxu0 0.0
      %387 = vmatpush1.msra.mxu0 0.0
      %388 = vmatprep.subr.mxu0 0.0
      %389 = vmatpush1.msra.mxu0 0.0
      %390 = vmatprep.subr.mxu0 0.0
      %391 = vmatpush1.msra.mxu0 0.0
      %392 = vmatprep.subr.mxu0 0.0
      %393 = vmatpush1.msra.mxu0 0.0
      %394 = vmatprep.subr.mxu0 0.0
      %395 = vmatpush1.msra.mxu0 0.0
      %396 = vmatprep.subr.mxu0 0.0
      %397 = vmatpush1.msra.mxu0 0.0
      %398 = vmatprep.subr.mxu0 0.0
      %399 = vmatpush1.msra.mxu0 0.0
      %400 = vmatprep.subr.mxu0 0.0
      %401 = vmatpush1.msra.mxu0 0.0
      %402 = vmatprep.subr.mxu0 0.0
      %403 = vmatpush1.msra.mxu0 0.0
      %404 = vmatprep.subr.mxu0 0.0
      %405 = vmatpush1.msra.mxu0 0.0
      %406 = vmatprep.subr.mxu0 0.0
      %407 = vmatpush1.msra.mxu0 0.0
      %408 = vmatprep.subr.mxu0 0.0
      %409 = vmatpush1.msra.mxu0 0.0
      %410 = vmatprep.subr.mxu0 0.0
      %411 = vmatpush1.msra.mxu0 0.0
      %412 = vmatprep.subr.mxu0 0.0
      %413 = vmatpush1.msra.mxu0 0.0
      %414 = vmatprep.subr.mxu0 0.0
      %415 = vmatpush1.msra.mxu0 0.0
      %416 = vmatprep.subr.mxu0 0.0
      %417 = vmatpush1.msra.mxu0 0.0
      %418 = vmatprep.subr.mxu0 0.0
      %419 = vmatpush1.msra.mxu0 0.0
      %420 = vmatprep.subr.mxu0 0.0
      %421 = vmatpush1.msra.mxu0 0.0
      %422 = vmatprep.subr.mxu0 0.0
      %423 = vmatpush1.msra.mxu0 0.0
      %424 = vmatprep.subr.mxu0 0.0
      %425 = vmatpush1.msra.mxu0 0.0
      %426 = vmatprep.subr.mxu0 0.0
      %427 = vmatpush1.msra.mxu0 0.0
      %428 = vmatprep.subr.mxu0 0.0
      %429 = vmatpush1.msra.mxu0 0.0
      %430 = vmatprep.subr.mxu0 0.0
      %431 = vmatpush1.msra.mxu0 0.0
      %432 = vmatprep.subr.mxu0 0.0
      %433 = vmatpush1.msra.mxu0 0.0
      %434 = vmatprep.mubr.f32.mxu0 0.0
      %435 = vmatmul.mubr.f32.gmra.mrb[0].mxu0 %v347
      %v436 = vpop.f32.mrb[0].mxu0
      %v437 = vadd.f32 %v343, %v436
      %v438 = vpop.f32.mrb[0].mxu0
      %439 = vmatprep.mubr.f32.mxu0 0.0
      %440 = vmatmul.mubr.f32.gmra.mrb[0].mxu0 %v350
      %v441 = vpop.f32.mrb[0].mxu0
      %v442 = vadd.f32 %v343, %v441
      %v443 = vpop.f32.mrb[0].mxu0
      %444 = vmatprep.mubr.f32.mxu0 0.0
      %445 = vmatmul.mubr.f32.gmra.mrb[0].mxu0 %v353
      %v446 = vpop.f32.mrb[0].mxu0
      %v447 = vadd.f32 %v343, %v446
      %v448 = vpop.f32.mrb[0].mxu0
      %449 = vmatprep.mubr.f32.mxu0 0.0
      %450 = vmatmul.mubr.f32.gmra.mrb[0].mxu0 %v356
      %v451 = vpop.f32.mrb[0].mxu0
      %v452 = vadd.f32 %v343, %v451
      %v453 = vpop.f32.mrb[0].mxu0
      %454 = vmatprep.mubr.f32.mxu0 0.0
      %455 = vmatmul.mubr.f32.gmra.mrb[0].mxu0 %v359
      %v456 = vpop.f32.mrb[0].mxu0
      %v457 = vadd.f32 %v343, %v456
      %v458 = vpop.f32.mrb[0].mxu0
      %459 = vmatprep.mubr.f32.mxu0 0.0
      %460 = vmatmul.mubr.f32.gmra.mrb[0].mxu0 %v362
      %v461 = vpop.f32.mrb[0].mxu0
      %v462 = vadd.f32 %v343, %v461
      %v463 = vpop.f32.mrb[0].mxu0
      %464 = vmatprep.mubr.f32.mxu0 0.0
      %465 = vmatmul.mubr.f32.gmra.mrb[0].mxu0 %v365
      %v466 = vpop.f32.mrb[0].mxu0
      %v467 = vadd.f32 %v343, %v466
      %v468 = vpop.f32.mrb[0].mxu0
      %469 = vmatprep.mubr.f32.mxu0 0.0
      %470 = vmatmul.mubr.f32.gmra.mrb[0].mxu0 %v368
      %v471 = vpop.f32.mrb[0].mxu0
      %v472 = vadd.f32 %v343, %v471
      %v473 = vpop.f32.mrb[0].mxu0
      %474 = vdwg.mxu0
      %v475 = vld [vmem:[%s4] sm:$0xff]
      %v476 = vld [vmem:[%s4 + $0x8] sm:$0xff]
      %v477 = vld [vmem:[%s4 + $0x10] sm:$0xff]
      %v478 = vld [vmem:[%s4 + $0x18] sm:$0xff]
      %v479 = vld [vmem:[%s5] sm:$0xff]
      %488 = vrot.lane.b32.xlu0 %v437, 96
      %v489 = vpop.permute.xlu0 %488
      %490 = vrot.lane.b32.xlu0 %v442, 96
      %v491 = vpop.permute.xlu0 %490
      %492 = vrot.lane.b32.xlu0 %v447, 96
      %v493 = vpop.permute.xlu0 %492
      %494 = vrot.lane.b32.xlu0 %v452, 96
      %v495 = vpop.permute.xlu0 %494
      %496 = vrot.lane.b32.xlu0 %v457, 96
      %v497 = vpop.permute.xlu0 %496
      %498 = vrot.lane.b32.xlu0 %v462, 96
      %v499 = vpop.permute.xlu0 %498
      %500 = vrot.lane.b32.xlu0 %v467, 96
      %v501 = vpop.permute.xlu0 %500
      %502 = vrot.lane.b32.xlu0 %v472, 96
      %v503 = vpop.permute.xlu0 %502
      %v512 = vmul.f32 %v437, %v489
      %v513 = vmul.f32 %v442, %v491
      %v514 = vmul.f32 %v447, %v493
      %v515 = vmul.f32 %v452, %v495
      %v516 = vmul.f32 %v457, %v497
      %v517 = vmul.f32 %v462, %v499
      %v518 = vmul.f32 %v467, %v501
      %v519 = vmul.f32 %v472, %v503
      %v520 = vld [vmem:[%s320] sm:$0xff]
      %v521 = vld [vmem:[%s320 + $0x8] sm:$0xff]
      %v522 = vld [vmem:[%s320 + $0x10] sm:$0xff]
      %v523 = vld [vmem:[%s320 + $0x18] sm:$0xff]
      %v524 = vld [vmem:[%s320 + $0x20] sm:$0xff]
      %v525 = vld [vmem:[%s320 + $0x28] sm:$0xff]
      %v526 = vld [vmem:[%s320 + $0x30] sm:$0xff]
      %v527 = vld [vmem:[%s320 + $0x38] sm:$0xff]
      %v529 = vsel %vm345, %v512, 0
      %v532 = vsel %vm345, %v513, 0
      %v535 = vsel %vm345, %v514, 0
      %v538 = vsel %vm345, %v515, 0
      %v541 = vsel %vm345, %v516, 0
      %v544 = vsel %vm345, %v517, 0
      %v547 = vsel %vm345, %v518, 0
      %v550 = vsel %vm345, %v519, 0
      %552 = vmatprep.subr.mxu0 0.0
      %553 = vmatpush1.msra.mxu0 %v475
      %554 = vmatprep.subr.mxu0 0.0
      %555 = vmatpush1.msra.mxu0 %v476
      %556 = vmatprep.subr.mxu0 0.0
      %557 = vmatpush1.msra.mxu0 %v477
      %558 = vmatprep.subr.mxu0 0.0
      %559 = vmatpush1.msra.mxu0 %v478
      %560 = vmatprep.subr.mxu0 0.0
      %561 = vmatpush1.msra.mxu0 0.0
      %562 = vmatprep.subr.mxu0 0.0
      %563 = vmatpush1.msra.mxu0 0.0
      %564 = vmatprep.subr.mxu0 0.0
      %565 = vmatpush1.msra.mxu0 0.0
      %566 = vmatprep.subr.mxu0 0.0
      %567 = vmatpush1.msra.mxu0 0.0
      %568 = vmatprep.subr.mxu0 0.0
      %569 = vmatpush1.msra.mxu0 0.0
      %570 = vmatprep.subr.mxu0 0.0
      %571 = vmatpush1.msra.mxu0 0.0
      %572 = vmatprep.subr.mxu0 0.0
      %573 = vmatpush1.msra.mxu0 0.0
      %574 = vmatprep.subr.mxu0 0.0
      %575 = vmatpush1.msra.mxu0 0.0
      %576 = vmatprep.subr.mxu0 0.0
      %577 = vmatpush1.msra.mxu0 0.0
      %578 = vmatprep.subr.mxu0 0.0
      %579 = vmatpush1.msra.mxu0 0.0
      %580 = vmatprep.subr.mxu0 0.0
      %581 = vmatpush1.msra.mxu0 0.0
      %582 = vmatprep.subr.mxu0 0.0
      %583 = vmatpush1.msra.mxu0 0.0
      %584 = vmatprep.subr.mxu0 0.0
      %585 = vmatpush1.msra.mxu0 0.0
      %586 = vmatprep.subr.mxu0 0.0
      %587 = vmatpush1.msra.mxu0 0.0
      %588 = vmatprep.subr.mxu0 0.0
      %589 = vmatpush1.msra.mxu0 0.0
      %590 = vmatprep.subr.mxu0 0.0
      %591 = vmatpush1.msra.mxu0 0.0
      %592 = vmatprep.subr.mxu0 0.0
      %593 = vmatpush1.msra.mxu0 0.0
      %594 = vmatprep.subr.mxu0 0.0
      %595 = vmatpush1.msra.mxu0 0.0
      %596 = vmatprep.subr.mxu0 0.0
      %597 = vmatpush1.msra.mxu0 0.0
      %598 = vmatprep.subr.mxu0 0.0
      %599 = vmatpush1.msra.mxu0 0.0
      %600 = vmatprep.subr.mxu0 0.0
      %601 = vmatpush1.msra.mxu0 0.0
      %602 = vmatprep.subr.mxu0 0.0
      %603 = vmatpush1.msra.mxu0 0.0
      %604 = vmatprep.subr.mxu0 0.0
      %605 = vmatpush1.msra.mxu0 0.0
      %606 = vmatprep.subr.mxu0 0.0
      %607 = vmatpush1.msra.mxu0 0.0
      %608 = vmatprep.subr.mxu0 0.0
      %609 = vmatpush1.msra.mxu0 0.0
      %610 = vmatprep.subr.mxu0 0.0
      %611 = vmatpush1.msra.mxu0 0.0
      %612 = vmatprep.subr.mxu0 0.0
      %613 = vmatpush1.msra.mxu0 0.0
      %614 = vmatprep.subr.mxu0 0.0
      %615 = vmatpush1.msra.mxu0 0.0
      %616 = vmatprep.mubr.f32.mxu0 0.0
      %617 = vmatmul.mubr.f32.gmra.mrb[0].mxu0 %v529
      %v618 = vpop.f32.mrb[0].mxu0
      %v619 = vadd.f32 %v520, %v618
      %v620 = vpop.f32.mrb[0].mxu0
      %621 = vmatprep.mubr.f32.mxu0 0.0
      %622 = vmatmul.mubr.f32.gmra.mrb[0].mxu0 %v532
      %v623 = vpop.f32.mrb[0].mxu0
      %v624 = vadd.f32 %v521, %v623
      %v625 = vpop.f32.mrb[0].mxu0
      %626 = vmatprep.mubr.f32.mxu0 0.0
      %627 = vmatmul.mubr.f32.gmra.mrb[0].mxu0 %v535
      %v628 = vpop.f32.mrb[0].mxu0
      %v629 = vadd.f32 %v522, %v628
      %v630 = vpop.f32.mrb[0].mxu0
      %631 = vmatprep.mubr.f32.mxu0 0.0
      %632 = vmatmul.mubr.f32.gmra.mrb[0].mxu0 %v538
      %v633 = vpop.f32.mrb[0].mxu0
      %v634 = vadd.f32 %v523, %v633
      %v635 = vpop.f32.mrb[0].mxu0
      %636 = vmatprep.mubr.f32.mxu0 0.0
      %637 = vmatmul.mubr.f32.gmra.mrb[0].mxu0 %v541
      %v638 = vpop.f32.mrb[0].mxu0
      %v639 = vadd.f32 %v524, %v638
      %v640 = vpop.f32.mrb[0].mxu0
      %641 = vmatprep.mubr.f32.mxu0 0.0
      %642 = vmatmul.mubr.f32.gmra.mrb[0].mxu0 %v544
      %v643 = vpop.f32.mrb[0].mxu0
      %v644 = vadd.f32 %v525, %v643
      %v645 = vpop.f32.mrb[0].mxu0
      %646 = vmatprep.mubr.f32.mxu0 0.0
      %647 = vmatmul.mubr.f32.gmra.mrb[0].mxu0 %v547
      %v648 = vpop.f32.mrb[0].mxu0
      %v649 = vadd.f32 %v526, %v648
      %v650 = vpop.f32.mrb[0].mxu0
      %651 = vmatprep.mubr.f32.mxu0 0.0
      %652 = vmatmul.mubr.f32.gmra.mrb[0].mxu0 %v550
      %v653 = vpop.f32.mrb[0].mxu0
      %v654 = vadd.f32 %v527, %v653
      %v655 = vpop.f32.mrb[0].mxu0
      %656 = vdwg.mxu0
      %vm657 = vcmask 1046528
      %v658 = vrot.slane %v437, 1
      %v659 = vrot.slane %v442, 1
      %v660 = vsel %vm657, %v658, %v659
      %v661 = vrot.slane %v447, 1
      %v662 = vsel %vm657, %v659, %v661
      %v663 = vrot.slane %v452, 1
      %v664 = vsel %vm657, %v661, %v663
      %v665 = vrot.slane %v457, 1
      %v666 = vsel %vm657, %v663, %v665
      %v667 = vrot.slane %v462, 1
      %v668 = vsel %vm657, %v665, %v667
      %v669 = vrot.slane %v467, 1
      %v670 = vsel %vm657, %v667, %v669
      %v671 = vrot.slane %v472, 1
      %v672 = vsel %vm657, %v669, %v671
      %v673 = vsel %vm657, %v671, %v658
      %674 = vrot.lane.b32.xlu0 %v660, 96
      %v675 = vpop.permute.xlu0 %674
      %676 = vrot.lane.b32.xlu0 %v662, 96
      %v677 = vpop.permute.xlu0 %676
      %678 = vrot.lane.b32.xlu0 %v664, 96
      %v679 = vpop.permute.xlu0 %678
      %680 = vrot.lane.b32.xlu0 %v666, 96
      %v681 = vpop.permute.xlu0 %680
      %682 = vrot.lane.b32.xlu0 %v668, 96
      %v683 = vpop.permute.xlu0 %682
      %684 = vrot.lane.b32.xlu0 %v670, 96
      %v685 = vpop.permute.xlu0 %684
      %686 = vrot.lane.b32.xlu0 %v672, 96
      %v687 = vpop.permute.xlu0 %686
      %688 = vrot.lane.b32.xlu0 %v673, 96
      %v689 = vpop.permute.xlu0 %688
      %v698 = vmul.f32 %v437, %v675
      %v699 = vmul.f32 %v442, %v677
      %v700 = vmul.f32 %v447, %v679
      %v701 = vmul.f32 %v452, %v681
      %v702 = vmul.f32 %v457, %v683
      %v703 = vmul.f32 %v462, %v685
      %v704 = vmul.f32 %v467, %v687
      %v705 = vmul.f32 %v472, %v689
      %s706 = scalar_lea.vmem %s320, 64
      %v707 = vld [vmem:[%s706] sm:$0xff]
      %v708 = vld [vmem:[%s706 + $0x8] sm:$0xff]
      %v709 = vld [vmem:[%s706 + $0x10] sm:$0xff]
      %v710 = vld [vmem:[%s706 + $0x18] sm:$0xff]
      %v711 = vld [vmem:[%s706 + $0x20] sm:$0xff]
      %v712 = vld [vmem:[%s706 + $0x28] sm:$0xff]
      %v713 = vld [vmem:[%s706 + $0x30] sm:$0xff]
      %v714 = vld [vmem:[%s706 + $0x38] sm:$0xff]
      %v716 = vsel %vm345, %v698, 0
      %v719 = vsel %vm345, %v699, 0
      %v722 = vsel %vm345, %v700, 0
      %v725 = vsel %vm345, %v701, 0
      %v728 = vsel %vm345, %v702, 0
      %v731 = vsel %vm345, %v703, 0
      %v734 = vsel %vm345, %v704, 0
      %v737 = vsel %vm345, %v705, 0
      %739 = vmatprep.subr.mxu0 0.0
      %740 = vmatpush1.msra.mxu0 %v475
      %741 = vmatprep.subr.mxu0 0.0
      %742 = vmatpush1.msra.mxu0 %v476
      %743 = vmatprep.subr.mxu0 0.0
      %744 = vmatpush1.msra.mxu0 %v477
      %745 = vmatprep.subr.mxu0 0.0
      %746 = vmatpush1.msra.mxu0 %v478
      %747 = vmatprep.subr.mxu0 0.0
      %748 = vmatpush1.msra.mxu0 0.0
      %749 = vmatprep.subr.mxu0 0.0
      %750 = vmatpush1.msra.mxu0 0.0
      %751 = vmatprep.subr.mxu0 0.0
      %752 = vmatpush1.msra.mxu0 0.0
      %753 = vmatprep.subr.mxu0 0.0
      %754 = vmatpush1.msra.mxu0 0.0
      %755 = vmatprep.subr.mxu0 0.0
      %756 = vmatpush1.msra.mxu0 0.0
      %757 = vmatprep.subr.mxu0 0.0
      %758 = vmatpush1.msra.mxu0 0.0
      %759 = vmatprep.subr.mxu0 0.0
      %760 = vmatpush1.msra.mxu0 0.0
      %761 = vmatprep.subr.mxu0 0.0
      %762 = vmatpush1.msra.mxu0 0.0
      %763 = vmatprep.subr.mxu0 0.0
      %764 = vmatpush1.msra.mxu0 0.0
      %765 = vmatprep.subr.mxu0 0.0
      %766 = vmatpush1.msra.mxu0 0.0
      %767 = vmatprep.subr.mxu0 0.0
      %768 = vmatpush1.msra.mxu0 0.0
      %769 = vmatprep.subr.mxu0 0.0
      %770 = vmatpush1.msra.mxu0 0.0
      %771 = vmatprep.subr.mxu0 0.0
      %772 = vmatpush1.msra.mxu0 0.0
      %773 = vmatprep.subr.mxu0 0.0
      %774 = vmatpush1.msra.mxu0 0.0
      %775 = vmatprep.subr.mxu0 0.0
      %776 = vmatpush1.msra.mxu0 0.0
      %777 = vmatprep.subr.mxu0 0.0
      %778 = vmatpush1.msra.mxu0 0.0
      %779 = vmatprep.subr.mxu0 0.0
      %780 = vmatpush1.msra.mxu0 0.0
      %781 = vmatprep.subr.mxu0 0.0
      %782 = vmatpush1.msra.mxu0 0.0
      %783 = vmatprep.subr.mxu0 0.0
      %784 = vmatpush1.msra.mxu0 0.0
      %785 = vmatprep.subr.mxu0 0.0
      %786 = vmatpush1.msra.mxu0 0.0
      %787 = vmatprep.subr.mxu0 0.0
      %788 = vmatpush1.msra.mxu0 0.0
      %789 = vmatprep.subr.mxu0 0.0
      %790 = vmatpush1.msra.mxu0 0.0
      %791 = vmatprep.subr.mxu0 0.0
      %792 = vmatpush1.msra.mxu0 0.0
      %793 = vmatprep.subr.mxu0 0.0
      %794 = vmatpush1.msra.mxu0 0.0
      %795 = vmatprep.subr.mxu0 0.0
      %796 = vmatpush1.msra.mxu0 0.0
      %797 = vmatprep.subr.mxu0 0.0
      %798 = vmatpush1.msra.mxu0 0.0
      %799 = vmatprep.subr.mxu0 0.0
      %800 = vmatpush1.msra.mxu0 0.0
      %801 = vmatprep.subr.mxu0 0.0
      %802 = vmatpush1.msra.mxu0 0.0
      %803 = vmatprep.mubr.f32.mxu0 0.0
      %804 = vmatmul.mubr.f32.gmra.mrb[0].mxu0 %v716
      %v805 = vpop.f32.mrb[0].mxu0
      %v806 = vadd.f32 %v707, %v805
      %v807 = vpop.f32.mrb[0].mxu0
      %808 = vmatprep.mubr.f32.mxu0 0.0
      %809 = vmatmul.mubr.f32.gmra.mrb[0].mxu0 %v719
      %v810 = vpop.f32.mrb[0].mxu0
      %v811 = vadd.f32 %v708, %v810
      %v812 = vpop.f32.mrb[0].mxu0
      %813 = vmatprep.mubr.f32.mxu0 0.0
      %814 = vmatmul.mubr.f32.gmra.mrb[0].mxu0 %v722
      %v815 = vpop.f32.mrb[0].mxu0
      %v816 = vadd.f32 %v709, %v815
      %v817 = vpop.f32.mrb[0].mxu0
      %818 = vmatprep.mubr.f32.mxu0 0.0
      %819 = vmatmul.mubr.f32.gmra.mrb[0].mxu0 %v725
      %v820 = vpop.f32.mrb[0].mxu0
      %v821 = vadd.f32 %v710, %v820
      %v822 = vpop.f32.mrb[0].mxu0
      %823 = vmatprep.mubr.f32.mxu0 0.0
      %824 = vmatmul.mubr.f32.gmra.mrb[0].mxu0 %v728
      %v825 = vpop.f32.mrb[0].mxu0
      %v826 = vadd.f32 %v711, %v825
      %v827 = vpop.f32.mrb[0].mxu0
      %828 = vmatprep.mubr.f32.mxu0 0.0
      %829 = vmatmul.mubr.f32.gmra.mrb[0].mxu0 %v731
      %v830 = vpop.f32.mrb[0].mxu0
      %v831 = vadd.f32 %v712, %v830
      %v832 = vpop.f32.mrb[0].mxu0
      %833 = vmatprep.mubr.f32.mxu0 0.0
      %834 = vmatmul.mubr.f32.gmra.mrb[0].mxu0 %v734
      %v835 = vpop.f32.mrb[0].mxu0
      %v836 = vadd.f32 %v713, %v835
      %v837 = vpop.f32.mrb[0].mxu0
      %838 = vmatprep.mubr.f32.mxu0 0.0
      %839 = vmatmul.mubr.f32.gmra.mrb[0].mxu0 %v737
      %v840 = vpop.f32.mrb[0].mxu0
      %v841 = vadd.f32 %v714, %v840
      %v842 = vpop.f32.mrb[0].mxu0
      %843 = vdwg.mxu0
      %vm844 = vcmask 1045504
      %v845 = vrot.slane %v437, 2
      %v846 = vrot.slane %v442, 2
      %v847 = vsel %vm844, %v845, %v846
      %v848 = vrot.slane %v447, 2
      %v849 = vsel %vm844, %v846, %v848
      %v850 = vrot.slane %v452, 2
      %v851 = vsel %vm844, %v848, %v850
      %v852 = vrot.slane %v457, 2
      %v853 = vsel %vm844, %v850, %v852
      %v854 = vrot.slane %v462, 2
      %v855 = vsel %vm844, %v852, %v854
      %v856 = vrot.slane %v467, 2
      %v857 = vsel %vm844, %v854, %v856
      %v858 = vrot.slane %v472, 2
      %v859 = vsel %vm844, %v856, %v858
      %v860 = vsel %vm844, %v858, %v845
      %861 = vrot.lane.b32.xlu0 %v847, 96
      %v862 = vpop.permute.xlu0 %861
      %863 = vrot.lane.b32.xlu0 %v849, 96
      %v864 = vpop.permute.xlu0 %863
      %865 = vrot.lane.b32.xlu0 %v851, 96
      %v866 = vpop.permute.xlu0 %865
      %867 = vrot.lane.b32.xlu0 %v853, 96
      %v868 = vpop.permute.xlu0 %867
      %869 = vrot.lane.b32.xlu0 %v855, 96
      %v870 = vpop.permute.xlu0 %869
      %871 = vrot.lane.b32.xlu0 %v857, 96
      %v872 = vpop.permute.xlu0 %871
      %873 = vrot.lane.b32.xlu0 %v859, 96
      %v874 = vpop.permute.xlu0 %873
      %875 = vrot.lane.b32.xlu0 %v860, 96
      %v876 = vpop.permute.xlu0 %875
      %v885 = vmul.f32 %v437, %v862
      %v886 = vmul.f32 %v442, %v864
      %v887 = vmul.f32 %v447, %v866
      %v888 = vmul.f32 %v452, %v868
      %v889 = vmul.f32 %v457, %v870
      %v890 = vmul.f32 %v462, %v872
      %v891 = vmul.f32 %v467, %v874
      %v892 = vmul.f32 %v472, %v876
      %s893 = scalar_lea.vmem %s320, 128
      %v894 = vld [vmem:[%s893] sm:$0xff]
      %v895 = vld [vmem:[%s893 + $0x8] sm:$0xff]
      %v896 = vld [vmem:[%s893 + $0x10] sm:$0xff]
      %v897 = vld [vmem:[%s893 + $0x18] sm:$0xff]
      %v898 = vld [vmem:[%s893 + $0x20] sm:$0xff]
      %v899 = vld [vmem:[%s893 + $0x28] sm:$0xff]
      %v900 = vld [vmem:[%s893 + $0x30] sm:$0xff]
      %v901 = vld [vmem:[%s893 + $0x38] sm:$0xff]
      %v903 = vsel %vm345, %v885, 0
      %v906 = vsel %vm345, %v886, 0
      %v909 = vsel %vm345, %v887, 0
      %v912 = vsel %vm345, %v888, 0
      %v915 = vsel %vm345, %v889, 0
      %v918 = vsel %vm345, %v890, 0
      %v921 = vsel %vm345, %v891, 0
      %v924 = vsel %vm345, %v892, 0
      %926 = vmatprep.subr.mxu0 0.0
      %927 = vmatpush1.msra.mxu0 %v475
      %928 = vmatprep.subr.mxu0 0.0
      %929 = vmatpush1.msra.mxu0 %v476
      %930 = vmatprep.subr.mxu0 0.0
      %931 = vmatpush1.msra.mxu0 %v477
      %932 = vmatprep.subr.mxu0 0.0
      %933 = vmatpush1.msra.mxu0 %v478
      %934 = vmatprep.subr.mxu0 0.0
      %935 = vmatpush1.msra.mxu0 0.0
      %936 = vmatprep.subr.mxu0 0.0
      %937 = vmatpush1.msra.mxu0 0.0
      %938 = vmatprep.subr.mxu0 0.0
      %939 = vmatpush1.msra.mxu0 0.0
      %940 = vmatprep.subr.mxu0 0.0
      %941 = vmatpush1.msra.mxu0 0.0
      %942 = vmatprep.subr.mxu0 0.0
      %943 = vmatpush1.msra.mxu0 0.0
      %944 = vmatprep.subr.mxu0 0.0
      %945 = vmatpush1.msra.mxu0 0.0
      %946 = vmatprep.subr.mxu0 0.0
      %947 = vmatpush1.msra.mxu0 0.0
      %948 = vmatprep.subr.mxu0 0.0
      %949 = vmatpush1.msra.mxu0 0.0
      %950 = vmatprep.subr.mxu0 0.0
      %951 = vmatpush1.msra.mxu0 0.0
      %952 = vmatprep.subr.mxu0 0.0
      %953 = vmatpush1.msra.mxu0 0.0
      %954 = vmatprep.subr.mxu0 0.0
      %955 = vmatpush1.msra.mxu0 0.0
      %956 = vmatprep.subr.mxu0 0.0
      %957 = vmatpush1.msra.mxu0 0.0
      %958 = vmatprep.subr.mxu0 0.0
      %959 = vmatpush1.msra.mxu0 0.0
      %960 = vmatprep.subr.mxu0 0.0
      %961 = vmatpush1.msra.mxu0 0.0
      %962 = vmatprep.subr.mxu0 0.0
      %963 = vmatpush1.msra.mxu0 0.0
      %964 = vmatprep.subr.mxu0 0.0
      %965 = vmatpush1.msra.mxu0 0.0
      %966 = vmatprep.subr.mxu0 0.0
      %967 = vmatpush1.msra.mxu0 0.0
      %968 = vmatprep.subr.mxu0 0.0
      %969 = vmatpush1.msra.mxu0 0.0
      %970 = vmatprep.subr.mxu0 0.0
      %971 = vmatpush1.msra.mxu0 0.0
      %972 = vmatprep.subr.mxu0 0.0
      %973 = vmatpush1.msra.mxu0 0.0
      %974 = vmatprep.subr.mxu0 0.0
      %975 = vmatpush1.msra.mxu0 0.0
      %976 = vmatprep.subr.mxu0 0.0
      %977 = vmatpush1.msra.mxu0 0.0
      %978 = vmatprep.subr.mxu0 0.0
      %979 = vmatpush1.msra.mxu0 0.0
      %980 = vmatprep.subr.mxu0 0.0
      %981 = vmatpush1.msra.mxu0 0.0
      %982 = vmatprep.subr.mxu0 0.0
      %983 = vmatpush1.msra.mxu0 0.0
      %984 = vmatprep.subr.mxu0 0.0
      %985 = vmatpush1.msra.mxu0 0.0
      %986 = vmatprep.subr.mxu0 0.0
      %987 = vmatpush1.msra.mxu0 0.0
      %988 = vmatprep.subr.mxu0 0.0
      %989 = vmatpush1.msra.mxu0 0.0
      %990 = vmatprep.mubr.f32.mxu0 0.0
      %991 = vmatmul.mubr.f32.gmra.mrb[0].mxu0 %v903
      %v992 = vpop.f32.mrb[0].mxu0
      %v993 = vadd.f32 %v894, %v992
      %v994 = vpop.f32.mrb[0].mxu0
      %995 = vmatprep.mubr.f32.mxu0 0.0
      %996 = vmatmul.mubr.f32.gmra.mrb[0].mxu0 %v906
      %v997 = vpop.f32.mrb[0].mxu0
      %v998 = vadd.f32 %v895, %v997
      %v999 = vpop.f32.mrb[0].mxu0
      %1000 = vmatprep.mubr.f32.mxu0 0.0
      %1001 = vmatmul.mubr.f32.gmra.mrb[0].mxu0 %v909
      %v1002 = vpop.f32.mrb[0].mxu0
      %v1003 = vadd.f32 %v896, %v1002
      %v1004 = vpop.f32.mrb[0].mxu0
      %1005 = vmatprep.mubr.f32.mxu0 0.0
      %1006 = vmatmul.mubr.f32.gmra.mrb[0].mxu0 %v912
      %v1007 = vpop.f32.mrb[0].mxu0
      %v1008 = vadd.f32 %v897, %v1007
      %v1009 = vpop.f32.mrb[0].mxu0
      %1010 = vmatprep.mubr.f32.mxu0 0.0
      %1011 = vmatmul.mubr.f32.gmra.mrb[0].mxu0 %v915
      %v1012 = vpop.f32.mrb[0].mxu0
      %v1013 = vadd.f32 %v898, %v1012
      %v1014 = vpop.f32.mrb[0].mxu0
      %1015 = vmatprep.mubr.f32.mxu0 0.0
      %1016 = vmatmul.mubr.f32.gmra.mrb[0].mxu0 %v918
      %v1017 = vpop.f32.mrb[0].mxu0
      %v1018 = vadd.f32 %v899, %v1017
      %v1019 = vpop.f32.mrb[0].mxu0
      %1020 = vmatprep.mubr.f32.mxu0 0.0
      %1021 = vmatmul.mubr.f32.gmra.mrb[0].mxu0 %v921
      %v1022 = vpop.f32.mrb[0].mxu0
      %v1023 = vadd.f32 %v900, %v1022
      %v1024 = vpop.f32.mrb[0].mxu0
      %1025 = vmatprep.mubr.f32.mxu0 0.0
      %1026 = vmatmul.mubr.f32.gmra.mrb[0].mxu0 %v924
      %v1027 = vpop.f32.mrb[0].mxu0
      %v1028 = vadd.f32 %v901, %v1027
      %v1029 = vpop.f32.mrb[0].mxu0
      %1030 = vdwg.mxu0
      %vm1031 = vcmask 1044480
      %v1032 = vrot.slane %v437, 3
      %v1033 = vrot.slane %v442, 3
      %v1034 = vsel %vm1031, %v1032, %v1033
      %v1035 = vrot.slane %v447, 3
      %v1036 = vsel %vm1031, %v1033, %v1035
      %v1037 = vrot.slane %v452, 3
      %v1038 = vsel %vm1031, %v1035, %v1037
      %v1039 = vrot.slane %v457, 3
      %v1040 = vsel %vm1031, %v1037, %v1039
      %v1041 = vrot.slane %v462, 3
      %v1042 = vsel %vm1031, %v1039, %v1041
      %v1043 = vrot.slane %v467, 3
      %v1044 = vsel %vm1031, %v1041, %v1043
      %v1045 = vrot.slane %v472, 3
      %v1046 = vsel %vm1031, %v1043, %v1045
      %v1047 = vsel %vm1031, %v1045, %v1032
      %1048 = vrot.lane.b32.xlu0 %v1034, 96
      %v1049 = vpop.permute.xlu0 %1048
      %1050 = vrot.lane.b32.xlu0 %v1036, 96
      %v1051 = vpop.permute.xlu0 %1050
      %1052 = vrot.lane.b32.xlu0 %v1038, 96
      %v1053 = vpop.permute.xlu0 %1052
      %1054 = vrot.lane.b32.xlu0 %v1040, 96
      %v1055 = vpop.permute.xlu0 %1054
      %1056 = vrot.lane.b32.xlu0 %v1042, 96
      %v1057 = vpop.permute.xlu0 %1056
      %1058 = vrot.lane.b32.xlu0 %v1044, 96
      %v1059 = vpop.permute.xlu0 %1058
      %1060 = vrot.lane.b32.xlu0 %v1046, 96
      %v1061 = vpop.permute.xlu0 %1060
      %1062 = vrot.lane.b32.xlu0 %v1047, 96
      %v1063 = vpop.permute.xlu0 %1062
      %v1072 = vmul.f32 %v437, %v1049
      %v1073 = vmul.f32 %v442, %v1051
      %v1074 = vmul.f32 %v447, %v1053
      %v1075 = vmul.f32 %v452, %v1055
      %v1076 = vmul.f32 %v457, %v1057
      %v1077 = vmul.f32 %v462, %v1059
      %v1078 = vmul.f32 %v467, %v1061
      %v1079 = vmul.f32 %v472, %v1063
      %s1080 = scalar_lea.vmem %s320, 192
      %v1081 = vld [vmem:[%s1080] sm:$0xff]
      %v1082 = vld [vmem:[%s1080 + $0x8] sm:$0xff]
      %v1083 = vld [vmem:[%s1080 + $0x10] sm:$0xff]
      %v1084 = vld [vmem:[%s1080 + $0x18] sm:$0xff]
      %v1085 = vld [vmem:[%s1080 + $0x20] sm:$0xff]
      %v1086 = vld [vmem:[%s1080 + $0x28] sm:$0xff]
      %v1087 = vld [vmem:[%s1080 + $0x30] sm:$0xff]
      %v1088 = vld [vmem:[%s1080 + $0x38] sm:$0xff]
      %v1090 = vsel %vm345, %v1072, 0
      %v1093 = vsel %vm345, %v1073, 0
      %v1096 = vsel %vm345, %v1074, 0
      %v1099 = vsel %vm345, %v1075, 0
      %v1102 = vsel %vm345, %v1076, 0
      %v1105 = vsel %vm345, %v1077, 0
      %v1108 = vsel %vm345, %v1078, 0
      %v1111 = vsel %vm345, %v1079, 0
      %1113 = vmatprep.subr.mxu0 0.0
      %1114 = vmatpush1.msra.mxu0 %v475
      %1115 = vmatprep.subr.mxu0 0.0
      %1116 = vmatpush1.msra.mxu0 %v476
      %1117 = vmatprep.subr.mxu0 0.0
      %1118 = vmatpush1.msra.mxu0 %v477
      %1119 = vmatprep.subr.mxu0 0.0
      %1120 = vmatpush1.msra.mxu0 %v478
      %1121 = vmatprep.subr.mxu0 0.0
      %1122 = vmatpush1.msra.mxu0 0.0
      %1123 = vmatprep.subr.mxu0 0.0
      %1124 = vmatpush1.msra.mxu0 0.0
      %1125 = vmatprep.subr.mxu0 0.0
      %1126 = vmatpush1.msra.mxu0 0.0
      %1127 = vmatprep.subr.mxu0 0.0
      %1128 = vmatpush1.msra.mxu0 0.0
      %1129 = vmatprep.subr.mxu0 0.0
      %1130 = vmatpush1.msra.mxu0 0.0
      %1131 = vmatprep.subr.mxu0 0.0
      %1132 = vmatpush1.msra.mxu0 0.0
      %1133 = vmatprep.subr.mxu0 0.0
      %1134 = vmatpush1.msra.mxu0 0.0
      %1135 = vmatprep.subr.mxu0 0.0
      %1136 = vmatpush1.msra.mxu0 0.0
      %1137 = vmatprep.subr.mxu0 0.0
      %1138 = vmatpush1.msra.mxu0 0.0
      %1139 = vmatprep.subr.mxu0 0.0
      %1140 = vmatpush1.msra.mxu0 0.0
      %1141 = vmatprep.subr.mxu0 0.0
      %1142 = vmatpush1.msra.mxu0 0.0
      %1143 = vmatprep.subr.mxu0 0.0
      %1144 = vmatpush1.msra.mxu0 0.0
      %1145 = vmatprep.subr.mxu0 0.0
      %1146 = vmatpush1.msra.mxu0 0.0
      %1147 = vmatprep.subr.mxu0 0.0
      %1148 = vmatpush1.msra.mxu0 0.0
      %1149 = vmatprep.subr.mxu0 0.0
      %1150 = vmatpush1.msra.mxu0 0.0
      %1151 = vmatprep.subr.mxu0 0.0
      %1152 = vmatpush1.msra.mxu0 0.0
      %1153 = vmatprep.subr.mxu0 0.0
      %1154 = vmatpush1.msra.mxu0 0.0
      %1155 = vmatprep.subr.mxu0 0.0
      %1156 = vmatpush1.msra.mxu0 0.0
      %1157 = vmatprep.subr.mxu0 0.0
      %1158 = vmatpush1.msra.mxu0 0.0
      %1159 = vmatprep.subr.mxu0 0.0
      %1160 = vmatpush1.msra.mxu0 0.0
      %1161 = vmatprep.subr.mxu0 0.0
      %1162 = vmatpush1.msra.mxu0 0.0
      %1163 = vmatprep.subr.mxu0 0.0
      %1164 = vmatpush1.msra.mxu0 0.0
      %1165 = vmatprep.subr.mxu0 0.0
      %1166 = vmatpush1.msra.mxu0 0.0
      %1167 = vmatprep.subr.mxu0 0.0
      %1168 = vmatpush1.msra.mxu0 0.0
      %1169 = vmatprep.subr.mxu0 0.0
      %1170 = vmatpush1.msra.mxu0 0.0
      %1171 = vmatprep.subr.mxu0 0.0
      %1172 = vmatpush1.msra.mxu0 0.0
      %1173 = vmatprep.subr.mxu0 0.0
      %1174 = vmatpush1.msra.mxu0 0.0
      %1175 = vmatprep.subr.mxu0 0.0
      %1176 = vmatpush1.msra.mxu0 0.0
      %1177 = vmatprep.mubr.f32.mxu0 0.0
      %1178 = vmatmul.mubr.f32.gmra.mrb[0].mxu0 %v1090
      %v1179 = vpop.f32.mrb[0].mxu0
      %v1180 = vadd.f32 %v1081, %v1179
      %v1181 = vpop.f32.mrb[0].mxu0
      %1182 = vmatprep.mubr.f32.mxu0 0.0
      %1183 = vmatmul.mubr.f32.gmra.mrb[0].mxu0 %v1093
      %v1184 = vpop.f32.mrb[0].mxu0
      %v1185 = vadd.f32 %v1082, %v1184
      %v1186 = vpop.f32.mrb[0].mxu0
      %1187 = vmatprep.mubr.f32.mxu0 0.0
      %1188 = vmatmul.mubr.f32.gmra.mrb[0].mxu0 %v1096
      %v1189 = vpop.f32.mrb[0].mxu0
      %v1190 = vadd.f32 %v1083, %v1189
      %v1191 = vpop.f32.mrb[0].mxu0
      %1192 = vmatprep.mubr.f32.mxu0 0.0
      %1193 = vmatmul.mubr.f32.gmra.mrb[0].mxu0 %v1099
      %v1194 = vpop.f32.mrb[0].mxu0
      %v1195 = vadd.f32 %v1084, %v1194
      %v1196 = vpop.f32.mrb[0].mxu0
      %1197 = vmatprep.mubr.f32.mxu0 0.0
      %1198 = vmatmul.mubr.f32.gmra.mrb[0].mxu0 %v1102
      %v1199 = vpop.f32.mrb[0].mxu0
      %v1200 = vadd.f32 %v1085, %v1199
      %v1201 = vpop.f32.mrb[0].mxu0
      %1202 = vmatprep.mubr.f32.mxu0 0.0
      %1203 = vmatmul.mubr.f32.gmra.mrb[0].mxu0 %v1105
      %v1204 = vpop.f32.mrb[0].mxu0
      %v1205 = vadd.f32 %v1086, %v1204
      %v1206 = vpop.f32.mrb[0].mxu0
      %1207 = vmatprep.mubr.f32.mxu0 0.0
      %1208 = vmatmul.mubr.f32.gmra.mrb[0].mxu0 %v1108
      %v1209 = vpop.f32.mrb[0].mxu0
      %v1210 = vadd.f32 %v1087, %v1209
      %v1211 = vpop.f32.mrb[0].mxu0
      %1212 = vmatprep.mubr.f32.mxu0 0.0
      %1213 = vmatmul.mubr.f32.gmra.mrb[0].mxu0 %v1111
      %v1214 = vpop.f32.mrb[0].mxu0
      %v1215 = vadd.f32 %v1088, %v1214
      %v1216 = vpop.f32.mrb[0].mxu0
      %1217 = vdwg.mxu0
      %vm1218 = vcmask 1043456
      %v1219 = vrot.slane %v437, 4
      %v1220 = vrot.slane %v442, 4
      %v1221 = vsel %vm1218, %v1219, %v1220
      %v1222 = vrot.slane %v447, 4
      %v1223 = vsel %vm1218, %v1220, %v1222
      %v1224 = vrot.slane %v452, 4
      %v1225 = vsel %vm1218, %v1222, %v1224
      %v1226 = vrot.slane %v457, 4
      %v1227 = vsel %vm1218, %v1224, %v1226
      %v1228 = vrot.slane %v462, 4
      %v1229 = vsel %vm1218, %v1226, %v1228
      %v1230 = vrot.slane %v467, 4
      %v1231 = vsel %vm1218, %v1228, %v1230
      %v1232 = vrot.slane %v472, 4
      %v1233 = vsel %vm1218, %v1230, %v1232
      %v1234 = vsel %vm1218, %v1232, %v1219
      %1235 = vrot.lane.b32.xlu0 %v1221, 96
      %v1236 = vpop.permute.xlu0 %1235
      %1237 = vrot.lane.b32.xlu0 %v1223, 96
      %v1238 = vpop.permute.xlu0 %1237
      %1239 = vrot.lane.b32.xlu0 %v1225, 96
      %v1240 = vpop.permute.xlu0 %1239
      %1241 = vrot.lane.b32.xlu0 %v1227, 96
      %v1242 = vpop.permute.xlu0 %1241
      %1243 = vrot.lane.b32.xlu0 %v1229, 96
      %v1244 = vpop.permute.xlu0 %1243
      %1245 = vrot.lane.b32.xlu0 %v1231, 96
      %v1246 = vpop.permute.xlu0 %1245
      %1247 = vrot.lane.b32.xlu0 %v1233, 96
      %v1248 = vpop.permute.xlu0 %1247
      %1249 = vrot.lane.b32.xlu0 %v1234, 96
      %v1250 = vpop.permute.xlu0 %1249
      %v1259 = vmul.f32 %v437, %v1236
      %v1260 = vmul.f32 %v442, %v1238
      %v1261 = vmul.f32 %v447, %v1240
      %v1262 = vmul.f32 %v452, %v1242
      %v1263 = vmul.f32 %v457, %v1244
      %v1264 = vmul.f32 %v462, %v1246
      %v1265 = vmul.f32 %v467, %v1248
      %v1266 = vmul.f32 %v472, %v1250
      %s1267 = scalar_lea.vmem %s320, 256
      %v1268 = vld [vmem:[%s1267] sm:$0xff]
      %v1269 = vld [vmem:[%s1267 + $0x8] sm:$0xff]
      %v1270 = vld [vmem:[%s1267 + $0x10] sm:$0xff]
      %v1271 = vld [vmem:[%s1267 + $0x18] sm:$0xff]
      %v1272 = vld [vmem:[%s1267 + $0x20] sm:$0xff]
      %v1273 = vld [vmem:[%s1267 + $0x28] sm:$0xff]
      %v1274 = vld [vmem:[%s1267 + $0x30] sm:$0xff]
      %v1275 = vld [vmem:[%s1267 + $0x38] sm:$0xff]
      %v1277 = vsel %vm345, %v1259, 0
      %v1280 = vsel %vm345, %v1260, 0
      %v1283 = vsel %vm345, %v1261, 0
      %v1286 = vsel %vm345, %v1262, 0
      %v1289 = vsel %vm345, %v1263, 0
      %v1292 = vsel %vm345, %v1264, 0
      %v1295 = vsel %vm345, %v1265, 0
      %v1298 = vsel %vm345, %v1266, 0
      %1300 = vmatprep.subr.mxu0 0.0
      %1301 = vmatpush1.msra.mxu0 %v475
      %1302 = vmatprep.subr.mxu0 0.0
      %1303 = vmatpush1.msra.mxu0 %v476
      %1304 = vmatprep.subr.mxu0 0.0
      %1305 = vmatpush1.msra.mxu0 %v477
      %1306 = vmatprep.subr.mxu0 0.0
      %1307 = vmatpush1.msra.mxu0 %v478
      %1308 = vmatprep.subr.mxu0 0.0
      %1309 = vmatpush1.msra.mxu0 0.0
      %1310 = vmatprep.subr.mxu0 0.0
      %1311 = vmatpush1.msra.mxu0 0.0
      %1312 = vmatprep.subr.mxu0 0.0
      %1313 = vmatpush1.msra.mxu0 0.0
      %1314 = vmatprep.subr.mxu0 0.0
      %1315 = vmatpush1.msra.mxu0 0.0
      %1316 = vmatprep.subr.mxu0 0.0
      %1317 = vmatpush1.msra.mxu0 0.0
      %1318 = vmatprep.subr.mxu0 0.0
      %1319 = vmatpush1.msra.mxu0 0.0
      %1320 = vmatprep.subr.mxu0 0.0
      %1321 = vmatpush1.msra.mxu0 0.0
      %1322 = vmatprep.subr.mxu0 0.0
      %1323 = vmatpush1.msra.mxu0 0.0
      %1324 = vmatprep.subr.mxu0 0.0
      %1325 = vmatpush1.msra.mxu0 0.0
      %1326 = vmatprep.subr.mxu0 0.0
      %1327 = vmatpush1.msra.mxu0 0.0
      %1328 = vmatprep.subr.mxu0 0.0
      %1329 = vmatpush1.msra.mxu0 0.0
      %1330 = vmatprep.subr.mxu0 0.0
      %1331 = vmatpush1.msra.mxu0 0.0
      %1332 = vmatprep.subr.mxu0 0.0
      %1333 = vmatpush1.msra.mxu0 0.0
      %1334 = vmatprep.subr.mxu0 0.0
      %1335 = vmatpush1.msra.mxu0 0.0
      %1336 = vmatprep.subr.mxu0 0.0
      %1337 = vmatpush1.msra.mxu0 0.0
      %1338 = vmatprep.subr.mxu0 0.0
      %1339 = vmatpush1.msra.mxu0 0.0
      %1340 = vmatprep.subr.mxu0 0.0
      %1341 = vmatpush1.msra.mxu0 0.0
      %1342 = vmatprep.subr.mxu0 0.0
      %1343 = vmatpush1.msra.mxu0 0.0
      %1344 = vmatprep.subr.mxu0 0.0
      %1345 = vmatpush1.msra.mxu0 0.0
      %1346 = vmatprep.subr.mxu0 0.0
      %1347 = vmatpush1.msra.mxu0 0.0
      %1348 = vmatprep.subr.mxu0 0.0
      %1349 = vmatpush1.msra.mxu0 0.0
      %1350 = vmatprep.subr.mxu0 0.0
      %1351 = vmatpush1.msra.mxu0 0.0
      %1352 = vmatprep.subr.mxu0 0.0
      %1353 = vmatpush1.msra.mxu0 0.0
      %1354 = vmatprep.subr.mxu0 0.0
      %1355 = vmatpush1.msra.mxu0 0.0
      %1356 = vmatprep.subr.mxu0 0.0
      %1357 = vmatpush1.msra.mxu0 0.0
      %1358 = vmatprep.subr.mxu0 0.0
      %1359 = vmatpush1.msra.mxu0 0.0
      %1360 = vmatprep.subr.mxu0 0.0
      %1361 = vmatpush1.msra.mxu0 0.0
      %1362 = vmatprep.subr.mxu0 0.0
      %1363 = vmatpush1.msra.mxu0 0.0
      %1364 = vmatprep.mubr.f32.mxu0 0.0
      %1365 = vmatmul.mubr.f32.gmra.mrb[0].mxu0 %v1277
      %v1366 = vpop.f32.mrb[0].mxu0
      %v1367 = vadd.f32 %v1268, %v1366
      %v1368 = vpop.f32.mrb[0].mxu0
      %1369 = vmatprep.mubr.f32.mxu0 0.0
      %1370 = vmatmul.mubr.f32.gmra.mrb[0].mxu0 %v1280
      %v1371 = vpop.f32.mrb[0].mxu0
      %v1372 = vadd.f32 %v1269, %v1371
      %v1373 = vpop.f32.mrb[0].mxu0
      %1374 = vmatprep.mubr.f32.mxu0 0.0
      %1375 = vmatmul.mubr.f32.gmra.mrb[0].mxu0 %v1283
      %v1376 = vpop.f32.mrb[0].mxu0
      %v1377 = vadd.f32 %v1270, %v1376
      %v1378 = vpop.f32.mrb[0].mxu0
      %1379 = vmatprep.mubr.f32.mxu0 0.0
      %1380 = vmatmul.mubr.f32.gmra.mrb[0].mxu0 %v1286
      %v1381 = vpop.f32.mrb[0].mxu0
      %v1382 = vadd.f32 %v1271, %v1381
      %v1383 = vpop.f32.mrb[0].mxu0
      %1384 = vmatprep.mubr.f32.mxu0 0.0
      %1385 = vmatmul.mubr.f32.gmra.mrb[0].mxu0 %v1289
      %v1386 = vpop.f32.mrb[0].mxu0
      %v1387 = vadd.f32 %v1272, %v1386
      %v1388 = vpop.f32.mrb[0].mxu0
      %1389 = vmatprep.mubr.f32.mxu0 0.0
      %1390 = vmatmul.mubr.f32.gmra.mrb[0].mxu0 %v1292
      %v1391 = vpop.f32.mrb[0].mxu0
      %v1392 = vadd.f32 %v1273, %v1391
      %v1393 = vpop.f32.mrb[0].mxu0
      %1394 = vmatprep.mubr.f32.mxu0 0.0
      %1395 = vmatmul.mubr.f32.gmra.mrb[0].mxu0 %v1295
      %v1396 = vpop.f32.mrb[0].mxu0
      %v1397 = vadd.f32 %v1274, %v1396
      %v1398 = vpop.f32.mrb[0].mxu0
      %1399 = vmatprep.mubr.f32.mxu0 0.0
      %1400 = vmatmul.mubr.f32.gmra.mrb[0].mxu0 %v1298
      %v1401 = vpop.f32.mrb[0].mxu0
      %v1402 = vadd.f32 %v1275, %v1401
      %v1403 = vpop.f32.mrb[0].mxu0
      %1404 = vdwg.mxu0
      %vm1405 = vcmask 1042432
      %v1406 = vrot.slane %v437, 5
      %v1407 = vrot.slane %v442, 5
      %v1408 = vsel %vm1405, %v1406, %v1407
      %v1409 = vrot.slane %v447, 5
      %v1410 = vsel %vm1405, %v1407, %v1409
      %v1411 = vrot.slane %v452, 5
      %v1412 = vsel %vm1405, %v1409, %v1411
      %v1413 = vrot.slane %v457, 5
      %v1414 = vsel %vm1405, %v1411, %v1413
      %v1415 = vrot.slane %v462, 5
      %v1416 = vsel %vm1405, %v1413, %v1415
      %v1417 = vrot.slane %v467, 5
      %v1418 = vsel %vm1405, %v1415, %v1417
      %v1419 = vrot.slane %v472, 5
      %v1420 = vsel %vm1405, %v1417, %v1419
      %v1421 = vsel %vm1405, %v1419, %v1406
      %1422 = vrot.lane.b32.xlu0 %v1408, 96
      %v1423 = vpop.permute.xlu0 %1422
      %1424 = vrot.lane.b32.xlu0 %v1410, 96
      %v1425 = vpop.permute.xlu0 %1424
      %1426 = vrot.lane.b32.xlu0 %v1412, 96
      %v1427 = vpop.permute.xlu0 %1426
      %1428 = vrot.lane.b32.xlu0 %v1414, 96
      %v1429 = vpop.permute.xlu0 %1428
      %1430 = vrot.lane.b32.xlu0 %v1416, 96
      %v1431 = vpop.permute.xlu0 %1430
      %1432 = vrot.lane.b32.xlu0 %v1418, 96
      %v1433 = vpop.permute.xlu0 %1432
      %1434 = vrot.lane.b32.xlu0 %v1420, 96
      %v1435 = vpop.permute.xlu0 %1434
      %1436 = vrot.lane.b32.xlu0 %v1421, 96
      %v1437 = vpop.permute.xlu0 %1436
      %v1446 = vmul.f32 %v437, %v1423
      %v1447 = vmul.f32 %v442, %v1425
      %v1448 = vmul.f32 %v447, %v1427
      %v1449 = vmul.f32 %v452, %v1429
      %v1450 = vmul.f32 %v457, %v1431
      %v1451 = vmul.f32 %v462, %v1433
      %v1452 = vmul.f32 %v467, %v1435
      %v1453 = vmul.f32 %v472, %v1437
      %s1454 = scalar_lea.vmem %s320, 320
      %v1455 = vld [vmem:[%s1454] sm:$0xff]
      %v1456 = vld [vmem:[%s1454 + $0x8] sm:$0xff]
      %v1457 = vld [vmem:[%s1454 + $0x10] sm:$0xff]
      %v1458 = vld [vmem:[%s1454 + $0x18] sm:$0xff]
      %v1459 = vld [vmem:[%s1454 + $0x20] sm:$0xff]
      %v1460 = vld [vmem:[%s1454 + $0x28] sm:$0xff]
      %v1461 = vld [vmem:[%s1454 + $0x30] sm:$0xff]
      %v1462 = vld [vmem:[%s1454 + $0x38] sm:$0xff]
      %v1464 = vsel %vm345, %v1446, 0
      %v1467 = vsel %vm345, %v1447, 0
      %v1470 = vsel %vm345, %v1448, 0
      %v1473 = vsel %vm345, %v1449, 0
      %v1476 = vsel %vm345, %v1450, 0
      %v1479 = vsel %vm345, %v1451, 0
      %v1482 = vsel %vm345, %v1452, 0
      %v1485 = vsel %vm345, %v1453, 0
      %1487 = vmatprep.subr.mxu0 0.0
      %1488 = vmatpush1.msra.mxu0 %v475
      %1489 = vmatprep.subr.mxu0 0.0
      %1490 = vmatpush1.msra.mxu0 %v476
      %1491 = vmatprep.subr.mxu0 0.0
      %1492 = vmatpush1.msra.mxu0 %v477
      %1493 = vmatprep.subr.mxu0 0.0
      %1494 = vmatpush1.msra.mxu0 %v478
      %1495 = vmatprep.subr.mxu0 0.0
      %1496 = vmatpush1.msra.mxu0 0.0
      %1497 = vmatprep.subr.mxu0 0.0
      %1498 = vmatpush1.msra.mxu0 0.0
      %1499 = vmatprep.subr.mxu0 0.0
      %1500 = vmatpush1.msra.mxu0 0.0
      %1501 = vmatprep.subr.mxu0 0.0
      %1502 = vmatpush1.msra.mxu0 0.0
      %1503 = vmatprep.subr.mxu0 0.0
      %1504 = vmatpush1.msra.mxu0 0.0
      %1505 = vmatprep.subr.mxu0 0.0
      %1506 = vmatpush1.msra.mxu0 0.0
      %1507 = vmatprep.subr.mxu0 0.0
      %1508 = vmatpush1.msra.mxu0 0.0
      %1509 = vmatprep.subr.mxu0 0.0
      %1510 = vmatpush1.msra.mxu0 0.0
      %1511 = vmatprep.subr.mxu0 0.0
      %1512 = vmatpush1.msra.mxu0 0.0
      %1513 = vmatprep.subr.mxu0 0.0
      %1514 = vmatpush1.msra.mxu0 0.0
      %1515 = vmatprep.subr.mxu0 0.0
      %1516 = vmatpush1.msra.mxu0 0.0
      %1517 = vmatprep.subr.mxu0 0.0
      %1518 = vmatpush1.msra.mxu0 0.0
      %1519 = vmatprep.subr.mxu0 0.0
      %1520 = vmatpush1.msra.mxu0 0.0
      %1521 = vmatprep.subr.mxu0 0.0
      %1522 = vmatpush1.msra.mxu0 0.0
      %1523 = vmatprep.subr.mxu0 0.0
      %1524 = vmatpush1.msra.mxu0 0.0
      %1525 = vmatprep.subr.mxu0 0.0
      %1526 = vmatpush1.msra.mxu0 0.0
      %1527 = vmatprep.subr.mxu0 0.0
      %1528 = vmatpush1.msra.mxu0 0.0
      %1529 = vmatprep.subr.mxu0 0.0
      %1530 = vmatpush1.msra.mxu0 0.0
      %1531 = vmatprep.subr.mxu0 0.0
      %1532 = vmatpush1.msra.mxu0 0.0
      %1533 = vmatprep.subr.mxu0 0.0
      %1534 = vmatpush1.msra.mxu0 0.0
      %1535 = vmatprep.subr.mxu0 0.0
      %1536 = vmatpush1.msra.mxu0 0.0
      %1537 = vmatprep.subr.mxu0 0.0
      %1538 = vmatpush1.msra.mxu0 0.0
      %1539 = vmatprep.subr.mxu0 0.0
      %1540 = vmatpush1.msra.mxu0 0.0
      %1541 = vmatprep.subr.mxu0 0.0
      %1542 = vmatpush1.msra.mxu0 0.0
      %1543 = vmatprep.subr.mxu0 0.0
      %1544 = vmatpush1.msra.mxu0 0.0
      %1545 = vmatprep.subr.mxu0 0.0
      %1546 = vmatpush1.msra.mxu0 0.0
      %1547 = vmatprep.subr.mxu0 0.0
      %1548 = vmatpush1.msra.mxu0 0.0
      %1549 = vmatprep.subr.mxu0 0.0
      %1550 = vmatpush1.msra.mxu0 0.0
      %1551 = vmatprep.mubr.f32.mxu0 0.0
      %1552 = vmatmul.mubr.f32.gmra.mrb[0].mxu0 %v1464
      %v1553 = vpop.f32.mrb[0].mxu0
      %v1554 = vadd.f32 %v1455, %v1553
      %v1555 = vpop.f32.mrb[0].mxu0
      %1556 = vmatprep.mubr.f32.mxu0 0.0
      %1557 = vmatmul.mubr.f32.gmra.mrb[0].mxu0 %v1467
      %v1558 = vpop.f32.mrb[0].mxu0
      %v1559 = vadd.f32 %v1456, %v1558
      %v1560 = vpop.f32.mrb[0].mxu0
      %1561 = vmatprep.mubr.f32.mxu0 0.0
      %1562 = vmatmul.mubr.f32.gmra.mrb[0].mxu0 %v1470
      %v1563 = vpop.f32.mrb[0].mxu0
      %v1564 = vadd.f32 %v1457, %v1563
      %v1565 = vpop.f32.mrb[0].mxu0
      %1566 = vmatprep.mubr.f32.mxu0 0.0
      %1567 = vmatmul.mubr.f32.gmra.mrb[0].mxu0 %v1473
      %v1568 = vpop.f32.mrb[0].mxu0
      %v1569 = vadd.f32 %v1458, %v1568
      %v1570 = vpop.f32.mrb[0].mxu0
      %1571 = vmatprep.mubr.f32.mxu0 0.0
      %1572 = vmatmul.mubr.f32.gmra.mrb[0].mxu0 %v1476
      %v1573 = vpop.f32.mrb[0].mxu0
      %v1574 = vadd.f32 %v1459, %v1573
      %v1575 = vpop.f32.mrb[0].mxu0
      %1576 = vmatprep.mubr.f32.mxu0 0.0
      %1577 = vmatmul.mubr.f32.gmra.mrb[0].mxu0 %v1479
      %v1578 = vpop.f32.mrb[0].mxu0
      %v1579 = vadd.f32 %v1460, %v1578
      %v1580 = vpop.f32.mrb[0].mxu0
      %1581 = vmatprep.mubr.f32.mxu0 0.0
      %1582 = vmatmul.mubr.f32.gmra.mrb[0].mxu0 %v1482
      %v1583 = vpop.f32.mrb[0].mxu0
      %v1584 = vadd.f32 %v1461, %v1583
      %v1585 = vpop.f32.mrb[0].mxu0
      %1586 = vmatprep.mubr.f32.mxu0 0.0
      %1587 = vmatmul.mubr.f32.gmra.mrb[0].mxu0 %v1485
      %v1588 = vpop.f32.mrb[0].mxu0
      %v1589 = vadd.f32 %v1462, %v1588
      %v1590 = vpop.f32.mrb[0].mxu0
      %1591 = vdwg.mxu0
      %vm1592 = vcmask 1041408
      %v1593 = vrot.slane %v437, 6
      %v1594 = vrot.slane %v442, 6
      %v1595 = vsel %vm1592, %v1593, %v1594
      %v1596 = vrot.slane %v447, 6
      %v1597 = vsel %vm1592, %v1594, %v1596
      %v1598 = vrot.slane %v452, 6
      %v1599 = vsel %vm1592, %v1596, %v1598
      %v1600 = vrot.slane %v457, 6
      %v1601 = vsel %vm1592, %v1598, %v1600
      %v1602 = vrot.slane %v462, 6
      %v1603 = vsel %vm1592, %v1600, %v1602
      %v1604 = vrot.slane %v467, 6
      %v1605 = vsel %vm1592, %v1602, %v1604
      %v1606 = vrot.slane %v472, 6
      %v1607 = vsel %vm1592, %v1604, %v1606
      %v1608 = vsel %vm1592, %v1606, %v1593
      %1609 = vrot.lane.b32.xlu0 %v1595, 96
      %v1610 = vpop.permute.xlu0 %1609
      %1611 = vrot.lane.b32.xlu0 %v1597, 96
      %v1612 = vpop.permute.xlu0 %1611
      %1613 = vrot.lane.b32.xlu0 %v1599, 96
      %v1614 = vpop.permute.xlu0 %1613
      %1615 = vrot.lane.b32.xlu0 %v1601, 96
      %v1616 = vpop.permute.xlu0 %1615
      %1617 = vrot.lane.b32.xlu0 %v1603, 96
      %v1618 = vpop.permute.xlu0 %1617
      %1619 = vrot.lane.b32.xlu0 %v1605, 96
      %v1620 = vpop.permute.xlu0 %1619
      %1621 = vrot.lane.b32.xlu0 %v1607, 96
      %v1622 = vpop.permute.xlu0 %1621
      %1623 = vrot.lane.b32.xlu0 %v1608, 96
      %v1624 = vpop.permute.xlu0 %1623
      %v1633 = vmul.f32 %v437, %v1610
      %v1634 = vmul.f32 %v442, %v1612
      %v1635 = vmul.f32 %v447, %v1614
      %v1636 = vmul.f32 %v452, %v1616
      %v1637 = vmul.f32 %v457, %v1618
      %v1638 = vmul.f32 %v462, %v1620
      %v1639 = vmul.f32 %v467, %v1622
      %v1640 = vmul.f32 %v472, %v1624
      %s1641 = scalar_lea.vmem %s320, 384
      %v1642 = vld [vmem:[%s1641] sm:$0xff]
      %v1643 = vld [vmem:[%s1641 + $0x8] sm:$0xff]
      %v1644 = vld [vmem:[%s1641 + $0x10] sm:$0xff]
      %v1645 = vld [vmem:[%s1641 + $0x18] sm:$0xff]
      %v1646 = vld [vmem:[%s1641 + $0x20] sm:$0xff]
      %v1647 = vld [vmem:[%s1641 + $0x28] sm:$0xff]
      %v1648 = vld [vmem:[%s1641 + $0x30] sm:$0xff]
      %v1649 = vld [vmem:[%s1641 + $0x38] sm:$0xff]
      %v1651 = vsel %vm345, %v1633, 0
      %v1654 = vsel %vm345, %v1634, 0
      %v1657 = vsel %vm345, %v1635, 0
      %v1660 = vsel %vm345, %v1636, 0
      %v1663 = vsel %vm345, %v1637, 0
      %v1666 = vsel %vm345, %v1638, 0
      %v1669 = vsel %vm345, %v1639, 0
      %v1672 = vsel %vm345, %v1640, 0
      %1674 = vmatprep.subr.mxu0 0.0
      %1675 = vmatpush1.msra.mxu0 %v475
      %1676 = vmatprep.subr.mxu0 0.0
      %1677 = vmatpush1.msra.mxu0 %v476
      %1678 = vmatprep.subr.mxu0 0.0
      %1679 = vmatpush1.msra.mxu0 %v477
      %1680 = vmatprep.subr.mxu0 0.0
      %1681 = vmatpush1.msra.mxu0 %v478
      %1682 = vmatprep.subr.mxu0 0.0
      %1683 = vmatpush1.msra.mxu0 0.0
      %1684 = vmatprep.subr.mxu0 0.0
      %1685 = vmatpush1.msra.mxu0 0.0
      %1686 = vmatprep.subr.mxu0 0.0
      %1687 = vmatpush1.msra.mxu0 0.0
      %1688 = vmatprep.subr.mxu0 0.0
      %1689 = vmatpush1.msra.mxu0 0.0
      %1690 = vmatprep.subr.mxu0 0.0
      %1691 = vmatpush1.msra.mxu0 0.0
      %1692 = vmatprep.subr.mxu0 0.0
      %1693 = vmatpush1.msra.mxu0 0.0
      %1694 = vmatprep.subr.mxu0 0.0
      %1695 = vmatpush1.msra.mxu0 0.0
      %1696 = vmatprep.subr.mxu0 0.0
      %1697 = vmatpush1.msra.mxu0 0.0
      %1698 = vmatprep.subr.mxu0 0.0
      %1699 = vmatpush1.msra.mxu0 0.0
      %1700 = vmatprep.subr.mxu0 0.0
      %1701 = vmatpush1.msra.mxu0 0.0
      %1702 = vmatprep.subr.mxu0 0.0
      %1703 = vmatpush1.msra.mxu0 0.0
      %1704 = vmatprep.subr.mxu0 0.0
      %1705 = vmatpush1.msra.mxu0 0.0
      %1706 = vmatprep.subr.mxu0 0.0
      %1707 = vmatpush1.msra.mxu0 0.0
      %1708 = vmatprep.subr.mxu0 0.0
      %1709 = vmatpush1.msra.mxu0 0.0
      %1710 = vmatprep.subr.mxu0 0.0
      %1711 = vmatpush1.msra.mxu0 0.0
      %1712 = vmatprep.subr.mxu0 0.0
      %1713 = vmatpush1.msra.mxu0 0.0
      %1714 = vmatprep.subr.mxu0 0.0
      %1715 = vmatpush1.msra.mxu0 0.0
      %1716 = vmatprep.subr.mxu0 0.0
      %1717 = vmatpush1.msra.mxu0 0.0
      %1718 = vmatprep.subr.mxu0 0.0
      %1719 = vmatpush1.msra.mxu0 0.0
      %1720 = vmatprep.subr.mxu0 0.0
      %1721 = vmatpush1.msra.mxu0 0.0
      %1722 = vmatprep.subr.mxu0 0.0
      %1723 = vmatpush1.msra.mxu0 0.0
      %1724 = vmatprep.subr.mxu0 0.0
      %1725 = vmatpush1.msra.mxu0 0.0
      %1726 = vmatprep.subr.mxu0 0.0
      %1727 = vmatpush1.msra.mxu0 0.0
      %1728 = vmatprep.subr.mxu0 0.0
      %1729 = vmatpush1.msra.mxu0 0.0
      %1730 = vmatprep.subr.mxu0 0.0
      %1731 = vmatpush1.msra.mxu0 0.0
      %1732 = vmatprep.subr.mxu0 0.0
      %1733 = vmatpush1.msra.mxu0 0.0
      %1734 = vmatprep.subr.mxu0 0.0
      %1735 = vmatpush1.msra.mxu0 0.0
      %1736 = vmatprep.subr.mxu0 0.0
      %1737 = vmatpush1.msra.mxu0 0.0
      %1738 = vmatprep.mubr.f32.mxu0 0.0
      %1739 = vmatmul.mubr.f32.gmra.mrb[0].mxu0 %v1651
      %v1740 = vpop.f32.mrb[0].mxu0
      %v1741 = vadd.f32 %v1642, %v1740
      %v1742 = vpop.f32.mrb[0].mxu0
      %1743 = vmatprep.mubr.f32.mxu0 0.0
      %1744 = vmatmul.mubr.f32.gmra.mrb[0].mxu0 %v1654
      %v1745 = vpop.f32.mrb[0].mxu0
      %v1746 = vadd.f32 %v1643, %v1745
      %v1747 = vpop.f32.mrb[0].mxu0
      %1748 = vmatprep.mubr.f32.mxu0 0.0
      %1749 = vmatmul.mubr.f32.gmra.mrb[0].mxu0 %v1657
      %v1750 = vpop.f32.mrb[0].mxu0
      %v1751 = vadd.f32 %v1644, %v1750
      %v1752 = vpop.f32.mrb[0].mxu0
      %1753 = vmatprep.mubr.f32.mxu0 0.0
      %1754 = vmatmul.mubr.f32.gmra.mrb[0].mxu0 %v1660
      %v1755 = vpop.f32.mrb[0].mxu0
      %v1756 = vadd.f32 %v1645, %v1755
      %v1757 = vpop.f32.mrb[0].mxu0
      %1758 = vmatprep.mubr.f32.mxu0 0.0
      %1759 = vmatmul.mubr.f32.gmra.mrb[0].mxu0 %v1663
      %v1760 = vpop.f32.mrb[0].mxu0
      %v1761 = vadd.f32 %v1646, %v1760
      %v1762 = vpop.f32.mrb[0].mxu0
      %1763 = vmatprep.mubr.f32.mxu0 0.0
      %1764 = vmatmul.mubr.f32.gmra.mrb[0].mxu0 %v1666
      %v1765 = vpop.f32.mrb[0].mxu0
      %v1766 = vadd.f32 %v1647, %v1765
      %v1767 = vpop.f32.mrb[0].mxu0
      %1768 = vmatprep.mubr.f32.mxu0 0.0
      %1769 = vmatmul.mubr.f32.gmra.mrb[0].mxu0 %v1669
      %v1770 = vpop.f32.mrb[0].mxu0
      %v1771 = vadd.f32 %v1648, %v1770
      %v1772 = vpop.f32.mrb[0].mxu0
      %1773 = vmatprep.mubr.f32.mxu0 0.0
      %1774 = vmatmul.mubr.f32.gmra.mrb[0].mxu0 %v1672
      %v1775 = vpop.f32.mrb[0].mxu0
      %v1776 = vadd.f32 %v1649, %v1775
      %v1777 = vpop.f32.mrb[0].mxu0
      %1778 = vdwg.mxu0
      %vm1779 = vcmask 1040384
      %v1780 = vrot.slane %v437, 7
      %v1781 = vrot.slane %v442, 7
      %v1782 = vsel %vm1779, %v1780, %v1781
      %v1783 = vrot.slane %v447, 7
      %v1784 = vsel %vm1779, %v1781, %v1783
      %v1785 = vrot.slane %v452, 7
      %v1786 = vsel %vm1779, %v1783, %v1785
      %v1787 = vrot.slane %v457, 7
      %v1788 = vsel %vm1779, %v1785, %v1787
      %v1789 = vrot.slane %v462, 7
      %v1790 = vsel %vm1779, %v1787, %v1789
      %v1791 = vrot.slane %v467, 7
      %v1792 = vsel %vm1779, %v1789, %v1791
      %v1793 = vrot.slane %v472, 7
      %v1794 = vsel %vm1779, %v1791, %v1793
      %v1795 = vsel %vm1779, %v1793, %v1780
      %1796 = vrot.lane.b32.xlu0 %v1782, 96
      %v1797 = vpop.permute.xlu0 %1796
      %1798 = vrot.lane.b32.xlu0 %v1784, 96
      %v1799 = vpop.permute.xlu0 %1798
      %1800 = vrot.lane.b32.xlu0 %v1786, 96
      %v1801 = vpop.permute.xlu0 %1800
      %1802 = vrot.lane.b32.xlu0 %v1788, 96
      %v1803 = vpop.permute.xlu0 %1802
      %1804 = vrot.lane.b32.xlu0 %v1790, 96
      %v1805 = vpop.permute.xlu0 %1804
      %1806 = vrot.lane.b32.xlu0 %v1792, 96
      %v1807 = vpop.permute.xlu0 %1806
      %1808 = vrot.lane.b32.xlu0 %v1794, 96
      %v1809 = vpop.permute.xlu0 %1808
      %1810 = vrot.lane.b32.xlu0 %v1795, 96
      %v1811 = vpop.permute.xlu0 %1810
      %v1820 = vmul.f32 %v437, %v1797
      %v1821 = vmul.f32 %v442, %v1799
      %v1822 = vmul.f32 %v447, %v1801
      %v1823 = vmul.f32 %v452, %v1803
      %v1824 = vmul.f32 %v457, %v1805
      %v1825 = vmul.f32 %v462, %v1807
      %v1826 = vmul.f32 %v467, %v1809
      %v1827 = vmul.f32 %v472, %v1811
      %s1828 = scalar_lea.vmem %s320, 448
      %v1829 = vld [vmem:[%s1828] sm:$0xff]
      %v1830 = vld [vmem:[%s1828 + $0x8] sm:$0xff]
      %v1831 = vld [vmem:[%s1828 + $0x10] sm:$0xff]
      %v1832 = vld [vmem:[%s1828 + $0x18] sm:$0xff]
      %v1833 = vld [vmem:[%s1828 + $0x20] sm:$0xff]
      %v1834 = vld [vmem:[%s1828 + $0x28] sm:$0xff]
      %v1835 = vld [vmem:[%s1828 + $0x30] sm:$0xff]
      %v1836 = vld [vmem:[%s1828 + $0x38] sm:$0xff]
      %v1838 = vsel %vm345, %v1820, 0
      %v1841 = vsel %vm345, %v1821, 0
      %v1844 = vsel %vm345, %v1822, 0
      %v1847 = vsel %vm345, %v1823, 0
      %v1850 = vsel %vm345, %v1824, 0
      %v1853 = vsel %vm345, %v1825, 0
      %v1856 = vsel %vm345, %v1826, 0
      %v1859 = vsel %vm345, %v1827, 0
      %1861 = vmatprep.subr.mxu0 0.0
      %1862 = vmatpush1.msra.mxu0 %v475
      %1863 = vmatprep.subr.mxu0 0.0
      %1864 = vmatpush1.msra.mxu0 %v476
      %1865 = vmatprep.subr.mxu0 0.0
      %1866 = vmatpush1.msra.mxu0 %v477
      %1867 = vmatprep.subr.mxu0 0.0
      %1868 = vmatpush1.msra.mxu0 %v478
      %1869 = vmatprep.subr.mxu0 0.0
      %1870 = vmatpush1.msra.mxu0 0.0
      %1871 = vmatprep.subr.mxu0 0.0
      %1872 = vmatpush1.msra.mxu0 0.0
      %1873 = vmatprep.subr.mxu0 0.0
      %1874 = vmatpush1.msra.mxu0 0.0
      %1875 = vmatprep.subr.mxu0 0.0
      %1876 = vmatpush1.msra.mxu0 0.0
      %1877 = vmatprep.subr.mxu0 0.0
      %1878 = vmatpush1.msra.mxu0 0.0
      %1879 = vmatprep.subr.mxu0 0.0
      %1880 = vmatpush1.msra.mxu0 0.0
      %1881 = vmatprep.subr.mxu0 0.0
      %1882 = vmatpush1.msra.mxu0 0.0
      %1883 = vmatprep.subr.mxu0 0.0
      %1884 = vmatpush1.msra.mxu0 0.0
      %1885 = vmatprep.subr.mxu0 0.0
      %1886 = vmatpush1.msra.mxu0 0.0
      %1887 = vmatprep.subr.mxu0 0.0
      %1888 = vmatpush1.msra.mxu0 0.0
      %1889 = vmatprep.subr.mxu0 0.0
      %1890 = vmatpush1.msra.mxu0 0.0
      %1891 = vmatprep.subr.mxu0 0.0
      %1892 = vmatpush1.msra.mxu0 0.0
      %1893 = vmatprep.subr.mxu0 0.0
      %1894 = vmatpush1.msra.mxu0 0.0
      %1895 = vmatprep.subr.mxu0 0.0
      %1896 = vmatpush1.msra.mxu0 0.0
      %1897 = vmatprep.subr.mxu0 0.0
      %1898 = vmatpush1.msra.mxu0 0.0
      %1899 = vmatprep.subr.mxu0 0.0
      %1900 = vmatpush1.msra.mxu0 0.0
      %1901 = vmatprep.subr.mxu0 0.0
      %1902 = vmatpush1.msra.mxu0 0.0
      %1903 = vmatprep.subr.mxu0 0.0
      %1904 = vmatpush1.msra.mxu0 0.0
      %1905 = vmatprep.subr.mxu0 0.0
      %1906 = vmatpush1.msra.mxu0 0.0
      %1907 = vmatprep.subr.mxu0 0.0
      %1908 = vmatpush1.msra.mxu0 0.0
      %1909 = vmatprep.subr.mxu0 0.0
      %1910 = vmatpush1.msra.mxu0 0.0
      %1911 = vmatprep.subr.mxu0 0.0
      %1912 = vmatpush1.msra.mxu0 0.0
      %1913 = vmatprep.subr.mxu0 0.0
      %1914 = vmatpush1.msra.mxu0 0.0
      %1915 = vmatprep.subr.mxu0 0.0
      %1916 = vmatpush1.msra.mxu0 0.0
      %1917 = vmatprep.subr.mxu0 0.0
      %1918 = vmatpush1.msra.mxu0 0.0
      %1919 = vmatprep.subr.mxu0 0.0
      %1920 = vmatpush1.msra.mxu0 0.0
      %1921 = vmatprep.subr.mxu0 0.0
      %1922 = vmatpush1.msra.mxu0 0.0
      %1923 = vmatprep.subr.mxu0 0.0
      %1924 = vmatpush1.msra.mxu0 0.0
      %1925 = vmatprep.mubr.f32.mxu0 0.0
      %1926 = vmatmul.mubr.f32.gmra.mrb[0].mxu0 %v1838
      %v1927 = vpop.f32.mrb[0].mxu0
      %v1928 = vadd.f32 %v1829, %v1927
      %v1929 = vpop.f32.mrb[0].mxu0
      %1930 = vmatprep.mubr.f32.mxu0 0.0
      %1931 = vmatmul.mubr.f32.gmra.mrb[0].mxu0 %v1841
      %v1932 = vpop.f32.mrb[0].mxu0
      %v1933 = vadd.f32 %v1830, %v1932
      %v1934 = vpop.f32.mrb[0].mxu0
      %1935 = vmatprep.mubr.f32.mxu0 0.0
      %1936 = vmatmul.mubr.f32.gmra.mrb[0].mxu0 %v1844
      %v1937 = vpop.f32.mrb[0].mxu0
      %v1938 = vadd.f32 %v1831, %v1937
      %v1939 = vpop.f32.mrb[0].mxu0
      %1940 = vmatprep.mubr.f32.mxu0 0.0
      %1941 = vmatmul.mubr.f32.gmra.mrb[0].mxu0 %v1847
      %v1942 = vpop.f32.mrb[0].mxu0
      %v1943 = vadd.f32 %v1832, %v1942
      %v1944 = vpop.f32.mrb[0].mxu0
      %1945 = vmatprep.mubr.f32.mxu0 0.0
      %1946 = vmatmul.mubr.f32.gmra.mrb[0].mxu0 %v1850
      %v1947 = vpop.f32.mrb[0].mxu0
      %v1948 = vadd.f32 %v1833, %v1947
      %v1949 = vpop.f32.mrb[0].mxu0
      %1950 = vmatprep.mubr.f32.mxu0 0.0
      %1951 = vmatmul.mubr.f32.gmra.mrb[0].mxu0 %v1853
      %v1952 = vpop.f32.mrb[0].mxu0
      %v1953 = vadd.f32 %v1834, %v1952
      %v1954 = vpop.f32.mrb[0].mxu0
      %1955 = vmatprep.mubr.f32.mxu0 0.0
      %1956 = vmatmul.mubr.f32.gmra.mrb[0].mxu0 %v1856
      %v1957 = vpop.f32.mrb[0].mxu0
      %v1958 = vadd.f32 %v1835, %v1957
      %v1959 = vpop.f32.mrb[0].mxu0
      %1960 = vmatprep.mubr.f32.mxu0 0.0
      %1961 = vmatmul.mubr.f32.gmra.mrb[0].mxu0 %v1859
      %v1962 = vpop.f32.mrb[0].mxu0
      %v1963 = vadd.f32 %v1836, %v1962
      %v1964 = vpop.f32.mrb[0].mxu0
      %1965 = vdwg.mxu0
      %v1966 = vmax.f32 %v619, %v806
      %v1967 = vmax.f32 %v624, %v811
      %v1968 = vmax.f32 %v629, %v816
      %v1969 = vmax.f32 %v634, %v821
      %v1970 = vmax.f32 %v639, %v826
      %v1971 = vmax.f32 %v644, %v831
      %v1972 = vmax.f32 %v649, %v836
      %v1973 = vmax.f32 %v654, %v841
      %v1974 = vmax.f32 %v1966, %v993
      %v1975 = vmax.f32 %v1967, %v998
      %v1976 = vmax.f32 %v1968, %v1003
      %v1977 = vmax.f32 %v1969, %v1008
      %v1978 = vmax.f32 %v1970, %v1013
      %v1979 = vmax.f32 %v1971, %v1018
      %v1980 = vmax.f32 %v1972, %v1023
      %v1981 = vmax.f32 %v1973, %v1028
      %v1982 = vmax.f32 %v1974, %v1180
      %v1983 = vmax.f32 %v1975, %v1185
      %v1984 = vmax.f32 %v1976, %v1190
      %v1985 = vmax.f32 %v1977, %v1195
      %v1986 = vmax.f32 %v1978, %v1200
      %v1987 = vmax.f32 %v1979, %v1205
      %v1988 = vmax.f32 %v1980, %v1210
      %v1989 = vmax.f32 %v1981, %v1215
      %v1990 = vmax.f32 %v1982, %v1367
      %v1991 = vmax.f32 %v1983, %v1372
      %v1992 = vmax.f32 %v1984, %v1377
      %v1993 = vmax.f32 %v1985, %v1382
      %v1994 = vmax.f32 %v1986, %v1387
      %v1995 = vmax.f32 %v1987, %v1392
      %v1996 = vmax.f32 %v1988, %v1397
      %v1997 = vmax.f32 %v1989, %v1402
      %v1998 = vmax.f32 %v1990, %v1554
      %v1999 = vmax.f32 %v1991, %v1559
      %v2000 = vmax.f32 %v1992, %v1564
      %v2001 = vmax.f32 %v1993, %v1569
      %v2002 = vmax.f32 %v1994, %v1574
      %v2003 = vmax.f32 %v1995, %v1579
      %v2004 = vmax.f32 %v1996, %v1584
      %v2005 = vmax.f32 %v1997, %v1589
      %v2006 = vmax.f32 %v1998, %v1741
      %v2007 = vmax.f32 %v1999, %v1746
      %v2008 = vmax.f32 %v2000, %v1751
      %v2009 = vmax.f32 %v2001, %v1756
      %v2010 = vmax.f32 %v2002, %v1761
      %v2011 = vmax.f32 %v2003, %v1766
      %v2012 = vmax.f32 %v2004, %v1771
      %v2013 = vmax.f32 %v2005, %v1776
      %v2014 = vmax.f32 %v2006, %v1928
      %v2015 = vmax.f32 %v2007, %v1933
      %v2016 = vmax.f32 %v2008, %v1938
      %v2017 = vmax.f32 %v2009, %v1943
      %v2018 = vmax.f32 %v2010, %v1948
      %v2019 = vmax.f32 %v2011, %v1953
      %v2020 = vmax.f32 %v2012, %v1958
      %v2021 = vmax.f32 %v2013, %v1963
      %v2022 = vsub.f32 %v619, %v2014
      %v2023 = vsub.f32 %v624, %v2015
      %v2024 = vsub.f32 %v629, %v2016
      %v2025 = vsub.f32 %v634, %v2017
      %v2026 = vsub.f32 %v639, %v2018
      %v2027 = vsub.f32 %v644, %v2019
      %v2028 = vsub.f32 %v649, %v2020
      %v2029 = vsub.f32 %v654, %v2021
      %v2030 = vmul.f32 %v2022, 1.442695
      %v2031 = vpow.pop %v2030
      %v2032 = vmul.f32 %v2023, 1.442695
      %v2033 = vpow.pop %v2032
      %v2034 = vmul.f32 %v2024, 1.442695
      %v2035 = vpow.pop %v2034
      %v2036 = vmul.f32 %v2025, 1.442695
      %v2037 = vpow.pop %v2036
      %v2038 = vmul.f32 %v2026, 1.442695
      %v2039 = vpow.pop %v2038
      %v2040 = vmul.f32 %v2027, 1.442695
      %v2041 = vpow.pop %v2040
      %v2042 = vmul.f32 %v2028, 1.442695
      %v2043 = vpow.pop %v2042
      %v2044 = vmul.f32 %v2029, 1.442695
      %v2045 = vpow.pop %v2044
      %v2046 = vsub.f32 %v806, %v2014
      %v2047 = vsub.f32 %v811, %v2015
      %v2048 = vsub.f32 %v816, %v2016
      %v2049 = vsub.f32 %v821, %v2017
      %v2050 = vsub.f32 %v826, %v2018
      %v2051 = vsub.f32 %v831, %v2019
      %v2052 = vsub.f32 %v836, %v2020
      %v2053 = vsub.f32 %v841, %v2021
      %v2054 = vmul.f32 %v2046, 1.442695
      %v2055 = vpow.pop %v2054
      %v2056 = vmul.f32 %v2047, 1.442695
      %v2057 = vpow.pop %v2056
      %v2058 = vmul.f32 %v2048, 1.442695
      %v2059 = vpow.pop %v2058
      %v2060 = vmul.f32 %v2049, 1.442695
      %v2061 = vpow.pop %v2060
      %v2062 = vmul.f32 %v2050, 1.442695
      %v2063 = vpow.pop %v2062
      %v2064 = vmul.f32 %v2051, 1.442695
      %v2065 = vpow.pop %v2064
      %v2066 = vmul.f32 %v2052, 1.442695
      %v2067 = vpow.pop %v2066
      %v2068 = vmul.f32 %v2053, 1.442695
      %v2069 = vpow.pop %v2068
      %v2070 = vsub.f32 %v993, %v2014
      %v2071 = vsub.f32 %v998, %v2015
      %v2072 = vsub.f32 %v1003, %v2016
      %v2073 = vsub.f32 %v1008, %v2017
      %v2074 = vsub.f32 %v1013, %v2018
      %v2075 = vsub.f32 %v1018, %v2019
      %v2076 = vsub.f32 %v1023, %v2020
      %v2077 = vsub.f32 %v1028, %v2021
      %v2078 = vmul.f32 %v2070, 1.442695
      %v2079 = vpow.pop %v2078
      %v2080 = vmul.f32 %v2071, 1.442695
      %v2081 = vpow.pop %v2080
      %v2082 = vmul.f32 %v2072, 1.442695
      %v2083 = vpow.pop %v2082
      %v2084 = vmul.f32 %v2073, 1.442695
      %v2085 = vpow.pop %v2084
      %v2086 = vmul.f32 %v2074, 1.442695
      %v2087 = vpow.pop %v2086
      %v2088 = vmul.f32 %v2075, 1.442695
      %v2089 = vpow.pop %v2088
      %v2090 = vmul.f32 %v2076, 1.442695
      %v2091 = vpow.pop %v2090
      %v2092 = vmul.f32 %v2077, 1.442695
      %v2093 = vpow.pop %v2092
      %v2094 = vsub.f32 %v1180, %v2014
      %v2095 = vsub.f32 %v1185, %v2015
      %v2096 = vsub.f32 %v1190, %v2016
      %v2097 = vsub.f32 %v1195, %v2017
      %v2098 = vsub.f32 %v1200, %v2018
      %v2099 = vsub.f32 %v1205, %v2019
      %v2100 = vsub.f32 %v1210, %v2020
      %v2101 = vsub.f32 %v1215, %v2021
      %v2102 = vmul.f32 %v2094, 1.442695
      %v2103 = vpow.pop %v2102
      %v2104 = vmul.f32 %v2095, 1.442695
      %v2105 = vpow.pop %v2104
      %v2106 = vmul.f32 %v2096, 1.442695
      %v2107 = vpow.pop %v2106
      %v2108 = vmul.f32 %v2097, 1.442695
      %v2109 = vpow.pop %v2108
      %v2110 = vmul.f32 %v2098, 1.442695
      %v2111 = vpow.pop %v2110
      %v2112 = vmul.f32 %v2099, 1.442695
      %v2113 = vpow.pop %v2112
      %v2114 = vmul.f32 %v2100, 1.442695
      %v2115 = vpow.pop %v2114
      %v2116 = vmul.f32 %v2101, 1.442695
      %v2117 = vpow.pop %v2116
      %v2118 = vsub.f32 %v1367, %v2014
      %v2119 = vsub.f32 %v1372, %v2015
      %v2120 = vsub.f32 %v1377, %v2016
      %v2121 = vsub.f32 %v1382, %v2017
      %v2122 = vsub.f32 %v1387, %v2018
      %v2123 = vsub.f32 %v1392, %v2019
      %v2124 = vsub.f32 %v1397, %v2020
      %v2125 = vsub.f32 %v1402, %v2021
      %v2126 = vmul.f32 %v2118, 1.442695
      %v2127 = vpow.pop %v2126
      %v2128 = vmul.f32 %v2119, 1.442695
      %v2129 = vpow.pop %v2128
      %v2130 = vmul.f32 %v2120, 1.442695
      %v2131 = vpow.pop %v2130
      %v2132 = vmul.f32 %v2121, 1.442695
      %v2133 = vpow.pop %v2132
      %v2134 = vmul.f32 %v2122, 1.442695
      %v2135 = vpow.pop %v2134
      %v2136 = vmul.f32 %v2123, 1.442695
      %v2137 = vpow.pop %v2136
      %v2138 = vmul.f32 %v2124, 1.442695
      %v2139 = vpow.pop %v2138
      %v2140 = vmul.f32 %v2125, 1.442695
      %v2141 = vpow.pop %v2140
      %v2142 = vsub.f32 %v1554, %v2014
      %v2143 = vsub.f32 %v1559, %v2015
      %v2144 = vsub.f32 %v1564, %v2016
      %v2145 = vsub.f32 %v1569, %v2017
      %v2146 = vsub.f32 %v1574, %v2018
      %v2147 = vsub.f32 %v1579, %v2019
      %v2148 = vsub.f32 %v1584, %v2020
      %v2149 = vsub.f32 %v1589, %v2021
      %v2150 = vmul.f32 %v2142, 1.442695
      %v2151 = vpow.pop %v2150
      %v2152 = vmul.f32 %v2143, 1.442695
      %v2153 = vpow.pop %v2152
      %v2154 = vmul.f32 %v2144, 1.442695
      %v2155 = vpow.pop %v2154
      %v2156 = vmul.f32 %v2145, 1.442695
      %v2157 = vpow.pop %v2156
      %v2158 = vmul.f32 %v2146, 1.442695
      %v2159 = vpow.pop %v2158
      %v2160 = vmul.f32 %v2147, 1.442695
      %v2161 = vpow.pop %v2160
      %v2162 = vmul.f32 %v2148, 1.442695
      %v2163 = vpow.pop %v2162
      %v2164 = vmul.f32 %v2149, 1.442695
      %v2165 = vpow.pop %v2164
      %v2166 = vsub.f32 %v1741, %v2014
      %v2167 = vsub.f32 %v1746, %v2015
      %v2168 = vsub.f32 %v1751, %v2016
      %v2169 = vsub.f32 %v1756, %v2017
      %v2170 = vsub.f32 %v1761, %v2018
      %v2171 = vsub.f32 %v1766, %v2019
      %v2172 = vsub.f32 %v1771, %v2020
      %v2173 = vsub.f32 %v1776, %v2021
      %v2174 = vmul.f32 %v2166, 1.442695
      %v2175 = vpow.pop %v2174
      %v2176 = vmul.f32 %v2167, 1.442695
      %v2177 = vpow.pop %v2176
      %v2178 = vmul.f32 %v2168, 1.442695
      %v2179 = vpow.pop %v2178
      %v2180 = vmul.f32 %v2169, 1.442695
      %v2181 = vpow.pop %v2180
      %v2182 = vmul.f32 %v2170, 1.442695
      %v2183 = vpow.pop %v2182
      %v2184 = vmul.f32 %v2171, 1.442695
      %v2185 = vpow.pop %v2184
      %v2186 = vmul.f32 %v2172, 1.442695
      %v2187 = vpow.pop %v2186
      %v2188 = vmul.f32 %v2173, 1.442695
      %v2189 = vpow.pop %v2188
      %v2190 = vsub.f32 %v1928, %v2014
      %v2191 = vsub.f32 %v1933, %v2015
      %v2192 = vsub.f32 %v1938, %v2016
      %v2193 = vsub.f32 %v1943, %v2017
      %v2194 = vsub.f32 %v1948, %v2018
      %v2195 = vsub.f32 %v1953, %v2019
      %v2196 = vsub.f32 %v1958, %v2020
      %v2197 = vsub.f32 %v1963, %v2021
      %v2198 = vmul.f32 %v2190, 1.442695
      %v2199 = vpow.pop %v2198
      %v2200 = vmul.f32 %v2191, 1.442695
      %v2201 = vpow.pop %v2200
      %v2202 = vmul.f32 %v2192, 1.442695
      %v2203 = vpow.pop %v2202
      %v2204 = vmul.f32 %v2193, 1.442695
      %v2205 = vpow.pop %v2204
      %v2206 = vmul.f32 %v2194, 1.442695
      %v2207 = vpow.pop %v2206
      %v2208 = vmul.f32 %v2195, 1.442695
      %v2209 = vpow.pop %v2208
      %v2210 = vmul.f32 %v2196, 1.442695
      %v2211 = vpow.pop %v2210
      %v2212 = vmul.f32 %v2197, 1.442695
      %v2213 = vpow.pop %v2212
      %v2214 = vadd.f32 %v2031, %v2055
      %v2215 = vadd.f32 %v2033, %v2057
      %v2216 = vadd.f32 %v2035, %v2059
      %v2217 = vadd.f32 %v2037, %v2061
      %v2218 = vadd.f32 %v2039, %v2063
      %v2219 = vadd.f32 %v2041, %v2065
      %v2220 = vadd.f32 %v2043, %v2067
      %v2221 = vadd.f32 %v2045, %v2069
      %v2222 = vadd.f32 %v2214, %v2079
      %v2223 = vadd.f32 %v2215, %v2081
      %v2224 = vadd.f32 %v2216, %v2083
      %v2225 = vadd.f32 %v2217, %v2085
      %v2226 = vadd.f32 %v2218, %v2087
      %v2227 = vadd.f32 %v2219, %v2089
      %v2228 = vadd.f32 %v2220, %v2091
      %v2229 = vadd.f32 %v2221, %v2093
      %v2230 = vadd.f32 %v2222, %v2103
      %v2231 = vadd.f32 %v2223, %v2105
      %v2232 = vadd.f32 %v2224, %v2107
      %v2233 = vadd.f32 %v2225, %v2109
      %v2234 = vadd.f32 %v2226, %v2111
      %v2235 = vadd.f32 %v2227, %v2113
      %v2236 = vadd.f32 %v2228, %v2115
      %v2237 = vadd.f32 %v2229, %v2117
      %v2238 = vadd.f32 %v2230, %v2127
      %v2239 = vadd.f32 %v2231, %v2129
      %v2240 = vadd.f32 %v2232, %v2131
      %v2241 = vadd.f32 %v2233, %v2133
      %v2242 = vadd.f32 %v2234, %v2135
      %v2243 = vadd.f32 %v2235, %v2137
      %v2244 = vadd.f32 %v2236, %v2139
      %v2245 = vadd.f32 %v2237, %v2141
      %v2246 = vadd.f32 %v2238, %v2151
      %v2247 = vadd.f32 %v2239, %v2153
      %v2248 = vadd.f32 %v2240, %v2155
      %v2249 = vadd.f32 %v2241, %v2157
      %v2250 = vadd.f32 %v2242, %v2159
      %v2251 = vadd.f32 %v2243, %v2161
      %v2252 = vadd.f32 %v2244, %v2163
      %v2253 = vadd.f32 %v2245, %v2165
      %v2254 = vadd.f32 %v2246, %v2175
      %v2255 = vadd.f32 %v2247, %v2177
      %v2256 = vadd.f32 %v2248, %v2179
      %v2257 = vadd.f32 %v2249, %v2181
      %v2258 = vadd.f32 %v2250, %v2183
      %v2259 = vadd.f32 %v2251, %v2185
      %v2260 = vadd.f32 %v2252, %v2187
      %v2261 = vadd.f32 %v2253, %v2189
      %v2262 = vadd.f32 %v2254, %v2199
      %v2263 = vadd.f32 %v2255, %v2201
      %v2264 = vadd.f32 %v2256, %v2203
      %v2265 = vadd.f32 %v2257, %v2205
      %v2266 = vadd.f32 %v2258, %v2207
      %v2267 = vadd.f32 %v2259, %v2209
      %v2268 = vadd.f32 %v2260, %v2211
      %v2269 = vadd.f32 %v2261, %v2213
      %v2270 = vrcp.pop %v2262
      %v2271 = vrcp.pop %v2263
      %v2272 = vrcp.pop %v2264
      %v2273 = vrcp.pop %v2265
      %v2274 = vrcp.pop %v2266
      %v2275 = vrcp.pop %v2267
      %v2276 = vrcp.pop %v2268
      %v2277 = vrcp.pop %v2269
      %v2278 = vmul.f32 %v2262, %v2270
      %v2279 = vmul.f32 %v2263, %v2271
      %v2280 = vmul.f32 %v2264, %v2272
      %v2281 = vmul.f32 %v2265, %v2273
      %v2282 = vmul.f32 %v2266, %v2274
      %v2283 = vmul.f32 %v2267, %v2275
      %v2284 = vmul.f32 %v2268, %v2276
      %v2285 = vmul.f32 %v2269, %v2277
      %v2286 = vsub.f32 2.0, %v2278
      %v2287 = vsub.f32 2.0, %v2279
      %v2288 = vsub.f32 2.0, %v2280
      %v2289 = vsub.f32 2.0, %v2281
      %v2290 = vsub.f32 2.0, %v2282
      %v2291 = vsub.f32 2.0, %v2283
      %v2292 = vsub.f32 2.0, %v2284
      %v2293 = vsub.f32 2.0, %v2285
      %v2294 = vmul.f32 %v2270, %v2286
      %v2295 = vmul.f32 %v2271, %v2287
      %v2296 = vmul.f32 %v2272, %v2288
      %v2297 = vmul.f32 %v2273, %v2289
      %v2298 = vmul.f32 %v2274, %v2290
      %v2299 = vmul.f32 %v2275, %v2291
      %v2300 = vmul.f32 %v2276, %v2292
      %v2301 = vmul.f32 %v2277, %v2293
      %v2302 = vmul.f32 %v2031, %v2294
      %v2303 = vmul.f32 %v2033, %v2295
      %v2304 = vmul.f32 %v2035, %v2296
      %v2305 = vmul.f32 %v2037, %v2297
      %v2306 = vmul.f32 %v2039, %v2298
      %v2307 = vmul.f32 %v2041, %v2299
      %v2308 = vmul.f32 %v2043, %v2300
      %v2309 = vmul.f32 %v2045, %v2301
      %vm2310 = vcmask 64512
      %v2312 = vsel %vm2310, %v2302, 0
      %v2315 = vsel %vm2310, %v2303, 0
      %v2318 = vsel %vm2310, %v2304, 0
      %v2321 = vsel %vm2310, %v2305, 0
      %v2324 = vsel %vm2310, %v2306, 0
      %v2327 = vsel %vm2310, %v2307, 0
      %v2330 = vsel %vm2310, %v2308, 0
      %v2333 = vsel %vm2310, %v2309, 0
      %2335 = vmatprep.subr.mxu0 0.0
      %2336 = vmatpush1.msra.mxu0 %v479
      %2337 = vmatprep.subr.mxu0 0.0
      %2338 = vmatpush1.msra.mxu0 0.0
      %2339 = vmatprep.subr.mxu0 0.0
      %2340 = vmatpush1.msra.mxu0 0.0
      %2341 = vmatprep.subr.mxu0 0.0
      %2342 = vmatpush1.msra.mxu0 0.0
      %2343 = vmatprep.subr.mxu0 0.0
      %2344 = vmatpush1.msra.mxu0 0.0
      %2345 = vmatprep.subr.mxu0 0.0
      %2346 = vmatpush1.msra.mxu0 0.0
      %2347 = vmatprep.subr.mxu0 0.0
      %2348 = vmatpush1.msra.mxu0 0.0
      %2349 = vmatprep.subr.mxu0 0.0
      %2350 = vmatpush1.msra.mxu0 0.0
      %2351 = vmatprep.subr.mxu0 0.0
      %2352 = vmatpush1.msra.mxu0 0.0
      %2353 = vmatprep.subr.mxu0 0.0
      %2354 = vmatpush1.msra.mxu0 0.0
      %2355 = vmatprep.subr.mxu0 0.0
      %2356 = vmatpush1.msra.mxu0 0.0
      %2357 = vmatprep.subr.mxu0 0.0
      %2358 = vmatpush1.msra.mxu0 0.0
      %2359 = vmatprep.subr.mxu0 0.0
      %2360 = vmatpush1.msra.mxu0 0.0
      %2361 = vmatprep.subr.mxu0 0.0
      %2362 = vmatpush1.msra.mxu0 0.0
      %2363 = vmatprep.subr.mxu0 0.0
      %2364 = vmatpush1.msra.mxu0 0.0
      %2365 = vmatprep.subr.mxu0 0.0
      %2366 = vmatpush1.msra.mxu0 0.0
      %2367 = vmatprep.subr.mxu0 0.0
      %2368 = vmatpush1.msra.mxu0 0.0
      %2369 = vmatprep.subr.mxu0 0.0
      %2370 = vmatpush1.msra.mxu0 0.0
      %2371 = vmatprep.subr.mxu0 0.0
      %2372 = vmatpush1.msra.mxu0 0.0
      %2373 = vmatprep.subr.mxu0 0.0
      %2374 = vmatpush1.msra.mxu0 0.0
      %2375 = vmatprep.subr.mxu0 0.0
      %2376 = vmatpush1.msra.mxu0 0.0
      %2377 = vmatprep.subr.mxu0 0.0
      %2378 = vmatpush1.msra.mxu0 0.0
      %2379 = vmatprep.subr.mxu0 0.0
      %2380 = vmatpush1.msra.mxu0 0.0
      %2381 = vmatprep.subr.mxu0 0.0
      %2382 = vmatpush1.msra.mxu0 0.0
      %2383 = vmatprep.subr.mxu0 0.0
      %2384 = vmatpush1.msra.mxu0 0.0
      %2385 = vmatprep.subr.mxu0 0.0
      %2386 = vmatpush1.msra.mxu0 0.0
      %2387 = vmatprep.subr.mxu0 0.0
      %2388 = vmatpush1.msra.mxu0 0.0
      %2389 = vmatprep.subr.mxu0 0.0
      %2390 = vmatpush1.msra.mxu0 0.0
      %2391 = vmatprep.subr.mxu0 0.0
      %2392 = vmatpush1.msra.mxu0 0.0
      %2393 = vmatprep.subr.mxu0 0.0
      %2394 = vmatpush1.msra.mxu0 0.0
      %2395 = vmatprep.subr.mxu0 0.0
      %2396 = vmatpush1.msra.mxu0 0.0
      %2397 = vmatprep.subr.mxu0 0.0
      %2398 = vmatpush1.msra.mxu0 0.0
      %2399 = vmatprep.mubr.f32.mxu0 0.0
      %2400 = vmatmul.mubr.f32.gmra.mrb[0].mxu0 %v2312
      %v2401 = vpop.f32.mrb[0].mxu0
      %v2402 = vadd.f32 0.0, %v2401
      %v2403 = vpop.f32.mrb[0].mxu0
      %2404 = vmatprep.mubr.f32.mxu0 0.0
      %2405 = vmatmul.mubr.f32.gmra.mrb[0].mxu0 %v2315
      %v2406 = vpop.f32.mrb[0].mxu0
      %v2407 = vadd.f32 0.0, %v2406
      %v2408 = vpop.f32.mrb[0].mxu0
      %2409 = vmatprep.mubr.f32.mxu0 0.0
      %2410 = vmatmul.mubr.f32.gmra.mrb[0].mxu0 %v2318
      %v2411 = vpop.f32.mrb[0].mxu0
      %v2412 = vadd.f32 0.0, %v2411
      %v2413 = vpop.f32.mrb[0].mxu0
      %2414 = vmatprep.mubr.f32.mxu0 0.0
      %2415 = vmatmul.mubr.f32.gmra.mrb[0].mxu0 %v2321
      %v2416 = vpop.f32.mrb[0].mxu0
      %v2417 = vadd.f32 0.0, %v2416
      %v2418 = vpop.f32.mrb[0].mxu0
      %2419 = vmatprep.mubr.f32.mxu0 0.0
      %2420 = vmatmul.mubr.f32.gmra.mrb[0].mxu0 %v2324
      %v2421 = vpop.f32.mrb[0].mxu0
      %v2422 = vadd.f32 0.0, %v2421
      %v2423 = vpop.f32.mrb[0].mxu0
      %2424 = vmatprep.mubr.f32.mxu0 0.0
      %2425 = vmatmul.mubr.f32.gmra.mrb[0].mxu0 %v2327
      %v2426 = vpop.f32.mrb[0].mxu0
      %v2427 = vadd.f32 0.0, %v2426
      %v2428 = vpop.f32.mrb[0].mxu0
      %2429 = vmatprep.mubr.f32.mxu0 0.0
      %2430 = vmatmul.mubr.f32.gmra.mrb[0].mxu0 %v2330
      %v2431 = vpop.f32.mrb[0].mxu0
      %v2432 = vadd.f32 0.0, %v2431
      %v2433 = vpop.f32.mrb[0].mxu0
      %2434 = vmatprep.mubr.f32.mxu0 0.0
      %2435 = vmatmul.mubr.f32.gmra.mrb[0].mxu0 %v2333
      %v2436 = vpop.f32.mrb[0].mxu0
      %v2437 = vadd.f32 0.0, %v2436
      %v2438 = vpop.f32.mrb[0].mxu0
      %2439 = vdwg.mxu0
      %2440 = vrot.lane.b32.xlu0 %v437, 64
      %v2441 = vpop.permute.xlu0 %2440
      %2442 = vrot.lane.b32.xlu0 %v442, 64
      %v2443 = vpop.permute.xlu0 %2442
      %2444 = vrot.lane.b32.xlu0 %v447, 64
      %v2445 = vpop.permute.xlu0 %2444
      %2446 = vrot.lane.b32.xlu0 %v452, 64
      %v2447 = vpop.permute.xlu0 %2446
      %2448 = vrot.lane.b32.xlu0 %v457, 64
      %v2449 = vpop.permute.xlu0 %2448
      %2450 = vrot.lane.b32.xlu0 %v462, 64
      %v2451 = vpop.permute.xlu0 %2450
      %2452 = vrot.lane.b32.xlu0 %v467, 64
      %v2453 = vpop.permute.xlu0 %2452
      %2454 = vrot.lane.b32.xlu0 %v472, 64
      %v2455 = vpop.permute.xlu0 %2454
      %v2464 = vmul.f32 %v2402, %v2441
      %v2465 = vmul.f32 %v2407, %v2443
      %v2466 = vmul.f32 %v2412, %v2445
      %v2467 = vmul.f32 %v2417, %v2447
      %v2468 = vmul.f32 %v2422, %v2449
      %v2469 = vmul.f32 %v2427, %v2451
      %v2470 = vmul.f32 %v2432, %v2453
      %v2471 = vmul.f32 %v2437, %v2455
      %v2472 = vmul.f32 %v2055, %v2294
      %v2473 = vmul.f32 %v2057, %v2295
      %v2474 = vmul.f32 %v2059, %v2296
      %v2475 = vmul.f32 %v2061, %v2297
      %v2476 = vmul.f32 %v2063, %v2298
      %v2477 = vmul.f32 %v2065, %v2299
      %v2478 = vmul.f32 %v2067, %v2300
      %v2479 = vmul.f32 %v2069, %v2301
      %v2481 = vsel %vm2310, %v2472, 0
      %v2484 = vsel %vm2310, %v2473, 0
      %v2487 = vsel %vm2310, %v2474, 0
      %v2490 = vsel %vm2310, %v2475, 0
      %v2493 = vsel %vm2310, %v2476, 0
      %v2496 = vsel %vm2310, %v2477, 0
      %v2499 = vsel %vm2310, %v2478, 0
      %v2502 = vsel %vm2310, %v2479, 0
      %2504 = vmatprep.subr.mxu0 0.0
      %2505 = vmatpush1.msra.mxu0 %v479
      %2506 = vmatprep.subr.mxu0 0.0
      %2507 = vmatpush1.msra.mxu0 0.0
      %2508 = vmatprep.subr.mxu0 0.0
      %2509 = vmatpush1.msra.mxu0 0.0
      %2510 = vmatprep.subr.mxu0 0.0
      %2511 = vmatpush1.msra.mxu0 0.0
      %2512 = vmatprep.subr.mxu0 0.0
      %2513 = vmatpush1.msra.mxu0 0.0
      %2514 = vmatprep.subr.mxu0 0.0
      %2515 = vmatpush1.msra.mxu0 0.0
      %2516 = vmatprep.subr.mxu0 0.0
      %2517 = vmatpush1.msra.mxu0 0.0
      %2518 = vmatprep.subr.mxu0 0.0
      %2519 = vmatpush1.msra.mxu0 0.0
      %2520 = vmatprep.subr.mxu0 0.0
      %2521 = vmatpush1.msra.mxu0 0.0
      %2522 = vmatprep.subr.mxu0 0.0
      %2523 = vmatpush1.msra.mxu0 0.0
      %2524 = vmatprep.subr.mxu0 0.0
      %2525 = vmatpush1.msra.mxu0 0.0
      %2526 = vmatprep.subr.mxu0 0.0
      %2527 = vmatpush1.msra.mxu0 0.0
      %2528 = vmatprep.subr.mxu0 0.0
      %2529 = vmatpush1.msra.mxu0 0.0
      %2530 = vmatprep.subr.mxu0 0.0
      %2531 = vmatpush1.msra.mxu0 0.0
      %2532 = vmatprep.subr.mxu0 0.0
      %2533 = vmatpush1.msra.mxu0 0.0
      %2534 = vmatprep.subr.mxu0 0.0
      %2535 = vmatpush1.msra.mxu0 0.0
      %2536 = vmatprep.subr.mxu0 0.0
      %2537 = vmatpush1.msra.mxu0 0.0
      %2538 = vmatprep.subr.mxu0 0.0
      %2539 = vmatpush1.msra.mxu0 0.0
      %2540 = vmatprep.subr.mxu0 0.0
      %2541 = vmatpush1.msra.mxu0 0.0
      %2542 = vmatprep.subr.mxu0 0.0
      %2543 = vmatpush1.msra.mxu0 0.0
      %2544 = vmatprep.subr.mxu0 0.0
      %2545 = vmatpush1.msra.mxu0 0.0
      %2546 = vmatprep.subr.mxu0 0.0
      %2547 = vmatpush1.msra.mxu0 0.0
      %2548 = vmatprep.subr.mxu0 0.0
      %2549 = vmatpush1.msra.mxu0 0.0
      %2550 = vmatprep.subr.mxu0 0.0
      %2551 = vmatpush1.msra.mxu0 0.0
      %2552 = vmatprep.subr.mxu0 0.0
      %2553 = vmatpush1.msra.mxu0 0.0
      %2554 = vmatprep.subr.mxu0 0.0
      %2555 = vmatpush1.msra.mxu0 0.0
      %2556 = vmatprep.subr.mxu0 0.0
      %2557 = vmatpush1.msra.mxu0 0.0
      %2558 = vmatprep.subr.mxu0 0.0
      %2559 = vmatpush1.msra.mxu0 0.0
      %2560 = vmatprep.subr.mxu0 0.0
      %2561 = vmatpush1.msra.mxu0 0.0
      %2562 = vmatprep.subr.mxu0 0.0
      %2563 = vmatpush1.msra.mxu0 0.0
      %2564 = vmatprep.subr.mxu0 0.0
      %2565 = vmatpush1.msra.mxu0 0.0
      %2566 = vmatprep.subr.mxu0 0.0
      %2567 = vmatpush1.msra.mxu0 0.0
      %2568 = vmatprep.mubr.f32.mxu0 0.0
      %2569 = vmatmul.mubr.f32.gmra.mrb[0].mxu0 %v2481
      %v2570 = vpop.f32.mrb[0].mxu0
      %v2571 = vadd.f32 0.0, %v2570
      %v2572 = vpop.f32.mrb[0].mxu0
      %2573 = vmatprep.mubr.f32.mxu0 0.0
      %2574 = vmatmul.mubr.f32.gmra.mrb[0].mxu0 %v2484
      %v2575 = vpop.f32.mrb[0].mxu0
      %v2576 = vadd.f32 0.0, %v2575
      %v2577 = vpop.f32.mrb[0].mxu0
      %2578 = vmatprep.mubr.f32.mxu0 0.0
      %2579 = vmatmul.mubr.f32.gmra.mrb[0].mxu0 %v2487
      %v2580 = vpop.f32.mrb[0].mxu0
      %v2581 = vadd.f32 0.0, %v2580
      %v2582 = vpop.f32.mrb[0].mxu0
      %2583 = vmatprep.mubr.f32.mxu0 0.0
      %2584 = vmatmul.mubr.f32.gmra.mrb[0].mxu0 %v2490
      %v2585 = vpop.f32.mrb[0].mxu0
      %v2586 = vadd.f32 0.0, %v2585
      %v2587 = vpop.f32.mrb[0].mxu0
      %2588 = vmatprep.mubr.f32.mxu0 0.0
      %2589 = vmatmul.mubr.f32.gmra.mrb[0].mxu0 %v2493
      %v2590 = vpop.f32.mrb[0].mxu0
      %v2591 = vadd.f32 0.0, %v2590
      %v2592 = vpop.f32.mrb[0].mxu0
      %2593 = vmatprep.mubr.f32.mxu0 0.0
      %2594 = vmatmul.mubr.f32.gmra.mrb[0].mxu0 %v2496
      %v2595 = vpop.f32.mrb[0].mxu0
      %v2596 = vadd.f32 0.0, %v2595
      %v2597 = vpop.f32.mrb[0].mxu0
      %2598 = vmatprep.mubr.f32.mxu0 0.0
      %2599 = vmatmul.mubr.f32.gmra.mrb[0].mxu0 %v2499
      %v2600 = vpop.f32.mrb[0].mxu0
      %v2601 = vadd.f32 0.0, %v2600
      %v2602 = vpop.f32.mrb[0].mxu0
      %2603 = vmatprep.mubr.f32.mxu0 0.0
      %2604 = vmatmul.mubr.f32.gmra.mrb[0].mxu0 %v2502
      %v2605 = vpop.f32.mrb[0].mxu0
      %v2606 = vadd.f32 0.0, %v2605
      %v2607 = vpop.f32.mrb[0].mxu0
      %2608 = vdwg.mxu0
      %2609 = vrot.lane.b32.xlu0 %v660, 64
      %v2610 = vpop.permute.xlu0 %2609
      %2611 = vrot.lane.b32.xlu0 %v662, 64
      %v2612 = vpop.permute.xlu0 %2611
      %2613 = vrot.lane.b32.xlu0 %v664, 64
      %v2614 = vpop.permute.xlu0 %2613
      %2615 = vrot.lane.b32.xlu0 %v666, 64
      %v2616 = vpop.permute.xlu0 %2615
      %2617 = vrot.lane.b32.xlu0 %v668, 64
      %v2618 = vpop.permute.xlu0 %2617
      %2619 = vrot.lane.b32.xlu0 %v670, 64
      %v2620 = vpop.permute.xlu0 %2619
      %2621 = vrot.lane.b32.xlu0 %v672, 64
      %v2622 = vpop.permute.xlu0 %2621
      %2623 = vrot.lane.b32.xlu0 %v673, 64
      %v2624 = vpop.permute.xlu0 %2623
      %v2633 = vmul.f32 %v2571, %v2610
      %v2634 = vmul.f32 %v2576, %v2612
      %v2635 = vmul.f32 %v2581, %v2614
      %v2636 = vmul.f32 %v2586, %v2616
      %v2637 = vmul.f32 %v2591, %v2618
      %v2638 = vmul.f32 %v2596, %v2620
      %v2639 = vmul.f32 %v2601, %v2622
      %v2640 = vmul.f32 %v2606, %v2624
      %v2641 = vadd.f32 %v2464, %v2633
      %v2642 = vadd.f32 %v2465, %v2634
      %v2643 = vadd.f32 %v2466, %v2635
      %v2644 = vadd.f32 %v2467, %v2636
      %v2645 = vadd.f32 %v2468, %v2637
      %v2646 = vadd.f32 %v2469, %v2638
      %v2647 = vadd.f32 %v2470, %v2639
      %v2648 = vadd.f32 %v2471, %v2640
      %v2649 = vmul.f32 %v2079, %v2294
      %v2650 = vmul.f32 %v2081, %v2295
      %v2651 = vmul.f32 %v2083, %v2296
      %v2652 = vmul.f32 %v2085, %v2297
      %v2653 = vmul.f32 %v2087, %v2298
      %v2654 = vmul.f32 %v2089, %v2299
      %v2655 = vmul.f32 %v2091, %v2300
      %v2656 = vmul.f32 %v2093, %v2301
      %v2658 = vsel %vm2310, %v2649, 0
      %v2661 = vsel %vm2310, %v2650, 0
      %v2664 = vsel %vm2310, %v2651, 0
      %v2667 = vsel %vm2310, %v2652, 0
      %v2670 = vsel %vm2310, %v2653, 0
      %v2673 = vsel %vm2310, %v2654, 0
      %v2676 = vsel %vm2310, %v2655, 0
      %v2679 = vsel %vm2310, %v2656, 0
      %2681 = vmatprep.subr.mxu0 0.0
      %2682 = vmatpush1.msra.mxu0 %v479
      %2683 = vmatprep.subr.mxu0 0.0
      %2684 = vmatpush1.msra.mxu0 0.0
      %2685 = vmatprep.subr.mxu0 0.0
      %2686 = vmatpush1.msra.mxu0 0.0
      %2687 = vmatprep.subr.mxu0 0.0
      %2688 = vmatpush1.msra.mxu0 0.0
      %2689 = vmatprep.subr.mxu0 0.0
      %2690 = vmatpush1.msra.mxu0 0.0
      %2691 = vmatprep.subr.mxu0 0.0
      %2692 = vmatpush1.msra.mxu0 0.0
      %2693 = vmatprep.subr.mxu0 0.0
      %2694 = vmatpush1.msra.mxu0 0.0
      %2695 = vmatprep.subr.mxu0 0.0
      %2696 = vmatpush1.msra.mxu0 0.0
      %2697 = vmatprep.subr.mxu0 0.0
      %2698 = vmatpush1.msra.mxu0 0.0
      %2699 = vmatprep.subr.mxu0 0.0
      %2700 = vmatpush1.msra.mxu0 0.0
      %2701 = vmatprep.subr.mxu0 0.0
      %2702 = vmatpush1.msra.mxu0 0.0
      %2703 = vmatprep.subr.mxu0 0.0
      %2704 = vmatpush1.msra.mxu0 0.0
      %2705 = vmatprep.subr.mxu0 0.0
      %2706 = vmatpush1.msra.mxu0 0.0
      %2707 = vmatprep.subr.mxu0 0.0
      %2708 = vmatpush1.msra.mxu0 0.0
      %2709 = vmatprep.subr.mxu0 0.0
      %2710 = vmatpush1.msra.mxu0 0.0
      %2711 = vmatprep.subr.mxu0 0.0
      %2712 = vmatpush1.msra.mxu0 0.0
      %2713 = vmatprep.subr.mxu0 0.0
      %2714 = vmatpush1.msra.mxu0 0.0
      %2715 = vmatprep.subr.mxu0 0.0
      %2716 = vmatpush1.msra.mxu0 0.0
      %2717 = vmatprep.subr.mxu0 0.0
      %2718 = vmatpush1.msra.mxu0 0.0
      %2719 = vmatprep.subr.mxu0 0.0
      %2720 = vmatpush1.msra.mxu0 0.0
      %2721 = vmatprep.subr.mxu0 0.0
      %2722 = vmatpush1.msra.mxu0 0.0
      %2723 = vmatprep.subr.mxu0 0.0
      %2724 = vmatpush1.msra.mxu0 0.0
      %2725 = vmatprep.subr.mxu0 0.0
      %2726 = vmatpush1.msra.mxu0 0.0
      %2727 = vmatprep.subr.mxu0 0.0
      %2728 = vmatpush1.msra.mxu0 0.0
      %2729 = vmatprep.subr.mxu0 0.0
      %2730 = vmatpush1.msra.mxu0 0.0
      %2731 = vmatprep.subr.mxu0 0.0
      %2732 = vmatpush1.msra.mxu0 0.0
      %2733 = vmatprep.subr.mxu0 0.0
      %2734 = vmatpush1.msra.mxu0 0.0
      %2735 = vmatprep.subr.mxu0 0.0
      %2736 = vmatpush1.msra.mxu0 0.0
      %2737 = vmatprep.subr.mxu0 0.0
      %2738 = vmatpush1.msra.mxu0 0.0
      %2739 = vmatprep.subr.mxu0 0.0
      %2740 = vmatpush1.msra.mxu0 0.0
      %2741 = vmatprep.subr.mxu0 0.0
      %2742 = vmatpush1.msra.mxu0 0.0
      %2743 = vmatprep.subr.mxu0 0.0
      %2744 = vmatpush1.msra.mxu0 0.0
      %2745 = vmatprep.mubr.f32.mxu0 0.0
      %2746 = vmatmul.mubr.f32.gmra.mrb[0].mxu0 %v2658
      %v2747 = vpop.f32.mrb[0].mxu0
      %v2748 = vadd.f32 0.0, %v2747
      %v2749 = vpop.f32.mrb[0].mxu0
      %2750 = vmatprep.mubr.f32.mxu0 0.0
      %2751 = vmatmul.mubr.f32.gmra.mrb[0].mxu0 %v2661
      %v2752 = vpop.f32.mrb[0].mxu0
      %v2753 = vadd.f32 0.0, %v2752
      %v2754 = vpop.f32.mrb[0].mxu0
      %2755 = vmatprep.mubr.f32.mxu0 0.0
      %2756 = vmatmul.mubr.f32.gmra.mrb[0].mxu0 %v2664
      %v2757 = vpop.f32.mrb[0].mxu0
      %v2758 = vadd.f32 0.0, %v2757
      %v2759 = vpop.f32.mrb[0].mxu0
      %2760 = vmatprep.mubr.f32.mxu0 0.0
      %2761 = vmatmul.mubr.f32.gmra.mrb[0].mxu0 %v2667
      %v2762 = vpop.f32.mrb[0].mxu0
      %v2763 = vadd.f32 0.0, %v2762
      %v2764 = vpop.f32.mrb[0].mxu0
      %2765 = vmatprep.mubr.f32.mxu0 0.0
      %2766 = vmatmul.mubr.f32.gmra.mrb[0].mxu0 %v2670
      %v2767 = vpop.f32.mrb[0].mxu0
      %v2768 = vadd.f32 0.0, %v2767
      %v2769 = vpop.f32.mrb[0].mxu0
      %2770 = vmatprep.mubr.f32.mxu0 0.0
      %2771 = vmatmul.mubr.f32.gmra.mrb[0].mxu0 %v2673
      %v2772 = vpop.f32.mrb[0].mxu0
      %v2773 = vadd.f32 0.0, %v2772
      %v2774 = vpop.f32.mrb[0].mxu0
      %2775 = vmatprep.mubr.f32.mxu0 0.0
      %2776 = vmatmul.mubr.f32.gmra.mrb[0].mxu0 %v2676
      %v2777 = vpop.f32.mrb[0].mxu0
      %v2778 = vadd.f32 0.0, %v2777
      %v2779 = vpop.f32.mrb[0].mxu0
      %2780 = vmatprep.mubr.f32.mxu0 0.0
      %2781 = vmatmul.mubr.f32.gmra.mrb[0].mxu0 %v2679
      %v2782 = vpop.f32.mrb[0].mxu0
      %v2783 = vadd.f32 0.0, %v2782
      %v2784 = vpop.f32.mrb[0].mxu0
      %2785 = vdwg.mxu0
      %2786 = vrot.lane.b32.xlu0 %v847, 64
      %v2787 = vpop.permute.xlu0 %2786
      %2788 = vrot.lane.b32.xlu0 %v849, 64
      %v2789 = vpop.permute.xlu0 %2788
      %2790 = vrot.lane.b32.xlu0 %v851, 64
      %v2791 = vpop.permute.xlu0 %2790
      %2792 = vrot.lane.b32.xlu0 %v853, 64
      %v2793 = vpop.permute.xlu0 %2792
      %2794 = vrot.lane.b32.xlu0 %v855, 64
      %v2795 = vpop.permute.xlu0 %2794
      %2796 = vrot.lane.b32.xlu0 %v857, 64
      %v2797 = vpop.permute.xlu0 %2796
      %2798 = vrot.lane.b32.xlu0 %v859, 64
      %v2799 = vpop.permute.xlu0 %2798
      %2800 = vrot.lane.b32.xlu0 %v860, 64
      %v2801 = vpop.permute.xlu0 %2800
      %v2810 = vmul.f32 %v2748, %v2787
      %v2811 = vmul.f32 %v2753, %v2789
      %v2812 = vmul.f32 %v2758, %v2791
      %v2813 = vmul.f32 %v2763, %v2793
      %v2814 = vmul.f32 %v2768, %v2795
      %v2815 = vmul.f32 %v2773, %v2797
      %v2816 = vmul.f32 %v2778, %v2799
      %v2817 = vmul.f32 %v2783, %v2801
      %v2818 = vadd.f32 %v2641, %v2810
      %v2819 = vadd.f32 %v2642, %v2811
      %v2820 = vadd.f32 %v2643, %v2812
      %v2821 = vadd.f32 %v2644, %v2813
      %v2822 = vadd.f32 %v2645, %v2814
      %v2823 = vadd.f32 %v2646, %v2815
      %v2824 = vadd.f32 %v2647, %v2816
      %v2825 = vadd.f32 %v2648, %v2817
      %v2826 = vmul.f32 %v2103, %v2294
      %v2827 = vmul.f32 %v2105, %v2295
      %v2828 = vmul.f32 %v2107, %v2296
      %v2829 = vmul.f32 %v2109, %v2297
      %v2830 = vmul.f32 %v2111, %v2298
      %v2831 = vmul.f32 %v2113, %v2299
      %v2832 = vmul.f32 %v2115, %v2300
      %v2833 = vmul.f32 %v2117, %v2301
      %v2835 = vsel %vm2310, %v2826, 0
      %v2838 = vsel %vm2310, %v2827, 0
      %v2841 = vsel %vm2310, %v2828, 0
      %v2844 = vsel %vm2310, %v2829, 0
      %v2847 = vsel %vm2310, %v2830, 0
      %v2850 = vsel %vm2310, %v2831, 0
      %v2853 = vsel %vm2310, %v2832, 0
      %v2856 = vsel %vm2310, %v2833, 0
      %2858 = vmatprep.subr.mxu0 0.0
      %2859 = vmatpush1.msra.mxu0 %v479
      %2860 = vmatprep.subr.mxu0 0.0
      %2861 = vmatpush1.msra.mxu0 0.0
      %2862 = vmatprep.subr.mxu0 0.0
      %2863 = vmatpush1.msra.mxu0 0.0
      %2864 = vmatprep.subr.mxu0 0.0
      %2865 = vmatpush1.msra.mxu0 0.0
      %2866 = vmatprep.subr.mxu0 0.0
      %2867 = vmatpush1.msra.mxu0 0.0
      %2868 = vmatprep.subr.mxu0 0.0
      %2869 = vmatpush1.msra.mxu0 0.0
      %2870 = vmatprep.subr.mxu0 0.0
      %2871 = vmatpush1.msra.mxu0 0.0
      %2872 = vmatprep.subr.mxu0 0.0
      %2873 = vmatpush1.msra.mxu0 0.0
      %2874 = vmatprep.subr.mxu0 0.0
      %2875 = vmatpush1.msra.mxu0 0.0
      %2876 = vmatprep.subr.mxu0 0.0
      %2877 = vmatpush1.msra.mxu0 0.0
      %2878 = vmatprep.subr.mxu0 0.0
      %2879 = vmatpush1.msra.mxu0 0.0
      %2880 = vmatprep.subr.mxu0 0.0
      %2881 = vmatpush1.msra.mxu0 0.0
      %2882 = vmatprep.subr.mxu0 0.0
      %2883 = vmatpush1.msra.mxu0 0.0
      %2884 = vmatprep.subr.mxu0 0.0
      %2885 = vmatpush1.msra.mxu0 0.0
      %2886 = vmatprep.subr.mxu0 0.0
      %2887 = vmatpush1.msra.mxu0 0.0
      %2888 = vmatprep.subr.mxu0 0.0
      %2889 = vmatpush1.msra.mxu0 0.0
      %2890 = vmatprep.subr.mxu0 0.0
      %2891 = vmatpush1.msra.mxu0 0.0
      %2892 = vmatprep.subr.mxu0 0.0
      %2893 = vmatpush1.msra.mxu0 0.0
      %2894 = vmatprep.subr.mxu0 0.0
      %2895 = vmatpush1.msra.mxu0 0.0
      %2896 = vmatprep.subr.mxu0 0.0
      %2897 = vmatpush1.msra.mxu0 0.0
      %2898 = vmatprep.subr.mxu0 0.0
      %2899 = vmatpush1.msra.mxu0 0.0
      %2900 = vmatprep.subr.mxu0 0.0
      %2901 = vmatpush1.msra.mxu0 0.0
      %2902 = vmatprep.subr.mxu0 0.0
      %2903 = vmatpush1.msra.mxu0 0.0
      %2904 = vmatprep.subr.mxu0 0.0
      %2905 = vmatpush1.msra.mxu0 0.0
      %2906 = vmatprep.subr.mxu0 0.0
      %2907 = vmatpush1.msra.mxu0 0.0
      %2908 = vmatprep.subr.mxu0 0.0
      %2909 = vmatpush1.msra.mxu0 0.0
      %2910 = vmatprep.subr.mxu0 0.0
      %2911 = vmatpush1.msra.mxu0 0.0
      %2912 = vmatprep.subr.mxu0 0.0
      %2913 = vmatpush1.msra.mxu0 0.0
      %2914 = vmatprep.subr.mxu0 0.0
      %2915 = vmatpush1.msra.mxu0 0.0
      %2916 = vmatprep.subr.mxu0 0.0
      %2917 = vmatpush1.msra.mxu0 0.0
      %2918 = vmatprep.subr.mxu0 0.0
      %2919 = vmatpush1.msra.mxu0 0.0
      %2920 = vmatprep.subr.mxu0 0.0
      %2921 = vmatpush1.msra.mxu0 0.0
      %2922 = vmatprep.mubr.f32.mxu0 0.0
      %2923 = vmatmul.mubr.f32.gmra.mrb[0].mxu0 %v2835
      %v2924 = vpop.f32.mrb[0].mxu0
      %v2925 = vadd.f32 0.0, %v2924
      %v2926 = vpop.f32.mrb[0].mxu0
      %2927 = vmatprep.mubr.f32.mxu0 0.0
      %2928 = vmatmul.mubr.f32.gmra.mrb[0].mxu0 %v2838
      %v2929 = vpop.f32.mrb[0].mxu0
      %v2930 = vadd.f32 0.0, %v2929
      %v2931 = vpop.f32.mrb[0].mxu0
      %2932 = vmatprep.mubr.f32.mxu0 0.0
      %2933 = vmatmul.mubr.f32.gmra.mrb[0].mxu0 %v2841
      %v2934 = vpop.f32.mrb[0].mxu0
      %v2935 = vadd.f32 0.0, %v2934
      %v2936 = vpop.f32.mrb[0].mxu0
      %2937 = vmatprep.mubr.f32.mxu0 0.0
      %2938 = vmatmul.mubr.f32.gmra.mrb[0].mxu0 %v2844
      %v2939 = vpop.f32.mrb[0].mxu0
      %v2940 = vadd.f32 0.0, %v2939
      %v2941 = vpop.f32.mrb[0].mxu0
      %2942 = vmatprep.mubr.f32.mxu0 0.0
      %2943 = vmatmul.mubr.f32.gmra.mrb[0].mxu0 %v2847
      %v2944 = vpop.f32.mrb[0].mxu0
      %v2945 = vadd.f32 0.0, %v2944
      %v2946 = vpop.f32.mrb[0].mxu0
      %2947 = vmatprep.mubr.f32.mxu0 0.0
      %2948 = vmatmul.mubr.f32.gmra.mrb[0].mxu0 %v2850
      %v2949 = vpop.f32.mrb[0].mxu0
      %v2950 = vadd.f32 0.0, %v2949
      %v2951 = vpop.f32.mrb[0].mxu0
      %2952 = vmatprep.mubr.f32.mxu0 0.0
      %2953 = vmatmul.mubr.f32.gmra.mrb[0].mxu0 %v2853
      %v2954 = vpop.f32.mrb[0].mxu0
      %v2955 = vadd.f32 0.0, %v2954
      %v2956 = vpop.f32.mrb[0].mxu0
      %2957 = vmatprep.mubr.f32.mxu0 0.0
      %2958 = vmatmul.mubr.f32.gmra.mrb[0].mxu0 %v2856
      %v2959 = vpop.f32.mrb[0].mxu0
      %v2960 = vadd.f32 0.0, %v2959
      %v2961 = vpop.f32.mrb[0].mxu0
      %2962 = vdwg.mxu0
      %2963 = vrot.lane.b32.xlu0 %v1034, 64
      %v2964 = vpop.permute.xlu0 %2963
      %2965 = vrot.lane.b32.xlu0 %v1036, 64
      %v2966 = vpop.permute.xlu0 %2965
      %2967 = vrot.lane.b32.xlu0 %v1038, 64
      %v2968 = vpop.permute.xlu0 %2967
      %2969 = vrot.lane.b32.xlu0 %v1040, 64
      %v2970 = vpop.permute.xlu0 %2969
      %2971 = vrot.lane.b32.xlu0 %v1042, 64
      %v2972 = vpop.permute.xlu0 %2971
      %2973 = vrot.lane.b32.xlu0 %v1044, 64
      %v2974 = vpop.permute.xlu0 %2973
      %2975 = vrot.lane.b32.xlu0 %v1046, 64
      %v2976 = vpop.permute.xlu0 %2975
      %2977 = vrot.lane.b32.xlu0 %v1047, 64
      %v2978 = vpop.permute.xlu0 %2977
      %v2987 = vmul.f32 %v2925, %v2964
      %v2988 = vmul.f32 %v2930, %v2966
      %v2989 = vmul.f32 %v2935, %v2968
      %v2990 = vmul.f32 %v2940, %v2970
      %v2991 = vmul.f32 %v2945, %v2972
      %v2992 = vmul.f32 %v2950, %v2974
      %v2993 = vmul.f32 %v2955, %v2976
      %v2994 = vmul.f32 %v2960, %v2978
      %v2995 = vadd.f32 %v2818, %v2987
      %v2996 = vadd.f32 %v2819, %v2988
      %v2997 = vadd.f32 %v2820, %v2989
      %v2998 = vadd.f32 %v2821, %v2990
      %v2999 = vadd.f32 %v2822, %v2991
      %v3000 = vadd.f32 %v2823, %v2992
      %v3001 = vadd.f32 %v2824, %v2993
      %v3002 = vadd.f32 %v2825, %v2994
      %v3003 = vmul.f32 %v2127, %v2294
      %v3004 = vmul.f32 %v2129, %v2295
      %v3005 = vmul.f32 %v2131, %v2296
      %v3006 = vmul.f32 %v2133, %v2297
      %v3007 = vmul.f32 %v2135, %v2298
      %v3008 = vmul.f32 %v2137, %v2299
      %v3009 = vmul.f32 %v2139, %v2300
      %v3010 = vmul.f32 %v2141, %v2301
      %v3012 = vsel %vm2310, %v3003, 0
      %v3015 = vsel %vm2310, %v3004, 0
      %v3018 = vsel %vm2310, %v3005, 0
      %v3021 = vsel %vm2310, %v3006, 0
      %v3024 = vsel %vm2310, %v3007, 0
      %v3027 = vsel %vm2310, %v3008, 0
      %v3030 = vsel %vm2310, %v3009, 0
      %v3033 = vsel %vm2310, %v3010, 0
      %3035 = vmatprep.subr.mxu0 0.0
      %3036 = vmatpush1.msra.mxu0 %v479
      %3037 = vmatprep.subr.mxu0 0.0
      %3038 = vmatpush1.msra.mxu0 0.0
      %3039 = vmatprep.subr.mxu0 0.0
      %3040 = vmatpush1.msra.mxu0 0.0
      %3041 = vmatprep.subr.mxu0 0.0
      %3042 = vmatpush1.msra.mxu0 0.0
      %3043 = vmatprep.subr.mxu0 0.0
      %3044 = vmatpush1.msra.mxu0 0.0
      %3045 = vmatprep.subr.mxu0 0.0
      %3046 = vmatpush1.msra.mxu0 0.0
      %3047 = vmatprep.subr.mxu0 0.0
      %3048 = vmatpush1.msra.mxu0 0.0
      %3049 = vmatprep.subr.mxu0 0.0
      %3050 = vmatpush1.msra.mxu0 0.0
      %3051 = vmatprep.subr.mxu0 0.0
      %3052 = vmatpush1.msra.mxu0 0.0
      %3053 = vmatprep.subr.mxu0 0.0
      %3054 = vmatpush1.msra.mxu0 0.0
      %3055 = vmatprep.subr.mxu0 0.0
      %3056 = vmatpush1.msra.mxu0 0.0
      %3057 = vmatprep.subr.mxu0 0.0
      %3058 = vmatpush1.msra.mxu0 0.0
      %3059 = vmatprep.subr.mxu0 0.0
      %3060 = vmatpush1.msra.mxu0 0.0
      %3061 = vmatprep.subr.mxu0 0.0
      %3062 = vmatpush1.msra.mxu0 0.0
      %3063 = vmatprep.subr.mxu0 0.0
      %3064 = vmatpush1.msra.mxu0 0.0
      %3065 = vmatprep.subr.mxu0 0.0
      %3066 = vmatpush1.msra.mxu0 0.0
      %3067 = vmatprep.subr.mxu0 0.0
      %3068 = vmatpush1.msra.mxu0 0.0
      %3069 = vmatprep.subr.mxu0 0.0
      %3070 = vmatpush1.msra.mxu0 0.0
      %3071 = vmatprep.subr.mxu0 0.0
      %3072 = vmatpush1.msra.mxu0 0.0
      %3073 = vmatprep.subr.mxu0 0.0
      %3074 = vmatpush1.msra.mxu0 0.0
      %3075 = vmatprep.subr.mxu0 0.0
      %3076 = vmatpush1.msra.mxu0 0.0
      %3077 = vmatprep.subr.mxu0 0.0
      %3078 = vmatpush1.msra.mxu0 0.0
      %3079 = vmatprep.subr.mxu0 0.0
      %3080 = vmatpush1.msra.mxu0 0.0
      %3081 = vmatprep.subr.mxu0 0.0
      %3082 = vmatpush1.msra.mxu0 0.0
      %3083 = vmatprep.subr.mxu0 0.0
      %3084 = vmatpush1.msra.mxu0 0.0
      %3085 = vmatprep.subr.mxu0 0.0
      %3086 = vmatpush1.msra.mxu0 0.0
      %3087 = vmatprep.subr.mxu0 0.0
      %3088 = vmatpush1.msra.mxu0 0.0
      %3089 = vmatprep.subr.mxu0 0.0
      %3090 = vmatpush1.msra.mxu0 0.0
      %3091 = vmatprep.subr.mxu0 0.0
      %3092 = vmatpush1.msra.mxu0 0.0
      %3093 = vmatprep.subr.mxu0 0.0
      %3094 = vmatpush1.msra.mxu0 0.0
      %3095 = vmatprep.subr.mxu0 0.0
      %3096 = vmatpush1.msra.mxu0 0.0
      %3097 = vmatprep.subr.mxu0 0.0
      %3098 = vmatpush1.msra.mxu0 0.0
      %3099 = vmatprep.mubr.f32.mxu0 0.0
      %3100 = vmatmul.mubr.f32.gmra.mrb[0].mxu0 %v3012
      %v3101 = vpop.f32.mrb[0].mxu0
      %v3102 = vadd.f32 0.0, %v3101
      %v3103 = vpop.f32.mrb[0].mxu0
      %3104 = vmatprep.mubr.f32.mxu0 0.0
      %3105 = vmatmul.mubr.f32.gmra.mrb[0].mxu0 %v3015
      %v3106 = vpop.f32.mrb[0].mxu0
      %v3107 = vadd.f32 0.0, %v3106
      %v3108 = vpop.f32.mrb[0].mxu0
      %3109 = vmatprep.mubr.f32.mxu0 0.0
      %3110 = vmatmul.mubr.f32.gmra.mrb[0].mxu0 %v3018
      %v3111 = vpop.f32.mrb[0].mxu0
      %v3112 = vadd.f32 0.0, %v3111
      %v3113 = vpop.f32.mrb[0].mxu0
      %3114 = vmatprep.mubr.f32.mxu0 0.0
      %3115 = vmatmul.mubr.f32.gmra.mrb[0].mxu0 %v3021
      %v3116 = vpop.f32.mrb[0].mxu0
      %v3117 = vadd.f32 0.0, %v3116
      %v3118 = vpop.f32.mrb[0].mxu0
      %3119 = vmatprep.mubr.f32.mxu0 0.0
      %3120 = vmatmul.mubr.f32.gmra.mrb[0].mxu0 %v3024
      %v3121 = vpop.f32.mrb[0].mxu0
      %v3122 = vadd.f32 0.0, %v3121
      %v3123 = vpop.f32.mrb[0].mxu0
      %3124 = vmatprep.mubr.f32.mxu0 0.0
      %3125 = vmatmul.mubr.f32.gmra.mrb[0].mxu0 %v3027
      %v3126 = vpop.f32.mrb[0].mxu0
      %v3127 = vadd.f32 0.0, %v3126
      %v3128 = vpop.f32.mrb[0].mxu0
      %3129 = vmatprep.mubr.f32.mxu0 0.0
      %3130 = vmatmul.mubr.f32.gmra.mrb[0].mxu0 %v3030
      %v3131 = vpop.f32.mrb[0].mxu0
      %v3132 = vadd.f32 0.0, %v3131
      %v3133 = vpop.f32.mrb[0].mxu0
      %3134 = vmatprep.mubr.f32.mxu0 0.0
      %3135 = vmatmul.mubr.f32.gmra.mrb[0].mxu0 %v3033
      %v3136 = vpop.f32.mrb[0].mxu0
      %v3137 = vadd.f32 0.0, %v3136
      %v3138 = vpop.f32.mrb[0].mxu0
      %3139 = vdwg.mxu0
      %3140 = vrot.lane.b32.xlu0 %v1221, 64
      %v3141 = vpop.permute.xlu0 %3140
      %3142 = vrot.lane.b32.xlu0 %v1223, 64
      %v3143 = vpop.permute.xlu0 %3142
      %3144 = vrot.lane.b32.xlu0 %v1225, 64
      %v3145 = vpop.permute.xlu0 %3144
      %3146 = vrot.lane.b32.xlu0 %v1227, 64
      %v3147 = vpop.permute.xlu0 %3146
      %3148 = vrot.lane.b32.xlu0 %v1229, 64
      %v3149 = vpop.permute.xlu0 %3148
      %3150 = vrot.lane.b32.xlu0 %v1231, 64
      %v3151 = vpop.permute.xlu0 %3150
      %3152 = vrot.lane.b32.xlu0 %v1233, 64
      %v3153 = vpop.permute.xlu0 %3152
      %3154 = vrot.lane.b32.xlu0 %v1234, 64
      %v3155 = vpop.permute.xlu0 %3154
      %v3164 = vmul.f32 %v3102, %v3141
      %v3165 = vmul.f32 %v3107, %v3143
      %v3166 = vmul.f32 %v3112, %v3145
      %v3167 = vmul.f32 %v3117, %v3147
      %v3168 = vmul.f32 %v3122, %v3149
      %v3169 = vmul.f32 %v3127, %v3151
      %v3170 = vmul.f32 %v3132, %v3153
      %v3171 = vmul.f32 %v3137, %v3155
      %v3172 = vadd.f32 %v2995, %v3164
      %v3173 = vadd.f32 %v2996, %v3165
      %v3174 = vadd.f32 %v2997, %v3166
      %v3175 = vadd.f32 %v2998, %v3167
      %v3176 = vadd.f32 %v2999, %v3168
      %v3177 = vadd.f32 %v3000, %v3169
      %v3178 = vadd.f32 %v3001, %v3170
      %v3179 = vadd.f32 %v3002, %v3171
      %v3180 = vmul.f32 %v2151, %v2294
      %v3181 = vmul.f32 %v2153, %v2295
      %v3182 = vmul.f32 %v2155, %v2296
      %v3183 = vmul.f32 %v2157, %v2297
      %v3184 = vmul.f32 %v2159, %v2298
      %v3185 = vmul.f32 %v2161, %v2299
      %v3186 = vmul.f32 %v2163, %v2300
      %v3187 = vmul.f32 %v2165, %v2301
      %v3189 = vsel %vm2310, %v3180, 0
      %v3192 = vsel %vm2310, %v3181, 0
      %v3195 = vsel %vm2310, %v3182, 0
      %v3198 = vsel %vm2310, %v3183, 0
      %v3201 = vsel %vm2310, %v3184, 0
      %v3204 = vsel %vm2310, %v3185, 0
      %v3207 = vsel %vm2310, %v3186, 0
      %v3210 = vsel %vm2310, %v3187, 0
      %3212 = vmatprep.subr.mxu0 0.0
      %3213 = vmatpush1.msra.mxu0 %v479
      %3214 = vmatprep.subr.mxu0 0.0
      %3215 = vmatpush1.msra.mxu0 0.0
      %3216 = vmatprep.subr.mxu0 0.0
      %3217 = vmatpush1.msra.mxu0 0.0
      %3218 = vmatprep.subr.mxu0 0.0
      %3219 = vmatpush1.msra.mxu0 0.0
      %3220 = vmatprep.subr.mxu0 0.0
      %3221 = vmatpush1.msra.mxu0 0.0
      %3222 = vmatprep.subr.mxu0 0.0
      %3223 = vmatpush1.msra.mxu0 0.0
      %3224 = vmatprep.subr.mxu0 0.0
      %3225 = vmatpush1.msra.mxu0 0.0
      %3226 = vmatprep.subr.mxu0 0.0
      %3227 = vmatpush1.msra.mxu0 0.0
      %3228 = vmatprep.subr.mxu0 0.0
      %3229 = vmatpush1.msra.mxu0 0.0
      %3230 = vmatprep.subr.mxu0 0.0
      %3231 = vmatpush1.msra.mxu0 0.0
      %3232 = vmatprep.subr.mxu0 0.0
      %3233 = vmatpush1.msra.mxu0 0.0
      %3234 = vmatprep.subr.mxu0 0.0
      %3235 = vmatpush1.msra.mxu0 0.0
      %3236 = vmatprep.subr.mxu0 0.0
      %3237 = vmatpush1.msra.mxu0 0.0
      %3238 = vmatprep.subr.mxu0 0.0
      %3239 = vmatpush1.msra.mxu0 0.0
      %3240 = vmatprep.subr.mxu0 0.0
      %3241 = vmatpush1.msra.mxu0 0.0
      %3242 = vmatprep.subr.mxu0 0.0
      %3243 = vmatpush1.msra.mxu0 0.0
      %3244 = vmatprep.subr.mxu0 0.0
      %3245 = vmatpush1.msra.mxu0 0.0
      %3246 = vmatprep.subr.mxu0 0.0
      %3247 = vmatpush1.msra.mxu0 0.0
      %3248 = vmatprep.subr.mxu0 0.0
      %3249 = vmatpush1.msra.mxu0 0.0
      %3250 = vmatprep.subr.mxu0 0.0
      %3251 = vmatpush1.msra.mxu0 0.0
      %3252 = vmatprep.subr.mxu0 0.0
      %3253 = vmatpush1.msra.mxu0 0.0
      %3254 = vmatprep.subr.mxu0 0.0
      %3255 = vmatpush1.msra.mxu0 0.0
      %3256 = vmatprep.subr.mxu0 0.0
      %3257 = vmatpush1.msra.mxu0 0.0
      %3258 = vmatprep.subr.mxu0 0.0
      %3259 = vmatpush1.msra.mxu0 0.0
      %3260 = vmatprep.subr.mxu0 0.0
      %3261 = vmatpush1.msra.mxu0 0.0
      %3262 = vmatprep.subr.mxu0 0.0
      %3263 = vmatpush1.msra.mxu0 0.0
      %3264 = vmatprep.subr.mxu0 0.0
      %3265 = vmatpush1.msra.mxu0 0.0
      %3266 = vmatprep.subr.mxu0 0.0
      %3267 = vmatpush1.msra.mxu0 0.0
      %3268 = vmatprep.subr.mxu0 0.0
      %3269 = vmatpush1.msra.mxu0 0.0
      %3270 = vmatprep.subr.mxu0 0.0
      %3271 = vmatpush1.msra.mxu0 0.0
      %3272 = vmatprep.subr.mxu0 0.0
      %3273 = vmatpush1.msra.mxu0 0.0
      %3274 = vmatprep.subr.mxu0 0.0
      %3275 = vmatpush1.msra.mxu0 0.0
      %3276 = vmatprep.mubr.f32.mxu0 0.0
      %3277 = vmatmul.mubr.f32.gmra.mrb[0].mxu0 %v3189
      %v3278 = vpop.f32.mrb[0].mxu0
      %v3279 = vadd.f32 0.0, %v3278
      %v3280 = vpop.f32.mrb[0].mxu0
      %3281 = vmatprep.mubr.f32.mxu0 0.0
      %3282 = vmatmul.mubr.f32.gmra.mrb[0].mxu0 %v3192
      %v3283 = vpop.f32.mrb[0].mxu0
      %v3284 = vadd.f32 0.0, %v3283
      %v3285 = vpop.f32.mrb[0].mxu0
      %3286 = vmatprep.mubr.f32.mxu0 0.0
      %3287 = vmatmul.mubr.f32.gmra.mrb[0].mxu0 %v3195
      %v3288 = vpop.f32.mrb[0].mxu0
      %v3289 = vadd.f32 0.0, %v3288
      %v3290 = vpop.f32.mrb[0].mxu0
      %3291 = vmatprep.mubr.f32.mxu0 0.0
      %3292 = vmatmul.mubr.f32.gmra.mrb[0].mxu0 %v3198
      %v3293 = vpop.f32.mrb[0].mxu0
      %v3294 = vadd.f32 0.0, %v3293
      %v3295 = vpop.f32.mrb[0].mxu0
      %3296 = vmatprep.mubr.f32.mxu0 0.0
      %3297 = vmatmul.mubr.f32.gmra.mrb[0].mxu0 %v3201
      %v3298 = vpop.f32.mrb[0].mxu0
      %v3299 = vadd.f32 0.0, %v3298
      %v3300 = vpop.f32.mrb[0].mxu0
      %3301 = vmatprep.mubr.f32.mxu0 0.0
      %3302 = vmatmul.mubr.f32.gmra.mrb[0].mxu0 %v3204
      %v3303 = vpop.f32.mrb[0].mxu0
      %v3304 = vadd.f32 0.0, %v3303
      %v3305 = vpop.f32.mrb[0].mxu0
      %3306 = vmatprep.mubr.f32.mxu0 0.0
      %3307 = vmatmul.mubr.f32.gmra.mrb[0].mxu0 %v3207
      %v3308 = vpop.f32.mrb[0].mxu0
      %v3309 = vadd.f32 0.0, %v3308
      %v3310 = vpop.f32.mrb[0].mxu0
      %3311 = vmatprep.mubr.f32.mxu0 0.0
      %3312 = vmatmul.mubr.f32.gmra.mrb[0].mxu0 %v3210
      %v3313 = vpop.f32.mrb[0].mxu0
      %v3314 = vadd.f32 0.0, %v3313
      %v3315 = vpop.f32.mrb[0].mxu0
      %3316 = vdwg.mxu0
      %3317 = vrot.lane.b32.xlu0 %v1408, 64
      %v3318 = vpop.permute.xlu0 %3317
      %3319 = vrot.lane.b32.xlu0 %v1410, 64
      %v3320 = vpop.permute.xlu0 %3319
      %3321 = vrot.lane.b32.xlu0 %v1412, 64
      %v3322 = vpop.permute.xlu0 %3321
      %3323 = vrot.lane.b32.xlu0 %v1414, 64
      %v3324 = vpop.permute.xlu0 %3323
      %3325 = vrot.lane.b32.xlu0 %v1416, 64
      %v3326 = vpop.permute.xlu0 %3325
      %3327 = vrot.lane.b32.xlu0 %v1418, 64
      %v3328 = vpop.permute.xlu0 %3327
      %3329 = vrot.lane.b32.xlu0 %v1420, 64
      %v3330 = vpop.permute.xlu0 %3329
      %3331 = vrot.lane.b32.xlu0 %v1421, 64
      %v3332 = vpop.permute.xlu0 %3331
      %v3341 = vmul.f32 %v3279, %v3318
      %v3342 = vmul.f32 %v3284, %v3320
      %v3343 = vmul.f32 %v3289, %v3322
      %v3344 = vmul.f32 %v3294, %v3324
      %v3345 = vmul.f32 %v3299, %v3326
      %v3346 = vmul.f32 %v3304, %v3328
      %v3347 = vmul.f32 %v3309, %v3330
      %v3348 = vmul.f32 %v3314, %v3332
      %v3349 = vadd.f32 %v3172, %v3341
      %v3350 = vadd.f32 %v3173, %v3342
      %v3351 = vadd.f32 %v3174, %v3343
      %v3352 = vadd.f32 %v3175, %v3344
      %v3353 = vadd.f32 %v3176, %v3345
      %v3354 = vadd.f32 %v3177, %v3346
      %v3355 = vadd.f32 %v3178, %v3347
      %v3356 = vadd.f32 %v3179, %v3348
      %v3357 = vmul.f32 %v2175, %v2294
      %v3358 = vmul.f32 %v2177, %v2295
      %v3359 = vmul.f32 %v2179, %v2296
      %v3360 = vmul.f32 %v2181, %v2297
      %v3361 = vmul.f32 %v2183, %v2298
      %v3362 = vmul.f32 %v2185, %v2299
      %v3363 = vmul.f32 %v2187, %v2300
      %v3364 = vmul.f32 %v2189, %v2301
      %v3366 = vsel %vm2310, %v3357, 0
      %v3369 = vsel %vm2310, %v3358, 0
      %v3372 = vsel %vm2310, %v3359, 0
      %v3375 = vsel %vm2310, %v3360, 0
      %v3378 = vsel %vm2310, %v3361, 0
      %v3381 = vsel %vm2310, %v3362, 0
      %v3384 = vsel %vm2310, %v3363, 0
      %v3387 = vsel %vm2310, %v3364, 0
      %3389 = vmatprep.subr.mxu0 0.0
      %3390 = vmatpush1.msra.mxu0 %v479
      %3391 = vmatprep.subr.mxu0 0.0
      %3392 = vmatpush1.msra.mxu0 0.0
      %3393 = vmatprep.subr.mxu0 0.0
      %3394 = vmatpush1.msra.mxu0 0.0
      %3395 = vmatprep.subr.mxu0 0.0
      %3396 = vmatpush1.msra.mxu0 0.0
      %3397 = vmatprep.subr.mxu0 0.0
      %3398 = vmatpush1.msra.mxu0 0.0
      %3399 = vmatprep.subr.mxu0 0.0
      %3400 = vmatpush1.msra.mxu0 0.0
      %3401 = vmatprep.subr.mxu0 0.0
      %3402 = vmatpush1.msra.mxu0 0.0
      %3403 = vmatprep.subr.mxu0 0.0
      %3404 = vmatpush1.msra.mxu0 0.0
      %3405 = vmatprep.subr.mxu0 0.0
      %3406 = vmatpush1.msra.mxu0 0.0
      %3407 = vmatprep.subr.mxu0 0.0
      %3408 = vmatpush1.msra.mxu0 0.0
      %3409 = vmatprep.subr.mxu0 0.0
      %3410 = vmatpush1.msra.mxu0 0.0
      %3411 = vmatprep.subr.mxu0 0.0
      %3412 = vmatpush1.msra.mxu0 0.0
      %3413 = vmatprep.subr.mxu0 0.0
      %3414 = vmatpush1.msra.mxu0 0.0
      %3415 = vmatprep.subr.mxu0 0.0
      %3416 = vmatpush1.msra.mxu0 0.0
      %3417 = vmatprep.subr.mxu0 0.0
      %3418 = vmatpush1.msra.mxu0 0.0
      %3419 = vmatprep.subr.mxu0 0.0
      %3420 = vmatpush1.msra.mxu0 0.0
      %3421 = vmatprep.subr.mxu0 0.0
      %3422 = vmatpush1.msra.mxu0 0.0
      %3423 = vmatprep.subr.mxu0 0.0
      %3424 = vmatpush1.msra.mxu0 0.0
      %3425 = vmatprep.subr.mxu0 0.0
      %3426 = vmatpush1.msra.mxu0 0.0
      %3427 = vmatprep.subr.mxu0 0.0
      %3428 = vmatpush1.msra.mxu0 0.0
      %3429 = vmatprep.subr.mxu0 0.0
      %3430 = vmatpush1.msra.mxu0 0.0
      %3431 = vmatprep.subr.mxu0 0.0
      %3432 = vmatpush1.msra.mxu0 0.0
      %3433 = vmatprep.subr.mxu0 0.0
      %3434 = vmatpush1.msra.mxu0 0.0
      %3435 = vmatprep.subr.mxu0 0.0
      %3436 = vmatpush1.msra.mxu0 0.0
      %3437 = vmatprep.subr.mxu0 0.0
      %3438 = vmatpush1.msra.mxu0 0.0
      %3439 = vmatprep.subr.mxu0 0.0
      %3440 = vmatpush1.msra.mxu0 0.0
      %3441 = vmatprep.subr.mxu0 0.0
      %3442 = vmatpush1.msra.mxu0 0.0
      %3443 = vmatprep.subr.mxu0 0.0
      %3444 = vmatpush1.msra.mxu0 0.0
      %3445 = vmatprep.subr.mxu0 0.0
      %3446 = vmatpush1.msra.mxu0 0.0
      %3447 = vmatprep.subr.mxu0 0.0
      %3448 = vmatpush1.msra.mxu0 0.0
      %3449 = vmatprep.subr.mxu0 0.0
      %3450 = vmatpush1.msra.mxu0 0.0
      %3451 = vmatprep.subr.mxu0 0.0
      %3452 = vmatpush1.msra.mxu0 0.0
      %3453 = vmatprep.mubr.f32.mxu0 0.0
      %3454 = vmatmul.mubr.f32.gmra.mrb[0].mxu0 %v3366
      %v3455 = vpop.f32.mrb[0].mxu0
      %v3456 = vadd.f32 0.0, %v3455
      %v3457 = vpop.f32.mrb[0].mxu0
      %3458 = vmatprep.mubr.f32.mxu0 0.0
      %3459 = vmatmul.mubr.f32.gmra.mrb[0].mxu0 %v3369
      %v3460 = vpop.f32.mrb[0].mxu0
      %v3461 = vadd.f32 0.0, %v3460
      %v3462 = vpop.f32.mrb[0].mxu0
      %3463 = vmatprep.mubr.f32.mxu0 0.0
      %3464 = vmatmul.mubr.f32.gmra.mrb[0].mxu0 %v3372
      %v3465 = vpop.f32.mrb[0].mxu0
      %v3466 = vadd.f32 0.0, %v3465
      %v3467 = vpop.f32.mrb[0].mxu0
      %3468 = vmatprep.mubr.f32.mxu0 0.0
      %3469 = vmatmul.mubr.f32.gmra.mrb[0].mxu0 %v3375
      %v3470 = vpop.f32.mrb[0].mxu0
      %v3471 = vadd.f32 0.0, %v3470
      %v3472 = vpop.f32.mrb[0].mxu0
      %3473 = vmatprep.mubr.f32.mxu0 0.0
      %3474 = vmatmul.mubr.f32.gmra.mrb[0].mxu0 %v3378
      %v3475 = vpop.f32.mrb[0].mxu0
      %v3476 = vadd.f32 0.0, %v3475
      %v3477 = vpop.f32.mrb[0].mxu0
      %3478 = vmatprep.mubr.f32.mxu0 0.0
      %3479 = vmatmul.mubr.f32.gmra.mrb[0].mxu0 %v3381
      %v3480 = vpop.f32.mrb[0].mxu0
      %v3481 = vadd.f32 0.0, %v3480
      %v3482 = vpop.f32.mrb[0].mxu0
      %3483 = vmatprep.mubr.f32.mxu0 0.0
      %3484 = vmatmul.mubr.f32.gmra.mrb[0].mxu0 %v3384
      %v3485 = vpop.f32.mrb[0].mxu0
      %v3486 = vadd.f32 0.0, %v3485
      %v3487 = vpop.f32.mrb[0].mxu0
      %3488 = vmatprep.mubr.f32.mxu0 0.0
      %3489 = vmatmul.mubr.f32.gmra.mrb[0].mxu0 %v3387
      %v3490 = vpop.f32.mrb[0].mxu0
      %v3491 = vadd.f32 0.0, %v3490
      %v3492 = vpop.f32.mrb[0].mxu0
      %3493 = vdwg.mxu0
      %3494 = vrot.lane.b32.xlu0 %v1595, 64
      %v3495 = vpop.permute.xlu0 %3494
      %3496 = vrot.lane.b32.xlu0 %v1597, 64
      %v3497 = vpop.permute.xlu0 %3496
      %3498 = vrot.lane.b32.xlu0 %v1599, 64
      %v3499 = vpop.permute.xlu0 %3498
      %3500 = vrot.lane.b32.xlu0 %v1601, 64
      %v3501 = vpop.permute.xlu0 %3500
      %3502 = vrot.lane.b32.xlu0 %v1603, 64
      %v3503 = vpop.permute.xlu0 %3502
      %3504 = vrot.lane.b32.xlu0 %v1605, 64
      %v3505 = vpop.permute.xlu0 %3504
      %3506 = vrot.lane.b32.xlu0 %v1607, 64
      %v3507 = vpop.permute.xlu0 %3506
      %3508 = vrot.lane.b32.xlu0 %v1608, 64
      %v3509 = vpop.permute.xlu0 %3508
      %v3518 = vmul.f32 %v3456, %v3495
      %v3519 = vmul.f32 %v3461, %v3497
      %v3520 = vmul.f32 %v3466, %v3499
      %v3521 = vmul.f32 %v3471, %v3501
      %v3522 = vmul.f32 %v3476, %v3503
      %v3523 = vmul.f32 %v3481, %v3505
      %v3524 = vmul.f32 %v3486, %v3507
      %v3525 = vmul.f32 %v3491, %v3509
      %v3526 = vadd.f32 %v3349, %v3518
      %v3527 = vadd.f32 %v3350, %v3519
      %v3528 = vadd.f32 %v3351, %v3520
      %v3529 = vadd.f32 %v3352, %v3521
      %v3530 = vadd.f32 %v3353, %v3522
      %v3531 = vadd.f32 %v3354, %v3523
      %v3532 = vadd.f32 %v3355, %v3524
      %v3533 = vadd.f32 %v3356, %v3525
      %v3534 = vmul.f32 %v2199, %v2294
      %v3535 = vmul.f32 %v2201, %v2295
      %v3536 = vmul.f32 %v2203, %v2296
      %v3537 = vmul.f32 %v2205, %v2297
      %v3538 = vmul.f32 %v2207, %v2298
      %v3539 = vmul.f32 %v2209, %v2299
      %v3540 = vmul.f32 %v2211, %v2300
      %v3541 = vmul.f32 %v2213, %v2301
      %v3543 = vsel %vm2310, %v3534, 0
      %v3546 = vsel %vm2310, %v3535, 0
      %v3549 = vsel %vm2310, %v3536, 0
      %v3552 = vsel %vm2310, %v3537, 0
      %v3555 = vsel %vm2310, %v3538, 0
      %v3558 = vsel %vm2310, %v3539, 0
      %v3561 = vsel %vm2310, %v3540, 0
      %v3564 = vsel %vm2310, %v3541, 0
      %3566 = vmatprep.subr.mxu0 0.0
      %3567 = vmatpush1.msra.mxu0 %v479
      %3568 = vmatprep.subr.mxu0 0.0
      %3569 = vmatpush1.msra.mxu0 0.0
      %3570 = vmatprep.subr.mxu0 0.0
      %3571 = vmatpush1.msra.mxu0 0.0
      %3572 = vmatprep.subr.mxu0 0.0
      %3573 = vmatpush1.msra.mxu0 0.0
      %3574 = vmatprep.subr.mxu0 0.0
      %3575 = vmatpush1.msra.mxu0 0.0
      %3576 = vmatprep.subr.mxu0 0.0
      %3577 = vmatpush1.msra.mxu0 0.0
      %3578 = vmatprep.subr.mxu0 0.0
      %3579 = vmatpush1.msra.mxu0 0.0
      %3580 = vmatprep.subr.mxu0 0.0
      %3581 = vmatpush1.msra.mxu0 0.0
      %3582 = vmatprep.subr.mxu0 0.0
      %3583 = vmatpush1.msra.mxu0 0.0
      %3584 = vmatprep.subr.mxu0 0.0
      %3585 = vmatpush1.msra.mxu0 0.0
      %3586 = vmatprep.subr.mxu0 0.0
      %3587 = vmatpush1.msra.mxu0 0.0
      %3588 = vmatprep.subr.mxu0 0.0
      %3589 = vmatpush1.msra.mxu0 0.0
      %3590 = vmatprep.subr.mxu0 0.0
      %3591 = vmatpush1.msra.mxu0 0.0
      %3592 = vmatprep.subr.mxu0 0.0
      %3593 = vmatpush1.msra.mxu0 0.0
      %3594 = vmatprep.subr.mxu0 0.0
      %3595 = vmatpush1.msra.mxu0 0.0
      %3596 = vmatprep.subr.mxu0 0.0
      %3597 = vmatpush1.msra.mxu0 0.0
      %3598 = vmatprep.subr.mxu0 0.0
      %3599 = vmatpush1.msra.mxu0 0.0
      %3600 = vmatprep.subr.mxu0 0.0
      %3601 = vmatpush1.msra.mxu0 0.0
      %3602 = vmatprep.subr.mxu0 0.0
      %3603 = vmatpush1.msra.mxu0 0.0
      %3604 = vmatprep.subr.mxu0 0.0
      %3605 = vmatpush1.msra.mxu0 0.0
      %3606 = vmatprep.subr.mxu0 0.0
      %3607 = vmatpush1.msra.mxu0 0.0
      %3608 = vmatprep.subr.mxu0 0.0
      %3609 = vmatpush1.msra.mxu0 0.0
      %3610 = vmatprep.subr.mxu0 0.0
      %3611 = vmatpush1.msra.mxu0 0.0
      %3612 = vmatprep.subr.mxu0 0.0
      %3613 = vmatpush1.msra.mxu0 0.0
      %3614 = vmatprep.subr.mxu0 0.0
      %3615 = vmatpush1.msra.mxu0 0.0
      %3616 = vmatprep.subr.mxu0 0.0
      %3617 = vmatpush1.msra.mxu0 0.0
      %3618 = vmatprep.subr.mxu0 0.0
      %3619 = vmatpush1.msra.mxu0 0.0
      %3620 = vmatprep.subr.mxu0 0.0
      %3621 = vmatpush1.msra.mxu0 0.0
      %3622 = vmatprep.subr.mxu0 0.0
      %3623 = vmatpush1.msra.mxu0 0.0
      %3624 = vmatprep.subr.mxu0 0.0
      %3625 = vmatpush1.msra.mxu0 0.0
      %3626 = vmatprep.subr.mxu0 0.0
      %3627 = vmatpush1.msra.mxu0 0.0
      %3628 = vmatprep.subr.mxu0 0.0
      %3629 = vmatpush1.msra.mxu0 0.0
      %3630 = vmatprep.mubr.f32.mxu0 0.0
      %3631 = vmatmul.mubr.f32.gmra.mrb[0].mxu0 %v3543
      %v3632 = vpop.f32.mrb[0].mxu0
      %v3633 = vadd.f32 0.0, %v3632
      %v3634 = vpop.f32.mrb[0].mxu0
      %3635 = vmatprep.mubr.f32.mxu0 0.0
      %3636 = vmatmul.mubr.f32.gmra.mrb[0].mxu0 %v3546
      %v3637 = vpop.f32.mrb[0].mxu0
      %v3638 = vadd.f32 0.0, %v3637
      %v3639 = vpop.f32.mrb[0].mxu0
      %3640 = vmatprep.mubr.f32.mxu0 0.0
      %3641 = vmatmul.mubr.f32.gmra.mrb[0].mxu0 %v3549
      %v3642 = vpop.f32.mrb[0].mxu0
      %v3643 = vadd.f32 0.0, %v3642
      %v3644 = vpop.f32.mrb[0].mxu0
      %3645 = vmatprep.mubr.f32.mxu0 0.0
      %3646 = vmatmul.mubr.f32.gmra.mrb[0].mxu0 %v3552
      %v3647 = vpop.f32.mrb[0].mxu0
      %v3648 = vadd.f32 0.0, %v3647
      %v3649 = vpop.f32.mrb[0].mxu0
      %3650 = vmatprep.mubr.f32.mxu0 0.0
      %3651 = vmatmul.mubr.f32.gmra.mrb[0].mxu0 %v3555
      %v3652 = vpop.f32.mrb[0].mxu0
      %v3653 = vadd.f32 0.0, %v3652
      %v3654 = vpop.f32.mrb[0].mxu0
      %3655 = vmatprep.mubr.f32.mxu0 0.0
      %3656 = vmatmul.mubr.f32.gmra.mrb[0].mxu0 %v3558
      %v3657 = vpop.f32.mrb[0].mxu0
      %v3658 = vadd.f32 0.0, %v3657
      %v3659 = vpop.f32.mrb[0].mxu0
      %3660 = vmatprep.mubr.f32.mxu0 0.0
      %3661 = vmatmul.mubr.f32.gmra.mrb[0].mxu0 %v3561
      %v3662 = vpop.f32.mrb[0].mxu0
      %v3663 = vadd.f32 0.0, %v3662
      %v3664 = vpop.f32.mrb[0].mxu0
      %3665 = vmatprep.mubr.f32.mxu0 0.0
      %3666 = vmatmul.mubr.f32.gmra.mrb[0].mxu0 %v3564
      %v3667 = vpop.f32.mrb[0].mxu0
      %v3668 = vadd.f32 0.0, %v3667
      %v3669 = vpop.f32.mrb[0].mxu0
      %3670 = vdwg.mxu0
      %3671 = vrot.lane.b32.xlu0 %v1782, 64
      %v3672 = vpop.permute.xlu0 %3671
      %3673 = vrot.lane.b32.xlu0 %v1784, 64
      %v3674 = vpop.permute.xlu0 %3673
      %3675 = vrot.lane.b32.xlu0 %v1786, 64
      %v3676 = vpop.permute.xlu0 %3675
      %3677 = vrot.lane.b32.xlu0 %v1788, 64
      %v3678 = vpop.permute.xlu0 %3677
      %3679 = vrot.lane.b32.xlu0 %v1790, 64
      %v3680 = vpop.permute.xlu0 %3679
      %3681 = vrot.lane.b32.xlu0 %v1792, 64
      %v3682 = vpop.permute.xlu0 %3681
      %3683 = vrot.lane.b32.xlu0 %v1794, 64
      %v3684 = vpop.permute.xlu0 %3683
      %3685 = vrot.lane.b32.xlu0 %v1795, 64
      %v3686 = vpop.permute.xlu0 %3685
      %v3695 = vmul.f32 %v3633, %v3672
      %v3696 = vmul.f32 %v3638, %v3674
      %v3697 = vmul.f32 %v3643, %v3676
      %v3698 = vmul.f32 %v3648, %v3678
      %v3699 = vmul.f32 %v3653, %v3680
      %v3700 = vmul.f32 %v3658, %v3682
      %v3701 = vmul.f32 %v3663, %v3684
      %v3702 = vmul.f32 %v3668, %v3686
      %v3703 = vadd.f32 %v3526, %v3695
      %v3704 = vadd.f32 %v3527, %v3696
      %v3705 = vadd.f32 %v3528, %v3697
      %v3706 = vadd.f32 %v3529, %v3698
      %v3707 = vadd.f32 %v3530, %v3699
      %v3708 = vadd.f32 %v3531, %v3700
      %v3709 = vadd.f32 %v3532, %v3701
      %v3710 = vadd.f32 %v3533, %v3702
      %v3711 = vld [vmem:[%s6] sm:$0xff]
      %v3712 = vld [vmem:[%s6 + $0x8] sm:$0xff]
      %v3713 = vld [vmem:[%s6 + $0x10] sm:$0xff]
      %v3714 = vld [vmem:[%s6 + $0x18] sm:$0xff]
      %v3715 = vld [vmem:[%s7] sm:$0x1]
      %v3717 = vlaneseq
      %v3718 = vshrl.u32 %v3717, 7
      %v3719 = vsub.s32 0, %v3718
      %v3720 = vrot.slane %v3715, %v3719
      %v3723 = vsel %vm345, %v3703, 0
      %v3726 = vsel %vm345, %v3704, 0
      %v3729 = vsel %vm345, %v3705, 0
      %v3732 = vsel %vm345, %v3706, 0
      %v3735 = vsel %vm345, %v3707, 0
      %v3738 = vsel %vm345, %v3708, 0
      %v3741 = vsel %vm345, %v3709, 0
      %v3744 = vsel %vm345, %v3710, 0
      %3746 = vmatprep.subr.mxu0 0.0
      %3747 = vmatpush1.msra.mxu0 %v3711
      %3748 = vmatprep.subr.mxu0 0.0
      %3749 = vmatpush1.msra.mxu0 %v3712
      %3750 = vmatprep.subr.mxu0 0.0
      %3751 = vmatpush1.msra.mxu0 %v3713
      %3752 = vmatprep.subr.mxu0 0.0
      %3753 = vmatpush1.msra.mxu0 %v3714
      %3754 = vmatprep.subr.mxu0 0.0
      %3755 = vmatpush1.msra.mxu0 0.0
      %3756 = vmatprep.subr.mxu0 0.0
      %3757 = vmatpush1.msra.mxu0 0.0
      %3758 = vmatprep.subr.mxu0 0.0
      %3759 = vmatpush1.msra.mxu0 0.0
      %3760 = vmatprep.subr.mxu0 0.0
      %3761 = vmatpush1.msra.mxu0 0.0
      %3762 = vmatprep.subr.mxu0 0.0
      %3763 = vmatpush1.msra.mxu0 0.0
      %3764 = vmatprep.subr.mxu0 0.0
      %3765 = vmatpush1.msra.mxu0 0.0
      %3766 = vmatprep.subr.mxu0 0.0
      %3767 = vmatpush1.msra.mxu0 0.0
      %3768 = vmatprep.subr.mxu0 0.0
      %3769 = vmatpush1.msra.mxu0 0.0
      %3770 = vmatprep.subr.mxu0 0.0
      %3771 = vmatpush1.msra.mxu0 0.0
      %3772 = vmatprep.subr.mxu0 0.0
      %3773 = vmatpush1.msra.mxu0 0.0
      %3774 = vmatprep.subr.mxu0 0.0
      %3775 = vmatpush1.msra.mxu0 0.0
      %3776 = vmatprep.subr.mxu0 0.0
      %3777 = vmatpush1.msra.mxu0 0.0
      %3778 = vmatprep.subr.mxu0 0.0
      %3779 = vmatpush1.msra.mxu0 0.0
      %3780 = vmatprep.subr.mxu0 0.0
      %3781 = vmatpush1.msra.mxu0 0.0
      %3782 = vmatprep.subr.mxu0 0.0
      %3783 = vmatpush1.msra.mxu0 0.0
      %3784 = vmatprep.subr.mxu0 0.0
      %3785 = vmatpush1.msra.mxu0 0.0
      %3786 = vmatprep.subr.mxu0 0.0
      %3787 = vmatpush1.msra.mxu0 0.0
      %3788 = vmatprep.subr.mxu0 0.0
      %3789 = vmatpush1.msra.mxu0 0.0
      %3790 = vmatprep.subr.mxu0 0.0
      %3791 = vmatpush1.msra.mxu0 0.0
      %3792 = vmatprep.subr.mxu0 0.0
      %3793 = vmatpush1.msra.mxu0 0.0
      %3794 = vmatprep.subr.mxu0 0.0
      %3795 = vmatpush1.msra.mxu0 0.0
      %3796 = vmatprep.subr.mxu0 0.0
      %3797 = vmatpush1.msra.mxu0 0.0
      %3798 = vmatprep.subr.mxu0 0.0
      %3799 = vmatpush1.msra.mxu0 0.0
      %3800 = vmatprep.subr.mxu0 0.0
      %3801 = vmatpush1.msra.mxu0 0.0
      %3802 = vmatprep.subr.mxu0 0.0
      %3803 = vmatpush1.msra.mxu0 0.0
      %3804 = vmatprep.subr.mxu0 0.0
      %3805 = vmatpush1.msra.mxu0 0.0
      %3806 = vmatprep.subr.mxu0 0.0
      %3807 = vmatpush1.msra.mxu0 0.0
      %3808 = vmatprep.subr.mxu0 0.0
      %3809 = vmatpush1.msra.mxu0 0.0
      %3810 = vmatprep.mubr.f32.mxu0 0.0
      %3811 = vmatmul.mubr.f32.gmra.mrb[0].mxu0 %v3723
      %v3812 = vpop.f32.mrb[0].mxu0
      %v3813 = vadd.f32 %v3720, %v3812
      %v3814 = vpop.f32.mrb[0].mxu0
      %3815 = vmatprep.mubr.f32.mxu0 0.0
      %3816 = vmatmul.mubr.f32.gmra.mrb[0].mxu0 %v3726
      %v3817 = vpop.f32.mrb[0].mxu0
      %v3818 = vadd.f32 %v3720, %v3817
      %v3819 = vpop.f32.mrb[0].mxu0
      %3820 = vmatprep.mubr.f32.mxu0 0.0
      %3821 = vmatmul.mubr.f32.gmra.mrb[0].mxu0 %v3729
      %v3822 = vpop.f32.mrb[0].mxu0
      %v3823 = vadd.f32 %v3720, %v3822
      %v3824 = vpop.f32.mrb[0].mxu0
      %3825 = vmatprep.mubr.f32.mxu0 0.0
      %3826 = vmatmul.mubr.f32.gmra.mrb[0].mxu0 %v3732
      %v3827 = vpop.f32.mrb[0].mxu0
      %v3828 = vadd.f32 %v3720, %v3827
      %v3829 = vpop.f32.mrb[0].mxu0
      %3830 = vmatprep.mubr.f32.mxu0 0.0
      %3831 = vmatmul.mubr.f32.gmra.mrb[0].mxu0 %v3735
      %v3832 = vpop.f32.mrb[0].mxu0
      %v3833 = vadd.f32 %v3720, %v3832
      %v3834 = vpop.f32.mrb[0].mxu0
      %3835 = vmatprep.mubr.f32.mxu0 0.0
      %3836 = vmatmul.mubr.f32.gmra.mrb[0].mxu0 %v3738
      %v3837 = vpop.f32.mrb[0].mxu0
      %v3838 = vadd.f32 %v3720, %v3837
      %v3839 = vpop.f32.mrb[0].mxu0
      %3840 = vmatprep.mubr.f32.mxu0 0.0
      %3841 = vmatmul.mubr.f32.gmra.mrb[0].mxu0 %v3741
      %v3842 = vpop.f32.mrb[0].mxu0
      %v3843 = vadd.f32 %v3720, %v3842
      %v3844 = vpop.f32.mrb[0].mxu0
      %3845 = vmatprep.mubr.f32.mxu0 0.0
      %3846 = vmatmul.mubr.f32.gmra.mrb[0].mxu0 %v3744
      %v3847 = vpop.f32.mrb[0].mxu0
      %v3848 = vadd.f32 %v3720, %v3847
      %v3849 = vpop.f32.mrb[0].mxu0
      %3850 = vdwg.mxu0
      %3851 = vst.msk [vmem:[%s325] sm:$0xff] %vm345, %v3813
      %3852 = vst.msk [vmem:[%s325 + $0x8] sm:$0xff] %vm345, %v3818
      %3853 = vst.msk [vmem:[%s325 + $0x10] sm:$0xff] %vm345, %v3823
      %3854 = vst.msk [vmem:[%s325 + $0x18] sm:$0xff] %vm345, %v3828
      %3855 = vst.msk [vmem:[%s325 + $0x20] sm:$0xff] %vm345, %v3833
      %3856 = vst.msk [vmem:[%s325 + $0x28] sm:$0xff] %vm345, %v3838
      %3857 = vst.msk [vmem:[%s325 + $0x30] sm:$0xff] %vm345, %v3843
      %3858 = vst.msk [vmem:[%s325 + $0x38] sm:$0xff] %vm345, %v3848
      %p3859 = scmp.lt.s32.totalorder %s19, 1
      %s3860 = scalar_select %p3859, %s19, 1
      %s3861 = smul.addr %s3860, 8
      %s3862 = smul.addr %s3861, 8
      %s3863 = scalar_lea.vmem %s8, %s3862
      // Predicated region
      $region53: #{tpu_custom_call.1} parent=51 // pred_check
        %p3864 = pneg %p215
      $region54: #{tpu_custom_call.1} parent=51 // pred_check_branch
        %3866 = sbr.rel (%p3864) target = $region56
      $region55: #{tpu_custom_call.1} parent=51 // pred_region
        _
      $region56: #{tpu_custom_call.1} parent=51 // pred_fallthru
        _
    $region52: #{tpu_custom_call.1} parent=5 // pred_fallthru
      _
    %p3867 = scmp.le.s32.totalorder 2, %s14
    // Predicated region
    $region57: #{tpu_custom_call.1} parent=5 // pred_check
      %p3868 = pneg %p3867
    $region58: #{tpu_custom_call.1} parent=5 // pred_check_branch
      %3870 = sbr.rel (%p3868) target = $region60
    $region59: #{tpu_custom_call.1} parent=5 // pred_region
      %s3871 = ssub.s32 %s14, 2
      // Predicated region
      $region61: #{tpu_custom_call.1} parent=59 // pred_check
        %p3872 = pneg %p221
      $region62: #{tpu_custom_call.1} parent=59 // pred_check_branch
        %3874 = sbr.rel (%p3872) target = $region64
      $region63: #{tpu_custom_call.1} parent=59 // pred_region
        %p3875 = scmp.lt.s32.totalorder %s20, 1
        %s3876 = scalar_select %p3875, %s20, 1
        %s3877 = smul.addr %s3876, 8
        %s3878 = smul.addr %s3877, 8
        %s3879 = scalar_lea.vmem %s8, %s3878
      $region64: #{tpu_custom_call.1} parent=59 // pred_fallthru
        _
    $region60: #{tpu_custom_call.1} parent=5 // pred_fallthru
      _
  $region6: #{tpu_custom_call.1} parent=0 // loop_footer
    %s18 = sadd.s32 1, %s14
  $region7: #{tpu_custom_call.1} parent=0 // loop_footer_branch
    %13 = sbr.rel target = $region3
  $region8: #{tpu_custom_call.1} parent=0 // loop_exit
    _

</llo_original>
